<compile_context>
chip_gen: v7x
topology: tpu7x:2x2x1
jax: 0.10.0
libtpu: 0.0.40
codegen_flags: <defaults>
</compile_context>

<pallas_src>
import jax
import jax.numpy as jnp
from jax.experimental import pallas as pl
from jax.experimental.pallas import tpu as pltpu


# -----------------------------------------------------------------------------
# Fused kernel: grid = (direction,). Each grid step runs the full T-step
# GraphGRUCell recurrence for one direction; the last step also runs the head.
# -----------------------------------------------------------------------------
def graph_gru_kernel(
    x_ref,            # (T, B, N, D) f32  time-major input (resident)
    addmask_ref,      # (N, N)   f32  additive adjacency mask: 0 edge, -1e30 none
    rowvalid_ref,     # (N, 1)   f32  1.0 if node has >=1 incoming edge else 0.0
    wg_ref, bg_ref,   # (1, H+D, 4H) bf16 / (1, 1, 4H) f32   [Q | K | V | skip]
    wru_ref, bru_ref, # (1, D+H, 2H) bf16 / (1, 1, 2H) f32   GRU1 [reset | update]
    wc_ref, bc_ref,   # (1, D+H,  H) bf16 / (1, 1,  H) f32   GRU2 candidate
    wf_ref, bf_ref,   # (2H, H) bf16 / (1, H) f32            fc1
    wo_ref, bo_ref,   # (H, OD) bf16 / (1, OD) f32           output_model
    out_ref,          # (B, N, OD) f32
    fwd_state_ref,    # VMEM scratch (B, N, H) f32 — forward final state carrier
):
    d = pl.program_id(0)
    T, B, N, D = x_ref.shape
    H = wc_ref.shape[-1]
    OD = out_ref.shape[-1]

    addmask = addmask_ref[...][None, :, :]      # (1, N, N)
    rowvalid = rowvalid_ref[...][None, :, :]    # (1, N, 1)
    wg, bg = wg_ref[0], bg_ref[0]
    wru, bru = wru_ref[0], bru_ref[0]
    wc, bc = wc_ref[0], bc_ref[0]

    def step(t, s):
        # forward direction reads x[t], backward reads x[T-1-t] (no host flip)
        t_idx = jnp.where(d == 0, t, T - 1 - t)
        x_t = x_ref[t_idx]                                        # (B, N, D)

        # ---- _gc3: TransformerConv(heads=1, concat=False) on [state, input]
        z = jnp.concatenate([s, x_t], axis=-1).reshape(B * N, H + D)
        qkvr = jnp.dot(z.astype(jnp.bfloat16), wg,
                       preferred_element_type=jnp.float32) + bg   # (B*N, 4H)
        q = qkvr[:, 0 * H:1 * H].reshape(B, N, H)   # 1/sqrt(H) folded into W_q
        k = qkvr[:, 1 * H:2 * H].reshape(B, N, H)
        v = qkvr[:, 2 * H:3 * H].reshape(B, N, H)
        skip = qkvr[:, 3 * H:4 * H].reshape(B, N, H)

        scores = jnp.einsum('bik,bjk->bij',
                            q.astype(jnp.bfloat16), k.astype(jnp.bfloat16),
                            preferred_element_type=jnp.float32)
        masked = scores + addmask
        smax = jnp.max(masked, axis=-1, keepdims=True)
        e = jnp.exp(masked - smax)               # max term -> 1, so denom >= 1
        denom = jnp.sum(e, axis=-1, keepdims=True)
        alpha = e * pl.reciprocal(denom, approx=True)
        attn = jnp.einsum('bij,bjk->bik',
                          alpha.astype(jnp.bfloat16), v.astype(jnp.bfloat16),
                          preferred_element_type=jnp.float32)
        # rowvalid zeroes the aggregation for nodes with no incoming edges
        # (matches PyG scatter semantics; additive mask alone would give 1/N).
        gat = attn * rowvalid + skip                              # (B, N, H)

        # ---- GRU1 (reset/update gates, fused) + GRU2 (candidate)
        xg = jnp.concatenate([x_t, gat], axis=-1).reshape(B * N, D + H)
        rz = jax.nn.sigmoid(jnp.dot(xg.astype(jnp.bfloat16), wru,
                                    preferred_element_type=jnp.float32) + bru)
        r = rz[:, :H].reshape(B, N, H)
        zg = rz[:, H:].reshape(B, N, H)
        xc = jnp.concatenate([x_t, r * gat], axis=-1).reshape(B * N, D + H)
        c = jnp.tanh(jnp.dot(xc.astype(jnp.bfloat16), wc,
                             preferred_element_type=jnp.float32) + bc)
        c = c.reshape(B, N, H)
        return (1.0 - zg) * gat + zg * c

    s_final = jax.lax.fori_loop(0, T, step,
                                jnp.zeros((B, N, H), jnp.float32),
                                unroll=True)

    @pl.when(d == 0)
    def _():
        fwd_state_ref[...] = s_final

    @pl.when(d == pl.num_programs(0) - 1)
    def _():
        # head: fc1([state_fwd, state_bwd]) -> relu -> output_model -> sigmoid
        sf = fwd_state_ref[...]
        hcat = jnp.concatenate([sf, s_final], axis=-1).reshape(B * N, 2 * H)
        h = jnp.dot(hcat.astype(jnp.bfloat16), wf_ref[...],
                    preferred_element_type=jnp.float32) + bf_ref[...]
        h = jnp.maximum(h, 0.0)
        o = jnp.dot(h.astype(jnp.bfloat16), wo_ref[...],
                    preferred_element_type=jnp.float32) + bo_ref[...]
        out_ref[...] = jax.nn.sigmoid(o).reshape(B, N, OD)


def run_graph_gru(x_seq, addmask, rowvalid, cell_stacked, head_params):
    """x_seq: (T, B, N, D) time-major. Returns (B, N, OD)."""
    T, B, N, D = x_seq.shape
    wg, bg, wru, bru, wc, bc = cell_stacked
    wf, bf, wo, bo = head_params
    H = wc.shape[-1]
    OD = wo.shape[-1]

    def full(shape):
        return pl.BlockSpec(shape, lambda d, _n=len(shape): (0,) * _n)

    def per_dir(arr):
        shape = arr.shape[1:]
        return pl.BlockSpec((1,) + shape,
                            lambda d, _n=len(shape): (d,) + (0,) * _n)

    in_specs = [
        full(x_seq.shape),
        full(addmask.shape),
        full(rowvalid.shape),
        per_dir(wg), per_dir(bg),
        per_dir(wru), per_dir(bru),
        per_dir(wc), per_dir(bc),
        full(wf.shape), full(bf.shape), full(wo.shape), full(bo.shape),
    ]

    grid_spec = pltpu.PrefetchScalarGridSpec(
        num_scalar_prefetch=0,
        grid=(2,),                               # direction: 0 = fwd, 1 = bwd
        in_specs=in_specs,
        out_specs=pl.BlockSpec((B, N, OD), lambda d: (0, 0, 0)),
        scratch_shapes=[pltpu.VMEM((B, N, H), jnp.float32)],
    )
    # TODO(synk): with a separate head kernel this axis could be "parallel"
    # (one direction per v7x TensorCore); kept "arbitrary" to fuse the head.
    return pl.pallas_call(
        graph_gru_kernel,
        out_shape=jax.ShapeDtypeStruct((B, N, OD), jnp.float32),
        grid_spec=grid_spec,
        compiler_params=pltpu.CompilerParams(
            dimension_semantics=("arbitrary",)),
    )(x_seq, addmask, rowvalid, wg, bg, wru, bru, wc, bc, wf, bf, wo, bo)


@jax.jit
def graph_gru_forward(x, addmask, rowvalid, cell_stacked, head_params):
    # x: (B, T, N, D)  ->  (B, output_window=1, N, output_dim)
    x_seq = jnp.transpose(x, (1, 0, 2, 3))                    # (T, B, N, D)
    out = run_graph_gru(x_seq, addmask, rowvalid, cell_stacked, head_params)
    return out[:, None, :, :]


# -----------------------------------------------------------------------------
# Deterministic parameter construction (matches module __init__ shapes).
# Unused-in-forward submodules (GAT4, GraphGRU_model_o/_future, combine_O_L_F,
# afterG, mylinear, batch_norm, weights_0/1, MLP_empty_node_update) are skipped.
# -----------------------------------------------------------------------------
def _glorot(key, shape):
    fi, fo = shape
    lim = (6.0 / (fi + fo)) ** 0.5
    return jax.random.uniform(key, shape, jnp.float32, -lim, lim)


def make_cell_params(key, D, H):
    """One GraphGRUCell: TransformerConv(H+D -> H, heads=1) + GRU1/GRU2."""
    F = H + D  # [state, input] concat width for the TransformerConv
    ks = jax.random.split(key, 10)
    wq = _glorot(ks[0], (F, H))
    wk = _glorot(ks[1], (F, H))
    wv = _glorot(ks[2], (F, H))
    wr = _glorot(ks[3], (F, H))                 # lin_skip / root weight
    bq = 0.01 * jax.random.normal(ks[4], (H,), jnp.float32)
    bk = 0.01 * jax.random.normal(ks[5], (H,), jnp.float32)
    bv = 0.01 * jax.random.normal(ks[6], (H,), jnp.float32)
    br = 0.01 * jax.random.normal(ks[7], (H,), jnp.float32)
    scale = 1.0 / (H ** 0.5)                    # fold 1/sqrt(H) into Q
    w_gat = jnp.concatenate([wq * scale, wk, wv, wr], axis=1)      # (F, 4H)
    b_gat = jnp.concatenate([bq * scale, bk, bv, br])[None, :]     # (1, 4H)
    # GRULinear: rows ordered [input (D) | hidden (H)], bias init 0.0
    w_ru = _glorot(ks[8], (D + H, 2 * H))       # GRU1: [reset | update]
    b_ru = jnp.zeros((1, 2 * H), jnp.float32)
    w_c = _glorot(ks[9], (D + H, H))            # GRU2: candidate
    b_c = jnp.zeros((1, H), jnp.float32)
    return w_gat, b_gat, w_ru, b_ru, w_c, b_c


def stack_directions(p_fwd, p_bwd):
    """Stack fwd/bwd params on a leading direction axis; weights in bf16."""
    stacked = [jnp.stack([a, b], axis=0) for a, b in zip(p_fwd, p_bwd)]
    # even indices = matmul weights (bf16 for the MXU), odd = biases (f32)
    return tuple(s.astype(jnp.bfloat16) if i % 2 == 0 else s
                 for i, s in enumerate(stacked))


def make_head_params(key, H, OD):
    ks = jax.random.split(key, 4)
    w_fc1 = _glorot(ks[0], (2 * H, H)).astype(jnp.bfloat16)   # [state|state1]
    b_fc1 = 0.01 * jax.random.normal(ks[1], (1, H), jnp.float32)
    w_out = _glorot(ks[2], (H, OD)).astype(jnp.bfloat16)      # output_window=1
    b_out = 0.01 * jax.random.normal(ks[3], (1, OD), jnp.float32)
    return w_fc1, b_fc1, w_out, b_out


def make_graph_masks(r1, r2, N):
    # adj[i, j] = 1 iff directed edge j -> i (PyG edge_index source->target)
    adj = jnp.zeros((N, N), jnp.float32).at[jnp.array(r2), jnp.array(r1)].set(1.0)
    addmask = jnp.where(adj > 0, 0.0, -1e30).astype(jnp.float32)        # (N, N)
    rowvalid = (jnp.sum(adj, axis=1, keepdims=True) > 0).astype(jnp.float32)
    return addmask, rowvalid


if __name__ == "__main__":
    # Small, module-consistent shapes.
    B, T, N, D = 2, 4, 8, 4          # batch, history, num_nodes, input_dim
    H, OD = 32, 2                    # gru_units, output_dim

    # Ring graph (both directions) so every node has incoming edges.
    r1 = list(range(N)) + [(i + 1) % N for i in range(N)]
    r2 = [(i + 1) % N for i in range(N)] + list(range(N))
    addmask, rowvalid = make_graph_masks(r1, r2, N)

    key = jax.random.PRNGKey(0)
    kx, kf, kb, kh = jax.random.split(key, 4)
    x = jax.random.normal(kx, (B, T, N, D), jnp.float32)

    cell_stacked = stack_directions(make_cell_params(kf, D, H),
                                    make_cell_params(kb, D, H))
    head_params = make_head_params(kh, H, OD)

    out = graph_gru_forward(x, addmask, rowvalid, cell_stacked, head_params)
    out = jax.block_until_ready(out)

    assert out.shape == (B, 1, N, OD), out.shape
    assert bool(jnp.all(jnp.isfinite(out)))
    # TODO(synk): torch_geometric dropout / multiGAT / OriginalGAT branches are
    # inactive in the reference forward (eval, multiGAT=False) and not implemented.
    print("KERNEL_OK")
</pallas_src>

<mosaic_0001>
module attributes {stable_mosaic.version = 11 : i64} {
  func.func @graph_gru_kernel(%arg0: i32, %arg1: memref<4x2x8x4xf32, #tpu.memory_space<vmem>>, %arg2: memref<8x8xf32, #tpu.memory_space<vmem>>, %arg3: memref<8x1xf32, #tpu.memory_space<vmem>>, %arg4: memref<1x36x128xbf16, #tpu.memory_space<vmem>>, %arg5: memref<1x1x128xf32, #tpu.memory_space<vmem>>, %arg6: memref<1x36x64xbf16, #tpu.memory_space<vmem>>, %arg7: memref<1x1x64xf32, #tpu.memory_space<vmem>>, %arg8: memref<1x36x32xbf16, #tpu.memory_space<vmem>>, %arg9: memref<1x1x32xf32, #tpu.memory_space<vmem>>, %arg10: memref<64x32xbf16, #tpu.memory_space<vmem>>, %arg11: memref<1x32xf32, #tpu.memory_space<vmem>>, %arg12: memref<32x2xbf16, #tpu.memory_space<vmem>>, %arg13: memref<1x2xf32, #tpu.memory_space<vmem>>, %arg14: memref<2x8x2xf32, #tpu.memory_space<vmem>>, %arg15: memref<2x8x32xf32, #tpu.memory_space<vmem>>) attributes {dimension_semantics = [#tpu.dimension_semantics<arbitrary>], iteration_bounds = array<i64: 2>, scalar_prefetch = 0 : i64, scratch_operands = 1 : i64, tpu.core_type = #tpu.core_type<tc>, window_params = [{pipeline_mode = #tpu.pipeline_mode<synchronous>, transform_indices = @transform_0, window_bounds = array<i64: 4, 2, 8, 4>}, {pipeline_mode = #tpu.pipeline_mode<synchronous>, transform_indices = @transform_1, window_bounds = array<i64: 8, 8>}, {pipeline_mode = #tpu.pipeline_mode<synchronous>, transform_indices = @transform_2, window_bounds = array<i64: 8, 1>}, {transform_indices = @transform_3, window_bounds = array<i64: 1, 36, 128>}, {transform_indices = @transform_4, window_bounds = array<i64: 1, 1, 128>}, {transform_indices = @transform_5, window_bounds = array<i64: 1, 36, 64>}, {transform_indices = @transform_6, window_bounds = array<i64: 1, 1, 64>}, {transform_indices = @transform_7, window_bounds = array<i64: 1, 36, 32>}, {transform_indices = @transform_8, window_bounds = array<i64: 1, 1, 32>}, {pipeline_mode = #tpu.pipeline_mode<synchronous>, transform_indices = @transform_9, window_bounds = array<i64: 64, 32>}, {pipeline_mode = #tpu.pipeline_mode<synchronous>, transform_indices = @transform_10, window_bounds = array<i64: 1, 32>}, {pipeline_mode = #tpu.pipeline_mode<synchronous>, transform_indices = @transform_11, window_bounds = array<i64: 32, 2>}, {pipeline_mode = #tpu.pipeline_mode<synchronous>, transform_indices = @transform_12, window_bounds = array<i64: 1, 2>}, {pipeline_mode = #tpu.pipeline_mode<synchronous>, transform_indices = @transform_13, window_bounds = array<i64: 2, 8, 2>}]} {
    %c0 = arith.constant 0 : index
    %c0_0 = arith.constant 0 : index
    %0 = vector.load %arg2[%c0, %c0_0] : memref<8x8xf32, #tpu.memory_space<vmem>>, vector<8x8xf32>
    %1 = vector.shape_cast %0 : vector<8x8xf32> to vector<1x8x8xf32>
    %c0_1 = arith.constant 0 : index
    %c0_2 = arith.constant 0 : index
    %2 = vector.load %arg3[%c0_1, %c0_2] : memref<8x1xf32, #tpu.memory_space<vmem>>, vector<8x1xf32>
    %3 = vector.shape_cast %2 : vector<8x1xf32> to vector<1x8x1xf32>
    %c0_3 = arith.constant 0 : index
    %c0_4 = arith.constant 0 : index
    %c0_5 = arith.constant 0 : index
    %4 = vector.load %arg4[%c0_3, %c0_4, %c0_5] : memref<1x36x128xbf16, #tpu.memory_space<vmem>>, vector<1x36x128xbf16>
    %5 = vector.shape_cast %4 : vector<1x36x128xbf16> to vector<36x128xbf16>
    %c0_6 = arith.constant 0 : index
    %c0_7 = arith.constant 0 : index
    %c0_8 = arith.constant 0 : index
    %6 = vector.load %arg5[%c0_6, %c0_7, %c0_8] : memref<1x1x128xf32, #tpu.memory_space<vmem>>, vector<1x1x128xf32>
    %7 = vector.shape_cast %6 : vector<1x1x128xf32> to vector<1x128xf32>
    %c0_9 = arith.constant 0 : index
    %c0_10 = arith.constant 0 : index
    %c0_11 = arith.constant 0 : index
    %8 = vector.load %arg6[%c0_9, %c0_10, %c0_11] : memref<1x36x64xbf16, #tpu.memory_space<vmem>>, vector<1x36x64xbf16>
    %9 = vector.shape_cast %8 : vector<1x36x64xbf16> to vector<36x64xbf16>
    %c0_12 = arith.constant 0 : index
    %c0_13 = arith.constant 0 : index
    %c0_14 = arith.constant 0 : index
    %10 = vector.load %arg7[%c0_12, %c0_13, %c0_14] : memref<1x1x64xf32, #tpu.memory_space<vmem>>, vector<1x1x64xf32>
    %11 = vector.shape_cast %10 : vector<1x1x64xf32> to vector<1x64xf32>
    %c0_15 = arith.constant 0 : index
    %c0_16 = arith.constant 0 : index
    %c0_17 = arith.constant 0 : index
    %12 = vector.load %arg8[%c0_15, %c0_16, %c0_17] : memref<1x36x32xbf16, #tpu.memory_space<vmem>>, vector<1x36x32xbf16>
    %13 = vector.shape_cast %12 : vector<1x36x32xbf16> to vector<36x32xbf16>
    %c0_18 = arith.constant 0 : index
    %c0_19 = arith.constant 0 : index
    %c0_20 = arith.constant 0 : index
    %14 = vector.load %arg9[%c0_18, %c0_19, %c0_20] : memref<1x1x32xf32, #tpu.memory_space<vmem>>, vector<1x1x32xf32>
    %15 = vector.shape_cast %14 : vector<1x1x32xf32> to vector<1x32xf32>
    %cst = arith.constant 0.000000e+00 : f32
    %16 = vector.broadcast %cst : f32 to vector<2x8x32xf32>
    %c0_i32 = arith.constant 0 : i32
    %c0_i32_21 = arith.constant 0 : i32
    %17 = arith.cmpi eq, %arg0, %c0_i32_21 : i32
    %c3_i32 = arith.constant 3 : i32
    %18 = arith.subi %c3_i32, %c0_i32 : i32
    %19 = arith.select %17, %c0_i32, %18 : i32
    %20 = arith.index_cast %19 : i32 to index
    %c0_22 = arith.constant 0 : index
    %c0_23 = arith.constant 0 : index
    %c0_24 = arith.constant 0 : index
    %21 = vector.load %arg1[%20, %c0_22, %c0_23, %c0_24] : memref<4x2x8x4xf32, #tpu.memory_space<vmem>>, vector<1x2x8x4xf32>
    %22 = vector.shape_cast %21 : vector<1x2x8x4xf32> to vector<2x8x4xf32>
    %23 = tpu.concatenate %16, %22 in 2 : vector<2x8x32xf32>, vector<2x8x4xf32> -> vector<2x8x36xf32>
    %24 = vector.shape_cast %23 : vector<2x8x36xf32> to vector<16x36xf32>
    %25 = arith.truncf %24 : vector<16x36xf32> to vector<16x36xbf16>
    %cst_25 = arith.constant dense<0.000000e+00> : vector<16x128xf32>
    %26 = tpu.matmul %25, %5, %cst_25 {dimension_numbers = #tpu.dot_dimension_numbers<[1], [0], [0], [1], [0, 0, 1, 1], [], []>} : vector<16x36xbf16>, vector<36x128xbf16>, vector<16x128xf32> -> vector<16x128xf32>
    %27 = vector.broadcast %7 : vector<1x128xf32> to vector<16x128xf32>
    %28 = arith.addf %26, %27 : vector<16x128xf32>
    %29 = vector.extract_strided_slice %28 {offsets = [0, 0], sizes = [16, 32], strides = [1, 1]} : vector<16x128xf32> to vector<16x32xf32>
    %30 = vector.shape_cast %29 : vector<16x32xf32> to vector<2x8x32xf32>
    %31 = vector.extract_strided_slice %28 {offsets = [0, 32], sizes = [16, 32], strides = [1, 1]} : vector<16x128xf32> to vector<16x32xf32>
    %32 = vector.shape_cast %31 : vector<16x32xf32> to vector<2x8x32xf32>
    %33 = vector.extract_strided_slice %28 {offsets = [0, 64], sizes = [16, 32], strides = [1, 1]} : vector<16x128xf32> to vector<16x32xf32>
    %34 = vector.shape_cast %33 : vector<16x32xf32> to vector<2x8x32xf32>
    %35 = vector.extract_strided_slice %28 {offsets = [0, 96], sizes = [16, 32], strides = [1, 1]} : vector<16x128xf32> to vector<16x32xf32>
    %36 = vector.shape_cast %35 : vector<16x32xf32> to vector<2x8x32xf32>
    %37 = arith.truncf %30 : vector<2x8x32xf32> to vector<2x8x32xbf16>
    %38 = arith.truncf %32 : vector<2x8x32xf32> to vector<2x8x32xbf16>
    "tpu.trace_start"() <{level = 10 : i32, message = "bik,bjk->bij"}> : () -> ()
    %cst_26 = arith.constant dense<0.000000e+00> : vector<2x8x8xf32>
    %39 = tpu.matmul %37, %38, %cst_26 {dimension_numbers = #tpu.dot_dimension_numbers<[2], [2], [1], [1], [0, 0, 0, 1, 1, 1], [0], [0]>} : vector<2x8x32xbf16>, vector<2x8x32xbf16>, vector<2x8x8xf32> -> vector<2x8x8xf32>
    "tpu.trace_stop"() : () -> ()
    %40 = vector.broadcast %1 : vector<1x8x8xf32> to vector<2x8x8xf32>
    %41 = arith.addf %39, %40 : vector<2x8x8xf32>
    %cst_27 = arith.constant dense<0xFF800000> : vector<2x8xf32>
    %42 = vector.multi_reduction <maximumf>, %41, %cst_27 [2] : vector<2x8x8xf32> to vector<2x8xf32>
    %43 = vector.shape_cast %42 : vector<2x8xf32> to vector<2x8x1xf32>
    %44 = vector.broadcast %43 : vector<2x8x1xf32> to vector<2x8x8xf32>
    %45 = arith.subf %41, %44 : vector<2x8x8xf32>
    %46 = math.exp %45 : vector<2x8x8xf32>
    %cst_28 = arith.constant dense<0.000000e+00> : vector<2x8xf32>
    %47 = vector.multi_reduction <add>, %46, %cst_28 [2] : vector<2x8x8xf32> to vector<2x8xf32>
    %48 = vector.shape_cast %47 : vector<2x8xf32> to vector<2x8x1xf32>
    %49 = tpu.reciprocal %48 {approx = true} : vector<2x8x1xf32> -> vector<2x8x1xf32>
    %50 = vector.broadcast %49 : vector<2x8x1xf32> to vector<2x8x8xf32>
    %51 = arith.mulf %46, %50 : vector<2x8x8xf32>
    %52 = arith.truncf %51 : vector<2x8x8xf32> to vector<2x8x8xbf16>
    %53 = arith.truncf %34 : vector<2x8x32xf32> to vector<2x8x32xbf16>
    "tpu.trace_start"() <{level = 10 : i32, message = "bij,bjk->bik"}> : () -> ()
    %cst_29 = arith.constant dense<0.000000e+00> : vector<2x8x32xf32>
    %54 = tpu.matmul %52, %53, %cst_29 {dimension_numbers = #tpu.dot_dimension_numbers<[2], [1], [1], [2], [0, 0, 0, 1, 1, 2], [0], [0]>} : vector<2x8x8xbf16>, vector<2x8x32xbf16>, vector<2x8x32xf32> -> vector<2x8x32xf32>
    "tpu.trace_stop"() : () -> ()
    %55 = vector.broadcast %3 : vector<1x8x1xf32> to vector<2x8x32xf32>
    %56 = arith.mulf %54, %55 : vector<2x8x32xf32>
    %57 = arith.addf %56, %36 : vector<2x8x32xf32>
    %58 = tpu.concatenate %22, %57 in 2 : vector<2x8x4xf32>, vector<2x8x32xf32> -> vector<2x8x36xf32>
    %59 = vector.shape_cast %58 : vector<2x8x36xf32> to vector<16x36xf32>
    %60 = arith.truncf %59 : vector<16x36xf32> to vector<16x36xbf16>
    %cst_30 = arith.constant dense<0.000000e+00> : vector<16x64xf32>
    %61 = tpu.matmul %60, %9, %cst_30 {dimension_numbers = #tpu.dot_dimension_numbers<[1], [0], [0], [1], [0, 0, 1, 1], [], []>} : vector<16x36xbf16>, vector<36x64xbf16>, vector<16x64xf32> -> vector<16x64xf32>
    %62 = vector.broadcast %11 : vector<1x64xf32> to vector<16x64xf32>
    %63 = arith.addf %61, %62 : vector<16x64xf32>
    %64 = arith.negf %63 : vector<16x64xf32>
    %65 = math.exp %64 : vector<16x64xf32>
    %cst_31 = arith.constant 1.000000e+00 : f32
    %66 = vector.broadcast %cst_31 : f32 to vector<16x64xf32>
    %67 = arith.addf %66, %65 : vector<16x64xf32>
    %68 = arith.divf %66, %67 : vector<16x64xf32>
    %69 = vector.extract_strided_slice %68 {offsets = [0, 0], sizes = [16, 32], strides = [1, 1]} : vector<16x64xf32> to vector<16x32xf32>
    %70 = vector.shape_cast %69 : vector<16x32xf32> to vector<2x8x32xf32>
    %71 = vector.extract_strided_slice %68 {offsets = [0, 32], sizes = [16, 32], strides = [1, 1]} : vector<16x64xf32> to vector<16x32xf32>
    %72 = vector.shape_cast %71 : vector<16x32xf32> to vector<2x8x32xf32>
    %73 = arith.mulf %70, %57 : vector<2x8x32xf32>
    %74 = tpu.concatenate %22, %73 in 2 : vector<2x8x4xf32>, vector<2x8x32xf32> -> vector<2x8x36xf32>
    %75 = vector.shape_cast %74 : vector<2x8x36xf32> to vector<16x36xf32>
    %76 = arith.truncf %75 : vector<16x36xf32> to vector<16x36xbf16>
    %cst_32 = arith.constant dense<0.000000e+00> : vector<16x32xf32>
    %77 = tpu.matmul %76, %13, %cst_32 {dimension_numbers = #tpu.dot_dimension_numbers<[1], [0], [0], [1], [0, 0, 1, 1], [], []>} : vector<16x36xbf16>, vector<36x32xbf16>, vector<16x32xf32> -> vector<16x32xf32>
    %78 = vector.broadcast %15 : vector<1x32xf32> to vector<16x32xf32>
    %79 = arith.addf %77, %78 : vector<16x32xf32>
    %80 = math.tanh %79 : vector<16x32xf32>
    %81 = vector.shape_cast %80 : vector<16x32xf32> to vector<2x8x32xf32>
    %cst_33 = arith.constant 1.000000e+00 : f32
    %82 = vector.broadcast %cst_33 : f32 to vector<2x8x32xf32>
    %83 = arith.subf %82, %72 : vector<2x8x32xf32>
    %84 = arith.mulf %83, %57 : vector<2x8x32xf32>
    %85 = arith.mulf %72, %81 : vector<2x8x32xf32>
    %86 = arith.addf %84, %85 : vector<2x8x32xf32>
    %c1_i32 = arith.constant 1 : i32
    %c0_i32_34 = arith.constant 0 : i32
    %87 = arith.cmpi eq, %arg0, %c0_i32_34 : i32
    %c3_i32_35 = arith.constant 3 : i32
    %88 = arith.subi %c3_i32_35, %c1_i32 : i32
    %89 = arith.select %87, %c1_i32, %88 : i32
    %90 = arith.index_cast %89 : i32 to index
    %c0_36 = arith.constant 0 : index
    %c0_37 = arith.constant 0 : index
    %c0_38 = arith.constant 0 : index
    %91 = vector.load %arg1[%90, %c0_36, %c0_37, %c0_38] : memref<4x2x8x4xf32, #tpu.memory_space<vmem>>, vector<1x2x8x4xf32>
    %92 = vector.shape_cast %91 : vector<1x2x8x4xf32> to vector<2x8x4xf32>
    %93 = tpu.concatenate %86, %92 in 2 : vector<2x8x32xf32>, vector<2x8x4xf32> -> vector<2x8x36xf32>
    %94 = vector.shape_cast %93 : vector<2x8x36xf32> to vector<16x36xf32>
    %95 = arith.truncf %94 : vector<16x36xf32> to vector<16x36xbf16>
    %cst_39 = arith.constant dense<0.000000e+00> : vector<16x128xf32>
    %96 = tpu.matmul %95, %5, %cst_39 {dimension_numbers = #tpu.dot_dimension_numbers<[1], [0], [0], [1], [0, 0, 1, 1], [], []>} : vector<16x36xbf16>, vector<36x128xbf16>, vector<16x128xf32> -> vector<16x128xf32>
    %97 = vector.broadcast %7 : vector<1x128xf32> to vector<16x128xf32>
    %98 = arith.addf %96, %97 : vector<16x128xf32>
    %99 = vector.extract_strided_slice %98 {offsets = [0, 0], sizes = [16, 32], strides = [1, 1]} : vector<16x128xf32> to vector<16x32xf32>
    %100 = vector.shape_cast %99 : vector<16x32xf32> to vector<2x8x32xf32>
    %101 = vector.extract_strided_slice %98 {offsets = [0, 32], sizes = [16, 32], strides = [1, 1]} : vector<16x128xf32> to vector<16x32xf32>
    %102 = vector.shape_cast %101 : vector<16x32xf32> to vector<2x8x32xf32>
    %103 = vector.extract_strided_slice %98 {offsets = [0, 64], sizes = [16, 32], strides = [1, 1]} : vector<16x128xf32> to vector<16x32xf32>
    %104 = vector.shape_cast %103 : vector<16x32xf32> to vector<2x8x32xf32>
    %105 = vector.extract_strided_slice %98 {offsets = [0, 96], sizes = [16, 32], strides = [1, 1]} : vector<16x128xf32> to vector<16x32xf32>
    %106 = vector.shape_cast %105 : vector<16x32xf32> to vector<2x8x32xf32>
    %107 = arith.truncf %100 : vector<2x8x32xf32> to vector<2x8x32xbf16>
    %108 = arith.truncf %102 : vector<2x8x32xf32> to vector<2x8x32xbf16>
    "tpu.trace_start"() <{level = 10 : i32, message = "bik,bjk->bij"}> : () -> ()
    %cst_40 = arith.constant dense<0.000000e+00> : vector<2x8x8xf32>
    %109 = tpu.matmul %107, %108, %cst_40 {dimension_numbers = #tpu.dot_dimension_numbers<[2], [2], [1], [1], [0, 0, 0, 1, 1, 1], [0], [0]>} : vector<2x8x32xbf16>, vector<2x8x32xbf16>, vector<2x8x8xf32> -> vector<2x8x8xf32>
    "tpu.trace_stop"() : () -> ()
    %110 = vector.broadcast %1 : vector<1x8x8xf32> to vector<2x8x8xf32>
    %111 = arith.addf %109, %110 : vector<2x8x8xf32>
    %cst_41 = arith.constant dense<0xFF800000> : vector<2x8xf32>
    %112 = vector.multi_reduction <maximumf>, %111, %cst_41 [2] : vector<2x8x8xf32> to vector<2x8xf32>
    %113 = vector.shape_cast %112 : vector<2x8xf32> to vector<2x8x1xf32>
    %114 = vector.broadcast %113 : vector<2x8x1xf32> to vector<2x8x8xf32>
    %115 = arith.subf %111, %114 : vector<2x8x8xf32>
    %116 = math.exp %115 : vector<2x8x8xf32>
    %cst_42 = arith.constant dense<0.000000e+00> : vector<2x8xf32>
    %117 = vector.multi_reduction <add>, %116, %cst_42 [2] : vector<2x8x8xf32> to vector<2x8xf32>
    %118 = vector.shape_cast %117 : vector<2x8xf32> to vector<2x8x1xf32>
    %119 = tpu.reciprocal %118 {approx = true} : vector<2x8x1xf32> -> vector<2x8x1xf32>
    %120 = vector.broadcast %119 : vector<2x8x1xf32> to vector<2x8x8xf32>
    %121 = arith.mulf %116, %120 : vector<2x8x8xf32>
    %122 = arith.truncf %121 : vector<2x8x8xf32> to vector<2x8x8xbf16>
    %123 = arith.truncf %104 : vector<2x8x32xf32> to vector<2x8x32xbf16>
    "tpu.trace_start"() <{level = 10 : i32, message = "bij,bjk->bik"}> : () -> ()
    %cst_43 = arith.constant dense<0.000000e+00> : vector<2x8x32xf32>
    %124 = tpu.matmul %122, %123, %cst_43 {dimension_numbers = #tpu.dot_dimension_numbers<[2], [1], [1], [2], [0, 0, 0, 1, 1, 2], [0], [0]>} : vector<2x8x8xbf16>, vector<2x8x32xbf16>, vector<2x8x32xf32> -> vector<2x8x32xf32>
    "tpu.trace_stop"() : () -> ()
    %125 = vector.broadcast %3 : vector<1x8x1xf32> to vector<2x8x32xf32>
    %126 = arith.mulf %124, %125 : vector<2x8x32xf32>
    %127 = arith.addf %126, %106 : vector<2x8x32xf32>
    %128 = tpu.concatenate %92, %127 in 2 : vector<2x8x4xf32>, vector<2x8x32xf32> -> vector<2x8x36xf32>
    %129 = vector.shape_cast %128 : vector<2x8x36xf32> to vector<16x36xf32>
    %130 = arith.truncf %129 : vector<16x36xf32> to vector<16x36xbf16>
    %cst_44 = arith.constant dense<0.000000e+00> : vector<16x64xf32>
    %131 = tpu.matmul %130, %9, %cst_44 {dimension_numbers = #tpu.dot_dimension_numbers<[1], [0], [0], [1], [0, 0, 1, 1], [], []>} : vector<16x36xbf16>, vector<36x64xbf16>, vector<16x64xf32> -> vector<16x64xf32>
    %132 = vector.broadcast %11 : vector<1x64xf32> to vector<16x64xf32>
    %133 = arith.addf %131, %132 : vector<16x64xf32>
    %134 = arith.negf %133 : vector<16x64xf32>
    %135 = math.exp %134 : vector<16x64xf32>
    %cst_45 = arith.constant 1.000000e+00 : f32
    %136 = vector.broadcast %cst_45 : f32 to vector<16x64xf32>
    %137 = arith.addf %136, %135 : vector<16x64xf32>
    %138 = arith.divf %136, %137 : vector<16x64xf32>
    %139 = vector.extract_strided_slice %138 {offsets = [0, 0], sizes = [16, 32], strides = [1, 1]} : vector<16x64xf32> to vector<16x32xf32>
    %140 = vector.shape_cast %139 : vector<16x32xf32> to vector<2x8x32xf32>
    %141 = vector.extract_strided_slice %138 {offsets = [0, 32], sizes = [16, 32], strides = [1, 1]} : vector<16x64xf32> to vector<16x32xf32>
    %142 = vector.shape_cast %141 : vector<16x32xf32> to vector<2x8x32xf32>
    %143 = arith.mulf %140, %127 : vector<2x8x32xf32>
    %144 = tpu.concatenate %92, %143 in 2 : vector<2x8x4xf32>, vector<2x8x32xf32> -> vector<2x8x36xf32>
    %145 = vector.shape_cast %144 : vector<2x8x36xf32> to vector<16x36xf32>
    %146 = arith.truncf %145 : vector<16x36xf32> to vector<16x36xbf16>
    %cst_46 = arith.constant dense<0.000000e+00> : vector<16x32xf32>
    %147 = tpu.matmul %146, %13, %cst_46 {dimension_numbers = #tpu.dot_dimension_numbers<[1], [0], [0], [1], [0, 0, 1, 1], [], []>} : vector<16x36xbf16>, vector<36x32xbf16>, vector<16x32xf32> -> vector<16x32xf32>
    %148 = vector.broadcast %15 : vector<1x32xf32> to vector<16x32xf32>
    %149 = arith.addf %147, %148 : vector<16x32xf32>
    %150 = math.tanh %149 : vector<16x32xf32>
    %151 = vector.shape_cast %150 : vector<16x32xf32> to vector<2x8x32xf32>
    %cst_47 = arith.constant 1.000000e+00 : f32
    %152 = vector.broadcast %cst_47 : f32 to vector<2x8x32xf32>
    %153 = arith.subf %152, %142 : vector<2x8x32xf32>
    %154 = arith.mulf %153, %127 : vector<2x8x32xf32>
    %155 = arith.mulf %142, %151 : vector<2x8x32xf32>
    %156 = arith.addf %154, %155 : vector<2x8x32xf32>
    %c2_i32 = arith.constant 2 : i32
    %c0_i32_48 = arith.constant 0 : i32
    %157 = arith.cmpi eq, %arg0, %c0_i32_48 : i32
    %c3_i32_49 = arith.constant 3 : i32
    %158 = arith.subi %c3_i32_49, %c2_i32 : i32
    %159 = arith.select %157, %c2_i32, %158 : i32
    %160 = arith.index_cast %159 : i32 to index
    %c0_50 = arith.constant 0 : index
    %c0_51 = arith.constant 0 : index
    %c0_52 = arith.constant 0 : index
    %161 = vector.load %arg1[%160, %c0_50, %c0_51, %c0_52] : memref<4x2x8x4xf32, #tpu.memory_space<vmem>>, vector<1x2x8x4xf32>
    %162 = vector.shape_cast %161 : vector<1x2x8x4xf32> to vector<2x8x4xf32>
    %163 = tpu.concatenate %156, %162 in 2 : vector<2x8x32xf32>, vector<2x8x4xf32> -> vector<2x8x36xf32>
    %164 = vector.shape_cast %163 : vector<2x8x36xf32> to vector<16x36xf32>
    %165 = arith.truncf %164 : vector<16x36xf32> to vector<16x36xbf16>
    %cst_53 = arith.constant dense<0.000000e+00> : vector<16x128xf32>
    %166 = tpu.matmul %165, %5, %cst_53 {dimension_numbers = #tpu.dot_dimension_numbers<[1], [0], [0], [1], [0, 0, 1, 1], [], []>} : vector<16x36xbf16>, vector<36x128xbf16>, vector<16x128xf32> -> vector<16x128xf32>
    %167 = vector.broadcast %7 : vector<1x128xf32> to vector<16x128xf32>
    %168 = arith.addf %166, %167 : vector<16x128xf32>
    %169 = vector.extract_strided_slice %168 {offsets = [0, 0], sizes = [16, 32], strides = [1, 1]} : vector<16x128xf32> to vector<16x32xf32>
    %170 = vector.shape_cast %169 : vector<16x32xf32> to vector<2x8x32xf32>
    %171 = vector.extract_strided_slice %168 {offsets = [0, 32], sizes = [16, 32], strides = [1, 1]} : vector<16x128xf32> to vector<16x32xf32>
    %172 = vector.shape_cast %171 : vector<16x32xf32> to vector<2x8x32xf32>
    %173 = vector.extract_strided_slice %168 {offsets = [0, 64], sizes = [16, 32], strides = [1, 1]} : vector<16x128xf32> to vector<16x32xf32>
    %174 = vector.shape_cast %173 : vector<16x32xf32> to vector<2x8x32xf32>
    %175 = vector.extract_strided_slice %168 {offsets = [0, 96], sizes = [16, 32], strides = [1, 1]} : vector<16x128xf32> to vector<16x32xf32>
    %176 = vector.shape_cast %175 : vector<16x32xf32> to vector<2x8x32xf32>
    %177 = arith.truncf %170 : vector<2x8x32xf32> to vector<2x8x32xbf16>
    %178 = arith.truncf %172 : vector<2x8x32xf32> to vector<2x8x32xbf16>
    "tpu.trace_start"() <{level = 10 : i32, message = "bik,bjk->bij"}> : () -> ()
    %cst_54 = arith.constant dense<0.000000e+00> : vector<2x8x8xf32>
    %179 = tpu.matmul %177, %178, %cst_54 {dimension_numbers = #tpu.dot_dimension_numbers<[2], [2], [1], [1], [0, 0, 0, 1, 1, 1], [0], [0]>} : vector<2x8x32xbf16>, vector<2x8x32xbf16>, vector<2x8x8xf32> -> vector<2x8x8xf32>
    "tpu.trace_stop"() : () -> ()
    %180 = vector.broadcast %1 : vector<1x8x8xf32> to vector<2x8x8xf32>
    %181 = arith.addf %179, %180 : vector<2x8x8xf32>
    %cst_55 = arith.constant dense<0xFF800000> : vector<2x8xf32>
    %182 = vector.multi_reduction <maximumf>, %181, %cst_55 [2] : vector<2x8x8xf32> to vector<2x8xf32>
    %183 = vector.shape_cast %182 : vector<2x8xf32> to vector<2x8x1xf32>
    %184 = vector.broadcast %183 : vector<2x8x1xf32> to vector<2x8x8xf32>
    %185 = arith.subf %181, %184 : vector<2x8x8xf32>
    %186 = math.exp %185 : vector<2x8x8xf32>
    %cst_56 = arith.constant dense<0.000000e+00> : vector<2x8xf32>
    %187 = vector.multi_reduction <add>, %186, %cst_56 [2] : vector<2x8x8xf32> to vector<2x8xf32>
    %188 = vector.shape_cast %187 : vector<2x8xf32> to vector<2x8x1xf32>
    %189 = tpu.reciprocal %188 {approx = true} : vector<2x8x1xf32> -> vector<2x8x1xf32>
    %190 = vector.broadcast %189 : vector<2x8x1xf32> to vector<2x8x8xf32>
    %191 = arith.mulf %186, %190 : vector<2x8x8xf32>
    %192 = arith.truncf %191 : vector<2x8x8xf32> to vector<2x8x8xbf16>
    %193 = arith.truncf %174 : vector<2x8x32xf32> to vector<2x8x32xbf16>
    "tpu.trace_start"() <{level = 10 : i32, message = "bij,bjk->bik"}> : () -> ()
    %cst_57 = arith.constant dense<0.000000e+00> : vector<2x8x32xf32>
    %194 = tpu.matmul %192, %193, %cst_57 {dimension_numbers = #tpu.dot_dimension_numbers<[2], [1], [1], [2], [0, 0, 0, 1, 1, 2], [0], [0]>} : vector<2x8x8xbf16>, vector<2x8x32xbf16>, vector<2x8x32xf32> -> vector<2x8x32xf32>
    "tpu.trace_stop"() : () -> ()
    %195 = vector.broadcast %3 : vector<1x8x1xf32> to vector<2x8x32xf32>
    %196 = arith.mulf %194, %195 : vector<2x8x32xf32>
    %197 = arith.addf %196, %176 : vector<2x8x32xf32>
    %198 = tpu.concatenate %162, %197 in 2 : vector<2x8x4xf32>, vector<2x8x32xf32> -> vector<2x8x36xf32>
    %199 = vector.shape_cast %198 : vector<2x8x36xf32> to vector<16x36xf32>
    %200 = arith.truncf %199 : vector<16x36xf32> to vector<16x36xbf16>
    %cst_58 = arith.constant dense<0.000000e+00> : vector<16x64xf32>
    %201 = tpu.matmul %200, %9, %cst_58 {dimension_numbers = #tpu.dot_dimension_numbers<[1], [0], [0], [1], [0, 0, 1, 1], [], []>} : vector<16x36xbf16>, vector<36x64xbf16>, vector<16x64xf32> -> vector<16x64xf32>
    %202 = vector.broadcast %11 : vector<1x64xf32> to vector<16x64xf32>
    %203 = arith.addf %201, %202 : vector<16x64xf32>
    %204 = arith.negf %203 : vector<16x64xf32>
    %205 = math.exp %204 : vector<16x64xf32>
    %cst_59 = arith.constant 1.000000e+00 : f32
    %206 = vector.broadcast %cst_59 : f32 to vector<16x64xf32>
    %207 = arith.addf %206, %205 : vector<16x64xf32>
    %208 = arith.divf %206, %207 : vector<16x64xf32>
    %209 = vector.extract_strided_slice %208 {offsets = [0, 0], sizes = [16, 32], strides = [1, 1]} : vector<16x64xf32> to vector<16x32xf32>
    %210 = vector.shape_cast %209 : vector<16x32xf32> to vector<2x8x32xf32>
    %211 = vector.extract_strided_slice %208 {offsets = [0, 32], sizes = [16, 32], strides = [1, 1]} : vector<16x64xf32> to vector<16x32xf32>
    %212 = vector.shape_cast %211 : vector<16x32xf32> to vector<2x8x32xf32>
    %213 = arith.mulf %210, %197 : vector<2x8x32xf32>
    %214 = tpu.concatenate %162, %213 in 2 : vector<2x8x4xf32>, vector<2x8x32xf32> -> vector<2x8x36xf32>
    %215 = vector.shape_cast %214 : vector<2x8x36xf32> to vector<16x36xf32>
    %216 = arith.truncf %215 : vector<16x36xf32> to vector<16x36xbf16>
    %cst_60 = arith.constant dense<0.000000e+00> : vector<16x32xf32>
    %217 = tpu.matmul %216, %13, %cst_60 {dimension_numbers = #tpu.dot_dimension_numbers<[1], [0], [0], [1], [0, 0, 1, 1], [], []>} : vector<16x36xbf16>, vector<36x32xbf16>, vector<16x32xf32> -> vector<16x32xf32>
    %218 = vector.broadcast %15 : vector<1x32xf32> to vector<16x32xf32>
    %219 = arith.addf %217, %218 : vector<16x32xf32>
    %220 = math.tanh %219 : vector<16x32xf32>
    %221 = vector.shape_cast %220 : vector<16x32xf32> to vector<2x8x32xf32>
    %cst_61 = arith.constant 1.000000e+00 : f32
    %222 = vector.broadcast %cst_61 : f32 to vector<2x8x32xf32>
    %223 = arith.subf %222, %212 : vector<2x8x32xf32>
    %224 = arith.mulf %223, %197 : vector<2x8x32xf32>
    %225 = arith.mulf %212, %221 : vector<2x8x32xf32>
    %226 = arith.addf %224, %225 : vector<2x8x32xf32>
    %c3_i32_62 = arith.constant 3 : i32
    %c0_i32_63 = arith.constant 0 : i32
    %227 = arith.cmpi eq, %arg0, %c0_i32_63 : i32
    %c3_i32_64 = arith.constant 3 : i32
    %228 = arith.subi %c3_i32_64, %c3_i32_62 : i32
    %229 = arith.select %227, %c3_i32_62, %228 : i32
    %230 = arith.index_cast %229 : i32 to index
    %c0_65 = arith.constant 0 : index
    %c0_66 = arith.constant 0 : index
    %c0_67 = arith.constant 0 : index
    %231 = vector.load %arg1[%230, %c0_65, %c0_66, %c0_67] : memref<4x2x8x4xf32, #tpu.memory_space<vmem>>, vector<1x2x8x4xf32>
    %232 = vector.shape_cast %231 : vector<1x2x8x4xf32> to vector<2x8x4xf32>
    %233 = tpu.concatenate %226, %232 in 2 : vector<2x8x32xf32>, vector<2x8x4xf32> -> vector<2x8x36xf32>
    %234 = vector.shape_cast %233 : vector<2x8x36xf32> to vector<16x36xf32>
    %235 = arith.truncf %234 : vector<16x36xf32> to vector<16x36xbf16>
    %cst_68 = arith.constant dense<0.000000e+00> : vector<16x128xf32>
    %236 = tpu.matmul %235, %5, %cst_68 {dimension_numbers = #tpu.dot_dimension_numbers<[1], [0], [0], [1], [0, 0, 1, 1], [], []>} : vector<16x36xbf16>, vector<36x128xbf16>, vector<16x128xf32> -> vector<16x128xf32>
    %237 = vector.broadcast %7 : vector<1x128xf32> to vector<16x128xf32>
    %238 = arith.addf %236, %237 : vector<16x128xf32>
    %239 = vector.extract_strided_slice %238 {offsets = [0, 0], sizes = [16, 32], strides = [1, 1]} : vector<16x128xf32> to vector<16x32xf32>
    %240 = vector.shape_cast %239 : vector<16x32xf32> to vector<2x8x32xf32>
    %241 = vector.extract_strided_slice %238 {offsets = [0, 32], sizes = [16, 32], strides = [1, 1]} : vector<16x128xf32> to vector<16x32xf32>
    %242 = vector.shape_cast %241 : vector<16x32xf32> to vector<2x8x32xf32>
    %243 = vector.extract_strided_slice %238 {offsets = [0, 64], sizes = [16, 32], strides = [1, 1]} : vector<16x128xf32> to vector<16x32xf32>
    %244 = vector.shape_cast %243 : vector<16x32xf32> to vector<2x8x32xf32>
    %245 = vector.extract_strided_slice %238 {offsets = [0, 96], sizes = [16, 32], strides = [1, 1]} : vector<16x128xf32> to vector<16x32xf32>
    %246 = vector.shape_cast %245 : vector<16x32xf32> to vector<2x8x32xf32>
    %247 = arith.truncf %240 : vector<2x8x32xf32> to vector<2x8x32xbf16>
    %248 = arith.truncf %242 : vector<2x8x32xf32> to vector<2x8x32xbf16>
    "tpu.trace_start"() <{level = 10 : i32, message = "bik,bjk->bij"}> : () -> ()
    %cst_69 = arith.constant dense<0.000000e+00> : vector<2x8x8xf32>
    %249 = tpu.matmul %247, %248, %cst_69 {dimension_numbers = #tpu.dot_dimension_numbers<[2], [2], [1], [1], [0, 0, 0, 1, 1, 1], [0], [0]>} : vector<2x8x32xbf16>, vector<2x8x32xbf16>, vector<2x8x8xf32> -> vector<2x8x8xf32>
    "tpu.trace_stop"() : () -> ()
    %250 = vector.broadcast %1 : vector<1x8x8xf32> to vector<2x8x8xf32>
    %251 = arith.addf %249, %250 : vector<2x8x8xf32>
    %cst_70 = arith.constant dense<0xFF800000> : vector<2x8xf32>
    %252 = vector.multi_reduction <maximumf>, %251, %cst_70 [2] : vector<2x8x8xf32> to vector<2x8xf32>
    %253 = vector.shape_cast %252 : vector<2x8xf32> to vector<2x8x1xf32>
    %254 = vector.broadcast %253 : vector<2x8x1xf32> to vector<2x8x8xf32>
    %255 = arith.subf %251, %254 : vector<2x8x8xf32>
    %256 = math.exp %255 : vector<2x8x8xf32>
    %cst_71 = arith.constant dense<0.000000e+00> : vector<2x8xf32>
    %257 = vector.multi_reduction <add>, %256, %cst_71 [2] : vector<2x8x8xf32> to vector<2x8xf32>
    %258 = vector.shape_cast %257 : vector<2x8xf32> to vector<2x8x1xf32>
    %259 = tpu.reciprocal %258 {approx = true} : vector<2x8x1xf32> -> vector<2x8x1xf32>
    %260 = vector.broadcast %259 : vector<2x8x1xf32> to vector<2x8x8xf32>
    %261 = arith.mulf %256, %260 : vector<2x8x8xf32>
    %262 = arith.truncf %261 : vector<2x8x8xf32> to vector<2x8x8xbf16>
    %263 = arith.truncf %244 : vector<2x8x32xf32> to vector<2x8x32xbf16>
    "tpu.trace_start"() <{level = 10 : i32, message = "bij,bjk->bik"}> : () -> ()
    %cst_72 = arith.constant dense<0.000000e+00> : vector<2x8x32xf32>
    %264 = tpu.matmul %262, %263, %cst_72 {dimension_numbers = #tpu.dot_dimension_numbers<[2], [1], [1], [2], [0, 0, 0, 1, 1, 2], [0], [0]>} : vector<2x8x8xbf16>, vector<2x8x32xbf16>, vector<2x8x32xf32> -> vector<2x8x32xf32>
    "tpu.trace_stop"() : () -> ()
    %265 = vector.broadcast %3 : vector<1x8x1xf32> to vector<2x8x32xf32>
    %266 = arith.mulf %264, %265 : vector<2x8x32xf32>
    %267 = arith.addf %266, %246 : vector<2x8x32xf32>
    %268 = tpu.concatenate %232, %267 in 2 : vector<2x8x4xf32>, vector<2x8x32xf32> -> vector<2x8x36xf32>
    %269 = vector.shape_cast %268 : vector<2x8x36xf32> to vector<16x36xf32>
    %270 = arith.truncf %269 : vector<16x36xf32> to vector<16x36xbf16>
    %cst_73 = arith.constant dense<0.000000e+00> : vector<16x64xf32>
    %271 = tpu.matmul %270, %9, %cst_73 {dimension_numbers = #tpu.dot_dimension_numbers<[1], [0], [0], [1], [0, 0, 1, 1], [], []>} : vector<16x36xbf16>, vector<36x64xbf16>, vector<16x64xf32> -> vector<16x64xf32>
    %272 = vector.broadcast %11 : vector<1x64xf32> to vector<16x64xf32>
    %273 = arith.addf %271, %272 : vector<16x64xf32>
    %274 = arith.negf %273 : vector<16x64xf32>
    %275 = math.exp %274 : vector<16x64xf32>
    %cst_74 = arith.constant 1.000000e+00 : f32
    %276 = vector.broadcast %cst_74 : f32 to vector<16x64xf32>
    %277 = arith.addf %276, %275 : vector<16x64xf32>
    %278 = arith.divf %276, %277 : vector<16x64xf32>
    %279 = vector.extract_strided_slice %278 {offsets = [0, 0], sizes = [16, 32], strides = [1, 1]} : vector<16x64xf32> to vector<16x32xf32>
    %280 = vector.shape_cast %279 : vector<16x32xf32> to vector<2x8x32xf32>
    %281 = vector.extract_strided_slice %278 {offsets = [0, 32], sizes = [16, 32], strides = [1, 1]} : vector<16x64xf32> to vector<16x32xf32>
    %282 = vector.shape_cast %281 : vector<16x32xf32> to vector<2x8x32xf32>
    %283 = arith.mulf %280, %267 : vector<2x8x32xf32>
    %284 = tpu.concatenate %232, %283 in 2 : vector<2x8x4xf32>, vector<2x8x32xf32> -> vector<2x8x36xf32>
    %285 = vector.shape_cast %284 : vector<2x8x36xf32> to vector<16x36xf32>
    %286 = arith.truncf %285 : vector<16x36xf32> to vector<16x36xbf16>
    %cst_75 = arith.constant dense<0.000000e+00> : vector<16x32xf32>
    %287 = tpu.matmul %286, %13, %cst_75 {dimension_numbers = #tpu.dot_dimension_numbers<[1], [0], [0], [1], [0, 0, 1, 1], [], []>} : vector<16x36xbf16>, vector<36x32xbf16>, vector<16x32xf32> -> vector<16x32xf32>
    %288 = vector.broadcast %15 : vector<1x32xf32> to vector<16x32xf32>
    %289 = arith.addf %287, %288 : vector<16x32xf32>
    %290 = math.tanh %289 : vector<16x32xf32>
    %291 = vector.shape_cast %290 : vector<16x32xf32> to vector<2x8x32xf32>
    %cst_76 = arith.constant 1.000000e+00 : f32
    %292 = vector.broadcast %cst_76 : f32 to vector<2x8x32xf32>
    %293 = arith.subf %292, %282 : vector<2x8x32xf32>
    %294 = arith.mulf %293, %267 : vector<2x8x32xf32>
    %295 = arith.mulf %282, %291 : vector<2x8x32xf32>
    %296 = arith.addf %294, %295 : vector<2x8x32xf32>
    %c4_i32 = arith.constant 4 : i32
    %c0_i32_77 = arith.constant 0 : i32
    %297 = arith.cmpi eq, %arg0, %c0_i32_77 : i32
    %298 = arith.extui %297 : i1 to i32
    %c0_i32_78 = arith.constant 0 : i32
    %299 = arith.cmpi ne, %298, %c0_i32_78 : i32
    scf.if %299 {
      %c0_81 = arith.constant 0 : index
      %c0_82 = arith.constant 0 : index
      %c0_83 = arith.constant 0 : index
      %303 = vector.load %arg15[%c0_81, %c0_82, %c0_83] : memref<2x8x32xf32, #tpu.memory_space<vmem>>, vector<2x8x32xf32>
      tpu.vector_store %arg15[%c0_81, %c0_82, %c0_83], %296 {strides = array<i32>} : memref<2x8x32xf32, #tpu.memory_space<vmem>>, vector<2x8x32xf32>,
    } else {
    }
    %c1_i32_79 = arith.constant 1 : i32
    %300 = arith.cmpi eq, %arg0, %c1_i32_79 : i32
    %301 = arith.extui %300 : i1 to i32
    %c0_i32_80 = arith.constant 0 : i32
    %302 = arith.cmpi ne, %301, %c0_i32_80 : i32
    scf.if %302 {
      %c0_81 = arith.constant 0 : index
      %c0_82 = arith.constant 0 : index
      %c0_83 = arith.constant 0 : index
      %303 = vector.load %arg15[%c0_81, %c0_82, %c0_83] : memref<2x8x32xf32, #tpu.memory_space<vmem>>, vector<2x8x32xf32>
      %304 = tpu.concatenate %303, %296 in 2 : vector<2x8x32xf32>, vector<2x8x32xf32> -> vector<2x8x64xf32>
      %305 = vector.shape_cast %304 : vector<2x8x64xf32> to vector<16x64xf32>
      %306 = arith.truncf %305 : vector<16x64xf32> to vector<16x64xbf16>
      %c0_84 = arith.constant 0 : index
      %c0_85 = arith.constant 0 : index
      %307 = vector.load %arg10[%c0_84, %c0_85] : memref<64x32xbf16, #tpu.memory_space<vmem>>, vector<64x32xbf16>
      %cst_86 = arith.constant dense<0.000000e+00> : vector<16x32xf32>
      %308 = tpu.matmul %306, %307, %cst_86 {dimension_numbers = #tpu.dot_dimension_numbers<[1], [0], [0], [1], [0, 0, 1, 1], [], []>} : vector<16x64xbf16>, vector<64x32xbf16>, vector<16x32xf32> -> vector<16x32xf32>
      %c0_87 = arith.constant 0 : index
      %c0_88 = arith.constant 0 : index
      %309 = vector.load %arg11[%c0_87, %c0_88] : memref<1x32xf32, #tpu.memory_space<vmem>>, vector<1x32xf32>
      %310 = vector.broadcast %309 : vector<1x32xf32> to vector<16x32xf32>
      %311 = arith.addf %308, %310 : vector<16x32xf32>
      %cst_89 = arith.constant 0.000000e+00 : f32
      %312 = vector.broadcast %cst_89 : f32 to vector<16x32xf32>
      %313 = arith.maximumf %311, %312 : vector<16x32xf32>
      %314 = arith.truncf %313 : vector<16x32xf32> to vector<16x32xbf16>
      %c0_90 = arith.constant 0 : index
      %c0_91 = arith.constant 0 : index
      %315 = vector.load %arg12[%c0_90, %c0_91] : memref<32x2xbf16, #tpu.memory_space<vmem>>, vector<32x2xbf16>
      %cst_92 = arith.constant dense<0.000000e+00> : vector<16x2xf32>
      %316 = tpu.matmul %314, %315, %cst_92 {dimension_numbers = #tpu.dot_dimension_numbers<[1], [0], [0], [1], [0, 0, 1, 1], [], []>} : vector<16x32xbf16>, vector<32x2xbf16>, vector<16x2xf32> -> vector<16x2xf32>
      %c0_93 = arith.constant 0 : index
      %c0_94 = arith.constant 0 : index
      %317 = vector.load %arg13[%c0_93, %c0_94] : memref<1x2xf32, #tpu.memory_space<vmem>>, vector<1x2xf32>
      %318 = vector.broadcast %317 : vector<1x2xf32> to vector<16x2xf32>
      %319 = arith.addf %316, %318 : vector<16x2xf32>
      %320 = arith.negf %319 : vector<16x2xf32>
      %321 = math.exp %320 : vector<16x2xf32>
      %cst_95 = arith.constant 1.000000e+00 : f32
      %322 = vector.broadcast %cst_95 : f32 to vector<16x2xf32>
      %323 = arith.addf %322, %321 : vector<16x2xf32>
      %324 = arith.divf %322, %323 : vector<16x2xf32>
      %325 = vector.shape_cast %324 : vector<16x2xf32> to vector<2x8x2xf32>
      %c0_96 = arith.constant 0 : index
      %c0_97 = arith.constant 0 : index
      %c0_98 = arith.constant 0 : index
      %326 = vector.load %arg14[%c0_96, %c0_97, %c0_98] : memref<2x8x2xf32, #tpu.memory_space<vmem>>, vector<2x8x2xf32>
      tpu.vector_store %arg14[%c0_96, %c0_97, %c0_98], %325 {strides = array<i32>} : memref<2x8x2xf32, #tpu.memory_space<vmem>>, vector<2x8x2xf32>,
    } else {
    }
    return
  }
  func.func @transform_0(%arg0: i32) -> (i32, i32, i32, i32) {
    %c0_i32 = arith.constant 0 : i32
    %c0_i32_0 = arith.constant 0 : i32
    %c0_i32_1 = arith.constant 0 : i32
    %c0_i32_2 = arith.constant 0 : i32
    %c0_i32_3 = arith.constant 0 : i32
    return %c0_i32, %c0_i32_0, %c0_i32_1, %c0_i32_2 : i32, i32, i32, i32
  }
  func.func @transform_1(%arg0: i32) -> (i32, i32) {
    %c0_i32 = arith.constant 0 : i32
    %c0_i32_0 = arith.constant 0 : i32
    %c0_i32_1 = arith.constant 0 : i32
    return %c0_i32, %c0_i32_0 : i32, i32
  }
  func.func @transform_2(%arg0: i32) -> (i32, i32) {
    %c0_i32 = arith.constant 0 : i32
    %c0_i32_0 = arith.constant 0 : i32
    %c0_i32_1 = arith.constant 0 : i32
    return %c0_i32, %c0_i32_0 : i32, i32
  }
  func.func @transform_3(%arg0: i32) -> (i32, i32, i32) {
    %c0_i32 = arith.constant 0 : i32
    %c0_i32_0 = arith.constant 0 : i32
    %c0_i32_1 = arith.constant 0 : i32
    return %arg0, %c0_i32, %c0_i32_0 : i32, i32, i32
  }
  func.func @transform_4(%arg0: i32) -> (i32, i32, i32) {
    %c0_i32 = arith.constant 0 : i32
    %c0_i32_0 = arith.constant 0 : i32
    %c0_i32_1 = arith.constant 0 : i32
    return %arg0, %c0_i32, %c0_i32_0 : i32, i32, i32
  }
  func.func @transform_5(%arg0: i32) -> (i32, i32, i32) {
    %c0_i32 = arith.constant 0 : i32
    %c0_i32_0 = arith.constant 0 : i32
    %c0_i32_1 = arith.constant 0 : i32
    return %arg0, %c0_i32, %c0_i32_0 : i32, i32, i32
  }
  func.func @transform_6(%arg0: i32) -> (i32, i32, i32) {
    %c0_i32 = arith.constant 0 : i32
    %c0_i32_0 = arith.constant 0 : i32
    %c0_i32_1 = arith.constant 0 : i32
    return %arg0, %c0_i32, %c0_i32_0 : i32, i32, i32
  }
  func.func @transform_7(%arg0: i32) -> (i32, i32, i32) {
    %c0_i32 = arith.constant 0 : i32
    %c0_i32_0 = arith.constant 0 : i32
    %c0_i32_1 = arith.constant 0 : i32
    return %arg0, %c0_i32, %c0_i32_0 : i32, i32, i32
  }
  func.func @transform_8(%arg0: i32) -> (i32, i32, i32) {
    %c0_i32 = arith.constant 0 : i32
    %c0_i32_0 = arith.constant 0 : i32
    %c0_i32_1 = arith.constant 0 : i32
    return %arg0, %c0_i32, %c0_i32_0 : i32, i32, i32
  }
  func.func @transform_9(%arg0: i32) -> (i32, i32) {
    %c0_i32 = arith.constant 0 : i32
    %c0_i32_0 = arith.constant 0 : i32
    %c0_i32_1 = arith.constant 0 : i32
    return %c0_i32, %c0_i32_0 : i32, i32
  }
  func.func @transform_10(%arg0: i32) -> (i32, i32) {
    %c0_i32 = arith.constant 0 : i32
    %c0_i32_0 = arith.constant 0 : i32
    %c0_i32_1 = arith.constant 0 : i32
    return %c0_i32, %c0_i32_0 : i32, i32
  }
  func.func @transform_11(%arg0: i32) -> (i32, i32) {
    %c0_i32 = arith.constant 0 : i32
    %c0_i32_0 = arith.constant 0 : i32
    %c0_i32_1 = arith.constant 0 : i32
    return %c0_i32, %c0_i32_0 : i32, i32
  }
  func.func @transform_12(%arg0: i32) -> (i32, i32) {
    %c0_i32 = arith.constant 0 : i32
    %c0_i32_0 = arith.constant 0 : i32
    %c0_i32_1 = arith.constant 0 : i32
    return %c0_i32, %c0_i32_0 : i32, i32
  }
  func.func @transform_13(%arg0: i32) -> (i32, i32, i32) {
    %c0_i32 = arith.constant 0 : i32
    %c0_i32_0 = arith.constant 0 : i32
    %c0_i32_1 = arith.constant 0 : i32
    %c0_i32_2 = arith.constant 0 : i32
    return %c0_i32, %c0_i32_0, %c0_i32_1 : i32, i32, i32
  }
}

</mosaic_0001>

<llo_original>
// kernel: graph_gru_forward.1
$region0: #{graph_gru_forward.1}
  #allocation0 [shape = 'u32[]', space=smem, size = 0x4, offset = 0x4, fixed_abs, tag = 'smem constant byte address 0x4 - core index']
  #allocation1 [shape = 'u32[144,128]{1,0:T(1,128)}', space=vmem, size = 0x12000, scoped, tag = 'internal scratch']
  #allocation2 [shape = 'f32[2,8,32]{2,1,0:T(8,128)}', space=vmem, size = 0x2000, scoped, tag = 'scratch operand']
  %s0 = inlined_call_operand.vmem [shape: f32[4,2,8,4], index: 0, kind: input, shape index: {}]
  %s1 = inlined_call_operand.vmem [shape: f32[8,8], index: 1, kind: input, shape index: {}]
  %s2 = inlined_call_operand.vmem [shape: f32[8,1], index: 2, kind: input, shape index: {}]
  %s3 = inlined_call_operand.vmem [shape: bf16[2,36,128], index: 3, kind: input, shape index: {}]
  %s4 = inlined_call_operand.vmem [shape: f32[2,1,128], index: 4, kind: input, shape index: {}]
  %s5 = inlined_call_operand.vmem [shape: bf16[2,36,64], index: 5, kind: input, shape index: {}]
  %s6 = inlined_call_operand.vmem [shape: f32[2,1,64], index: 6, kind: input, shape index: {}]
  %s7 = inlined_call_operand.vmem [shape: bf16[2,36,32], index: 7, kind: input, shape index: {}]
  %s8 = inlined_call_operand.vmem [shape: f32[2,1,32], index: 8, kind: input, shape index: {}]
  %s9 = inlined_call_operand.vmem [shape: bf16[64,32], index: 9, kind: input, shape index: {}]
  %s10 = inlined_call_operand.vmem [shape: f32[1,32], index: 10, kind: input, shape index: {}]
  %s11 = inlined_call_operand.vmem [shape: bf16[32,2], index: 11, kind: input, shape index: {}]
  %s12 = inlined_call_operand.vmem [shape: f32[1,2], index: 12, kind: input, shape index: {}]
  %s13 = inlined_call_operand.vmem [shape: f32[2,8,2], index: 13, kind: output, shape index: {}]
  %s14 = sld [smem:[#allocation0]]
  $region93: #{graph_gru_forward.1} parent=0
    _
  %s16 = ssub.s32 1, %s14
  %s17 = scalar_select 0, %s16, %s14
  loop: start=0, step=1, limit=4
  $region2: #{graph_gru_forward.1} parent=0 // loop_pre_header
    _
  $region3: #{graph_gru_forward.1} parent=0 // loop_header
    %s19 = sphi 0, %s23
    %p20 = scmp.ge.s32.totalorder %s19, 4
    %s27 = sphi 0, %s27
    %s29 = sphi 0, %s27
    %s30 = sphi 0, %s29
    %s44 = sphi 0, %s30
    %s48 = sphi 0, %s48
    %s50 = sphi 0, %s48
    %s51 = sphi 0, %s50
    %s65 = sphi 0, %s51
    %s69 = sphi 0, %s69
    %s71 = sphi 0, %s69
    %s72 = sphi 0, %s71
    %s86 = sphi 0, %s72
    %s92 = sphi 0, %s94
    %s95 = sphi 0, %s92
    %s96 = sphi 0, %s95
    %s112 = sphi 0, %s96
    %s118 = sphi 0, %s120
    %s121 = sphi 0, %s118
    %s122 = sphi 0, %s121
    %s138 = sphi 0, %s122
    %s144 = sphi 0, %s146
    %s147 = sphi 0, %s144
    %s148 = sphi 0, %s147
    %s164 = sphi 0, %s148
    %s170 = sphi 0, %s172
    %s173 = sphi 0, %s170
    %s174 = sphi 0, %s173
    %s190 = sphi 0, %s174
    %s196 = sphi 0, %s198
    %s199 = sphi 0, %s196
    %s200 = sphi 0, %s199
    %s216 = sphi 0, %s200
    %s222 = sphi 0, %s224
    %s225 = sphi 0, %s222
    %s226 = sphi 0, %s225
    %s242 = sphi 0, %s226
    %s246 = sphi 0, %s246
    %s248 = sphi 0, %s246
    %s249 = sphi 0, %s248
    %s263 = sphi 0, %s249
    %s267 = sphi 0, %s267
    %s269 = sphi 0, %s267
    %s270 = sphi 0, %s269
    %s284 = sphi 0, %s270
    %s288 = sphi 0, %s288
    %s290 = sphi 0, %s288
    %s291 = sphi 0, %s290
    %s305 = sphi 0, %s291
    %s309 = sphi 0, %s309
    %s311 = sphi 0, %s309
    %s312 = sphi 0, %s311
    %s326 = sphi 0, %s312
    %s330 = sphi 0, %s330
    %s332 = sphi 0, %s330
    %s333 = sphi 0, %s332
    %s347 = sphi 0, %s333
  $region4: #{graph_gru_forward.1} parent=0 // loop_header_branch
    %22 = sbr.rel (%p20) target = $region8
  $region5: #{graph_gru_forward.1} parent=0 // loop_body
    %s24 = ssub.s32 %s19, 1
    %s25 = ssub.s32 %s19, 2
    %s26 = sadd.s32 %s19, 1
    %s28 = sadd.s32 %s27, 1
    %p31 = scmp.eq.s32.totalorder %s19, 1
    %p32 = scmp.ne.s32.totalorder %s27, %s29
    %p33 = scmp.eq.s32.totalorder %s19, 0
    %p34 = por %p32, %p33
    %p35 = scmp.ne.s32.totalorder %s27, %s29
    %p36 = scmp.eq.s32.totalorder %s24, 1
    %p37 = por %p35, %p36
    %p38 = scmp.ne.s32.totalorder %s29, %s30
    %p39 = scmp.eq.s32.totalorder %s24, 0
    %p40 = por %p38, %p39
    %p41 = scmp.ne.s32.totalorder %s29, %s30
    %p42 = scmp.eq.s32.totalorder %s25, 1
    %p43 = por %p41, %p42
    %p45 = scmp.ne.s32.totalorder %s30, %s44
    %p46 = scmp.eq.s32.totalorder %s25, 0
    %p47 = por %p45, %p46
    %s49 = sadd.s32 %s48, 1
    %p52 = scmp.eq.s32.totalorder %s19, 1
    %p53 = scmp.ne.s32.totalorder %s48, %s50
    %p54 = scmp.eq.s32.totalorder %s19, 0
    %p55 = por %p53, %p54
    %p56 = scmp.ne.s32.totalorder %s48, %s50
    %p57 = scmp.eq.s32.totalorder %s24, 1
    %p58 = por %p56, %p57
    %p59 = scmp.ne.s32.totalorder %s50, %s51
    %p60 = scmp.eq.s32.totalorder %s24, 0
    %p61 = por %p59, %p60
    %p62 = scmp.ne.s32.totalorder %s50, %s51
    %p63 = scmp.eq.s32.totalorder %s25, 1
    %p64 = por %p62, %p63
    %p66 = scmp.ne.s32.totalorder %s51, %s65
    %p67 = scmp.eq.s32.totalorder %s25, 0
    %p68 = por %p66, %p67
    %s70 = sadd.s32 %s69, 1
    %p73 = scmp.eq.s32.totalorder %s19, 1
    %p74 = scmp.ne.s32.totalorder %s69, %s71
    %p75 = scmp.eq.s32.totalorder %s19, 0
    %p76 = por %p74, %p75
    %p77 = scmp.ne.s32.totalorder %s69, %s71
    %p78 = scmp.eq.s32.totalorder %s24, 1
    %p79 = por %p77, %p78
    %p80 = scmp.ne.s32.totalorder %s71, %s72
    %p81 = scmp.eq.s32.totalorder %s24, 0
    %p82 = por %p80, %p81
    %p83 = scmp.ne.s32.totalorder %s71, %s72
    %p84 = scmp.eq.s32.totalorder %s25, 1
    %p85 = por %p83, %p84
    %p87 = scmp.ne.s32.totalorder %s72, %s86
    %p88 = scmp.eq.s32.totalorder %s25, 0
    %p89 = por %p87, %p88
    %s90 = ssub.s32 %s19, %s26
    %p91 = scmp.eq.s32.totalorder %s90, 0
    %s93 = sadd.s32 %s92, 1
    %s94 = scalar_select %p91, %s92, %s93
    %p97 = pneg %p91
    %p98 = scmp.eq.s32.totalorder %s19, 1
    %p99 = por %p97, %p98
    %p100 = scmp.ne.s32.totalorder %s92, %s95
    %p101 = scmp.eq.s32.totalorder %s19, 0
    %p102 = por %p100, %p101
    %p103 = scmp.ne.s32.totalorder %s92, %s95
    %p104 = scmp.eq.s32.totalorder %s24, 1
    %p105 = por %p103, %p104
    %p106 = scmp.ne.s32.totalorder %s95, %s96
    %p107 = scmp.eq.s32.totalorder %s24, 0
    %p108 = por %p106, %p107
    %p109 = scmp.ne.s32.totalorder %s95, %s96
    %p110 = scmp.eq.s32.totalorder %s25, 1
    %p111 = por %p109, %p110
    %p113 = scmp.ne.s32.totalorder %s96, %s112
    %p114 = scmp.eq.s32.totalorder %s25, 0
    %p115 = por %p113, %p114
    %s116 = ssub.s32 %s19, %s26
    %p117 = scmp.eq.s32.totalorder %s116, 0
    %s119 = sadd.s32 %s118, 1
    %s120 = scalar_select %p117, %s118, %s119
    %p123 = pneg %p117
    %p124 = scmp.eq.s32.totalorder %s19, 1
    %p125 = por %p123, %p124
    %p126 = scmp.ne.s32.totalorder %s118, %s121
    %p127 = scmp.eq.s32.totalorder %s19, 0
    %p128 = por %p126, %p127
    %p129 = scmp.ne.s32.totalorder %s118, %s121
    %p130 = scmp.eq.s32.totalorder %s24, 1
    %p131 = por %p129, %p130
    %p132 = scmp.ne.s32.totalorder %s121, %s122
    %p133 = scmp.eq.s32.totalorder %s24, 0
    %p134 = por %p132, %p133
    %p135 = scmp.ne.s32.totalorder %s121, %s122
    %p136 = scmp.eq.s32.totalorder %s25, 1
    %p137 = por %p135, %p136
    %p139 = scmp.ne.s32.totalorder %s122, %s138
    %p140 = scmp.eq.s32.totalorder %s25, 0
    %p141 = por %p139, %p140
    %s142 = ssub.s32 %s19, %s26
    %p143 = scmp.eq.s32.totalorder %s142, 0
    %s145 = sadd.s32 %s144, 1
    %s146 = scalar_select %p143, %s144, %s145
    %p149 = pneg %p143
    %p150 = scmp.eq.s32.totalorder %s19, 1
    %p151 = por %p149, %p150
    %p152 = scmp.ne.s32.totalorder %s144, %s147
    %p153 = scmp.eq.s32.totalorder %s19, 0
    %p154 = por %p152, %p153
    %p155 = scmp.ne.s32.totalorder %s144, %s147
    %p156 = scmp.eq.s32.totalorder %s24, 1
    %p157 = por %p155, %p156
    %p158 = scmp.ne.s32.totalorder %s147, %s148
    %p159 = scmp.eq.s32.totalorder %s24, 0
    %p160 = por %p158, %p159
    %p161 = scmp.ne.s32.totalorder %s147, %s148
    %p162 = scmp.eq.s32.totalorder %s25, 1
    %p163 = por %p161, %p162
    %p165 = scmp.ne.s32.totalorder %s148, %s164
    %p166 = scmp.eq.s32.totalorder %s25, 0
    %p167 = por %p165, %p166
    %s168 = ssub.s32 %s19, %s26
    %p169 = scmp.eq.s32.totalorder %s168, 0
    %s171 = sadd.s32 %s170, 1
    %s172 = scalar_select %p169, %s170, %s171
    %p175 = pneg %p169
    %p176 = scmp.eq.s32.totalorder %s19, 1
    %p177 = por %p175, %p176
    %p178 = scmp.ne.s32.totalorder %s170, %s173
    %p179 = scmp.eq.s32.totalorder %s19, 0
    %p180 = por %p178, %p179
    %p181 = scmp.ne.s32.totalorder %s170, %s173
    %p182 = scmp.eq.s32.totalorder %s24, 1
    %p183 = por %p181, %p182
    %p184 = scmp.ne.s32.totalorder %s173, %s174
    %p185 = scmp.eq.s32.totalorder %s24, 0
    %p186 = por %p184, %p185
    %p187 = scmp.ne.s32.totalorder %s173, %s174
    %p188 = scmp.eq.s32.totalorder %s25, 1
    %p189 = por %p187, %p188
    %p191 = scmp.ne.s32.totalorder %s174, %s190
    %p192 = scmp.eq.s32.totalorder %s25, 0
    %p193 = por %p191, %p192
    %s194 = ssub.s32 %s19, %s26
    %p195 = scmp.eq.s32.totalorder %s194, 0
    %s197 = sadd.s32 %s196, 1
    %s198 = scalar_select %p195, %s196, %s197
    %p201 = pneg %p195
    %p202 = scmp.eq.s32.totalorder %s19, 1
    %p203 = por %p201, %p202
    %p204 = scmp.ne.s32.totalorder %s196, %s199
    %p205 = scmp.eq.s32.totalorder %s19, 0
    %p206 = por %p204, %p205
    %p207 = scmp.ne.s32.totalorder %s196, %s199
    %p208 = scmp.eq.s32.totalorder %s24, 1
    %p209 = por %p207, %p208
    %p210 = scmp.ne.s32.totalorder %s199, %s200
    %p211 = scmp.eq.s32.totalorder %s24, 0
    %p212 = por %p210, %p211
    %p213 = scmp.ne.s32.totalorder %s199, %s200
    %p214 = scmp.eq.s32.totalorder %s25, 1
    %p215 = por %p213, %p214
    %p217 = scmp.ne.s32.totalorder %s200, %s216
    %p218 = scmp.eq.s32.totalorder %s25, 0
    %p219 = por %p217, %p218
    %s220 = ssub.s32 %s19, %s26
    %p221 = scmp.eq.s32.totalorder %s220, 0
    %s223 = sadd.s32 %s222, 1
    %s224 = scalar_select %p221, %s222, %s223
    %p227 = pneg %p221
    %p228 = scmp.eq.s32.totalorder %s19, 1
    %p229 = por %p227, %p228
    %p230 = scmp.ne.s32.totalorder %s222, %s225
    %p231 = scmp.eq.s32.totalorder %s19, 0
    %p232 = por %p230, %p231
    %p233 = scmp.ne.s32.totalorder %s222, %s225
    %p234 = scmp.eq.s32.totalorder %s24, 1
    %p235 = por %p233, %p234
    %p236 = scmp.ne.s32.totalorder %s225, %s226
    %p237 = scmp.eq.s32.totalorder %s24, 0
    %p238 = por %p236, %p237
    %p239 = scmp.ne.s32.totalorder %s225, %s226
    %p240 = scmp.eq.s32.totalorder %s25, 1
    %p241 = por %p239, %p240
    %p243 = scmp.ne.s32.totalorder %s226, %s242
    %p244 = scmp.eq.s32.totalorder %s25, 0
    %p245 = por %p243, %p244
    %s247 = sadd.s32 %s246, 1
    %p250 = scmp.eq.s32.totalorder %s19, 1
    %p251 = scmp.ne.s32.totalorder %s246, %s248
    %p252 = scmp.eq.s32.totalorder %s19, 0
    %p253 = por %p251, %p252
    %p254 = scmp.ne.s32.totalorder %s246, %s248
    %p255 = scmp.eq.s32.totalorder %s24, 1
    %p256 = por %p254, %p255
    %p257 = scmp.ne.s32.totalorder %s248, %s249
    %p258 = scmp.eq.s32.totalorder %s24, 0
    %p259 = por %p257, %p258
    %p260 = scmp.ne.s32.totalorder %s248, %s249
    %p261 = scmp.eq.s32.totalorder %s25, 1
    %p262 = por %p260, %p261
    %p264 = scmp.ne.s32.totalorder %s249, %s263
    %p265 = scmp.eq.s32.totalorder %s25, 0
    %p266 = por %p264, %p265
    %s268 = sadd.s32 %s267, 1
    %p271 = scmp.eq.s32.totalorder %s19, 1
    %p272 = scmp.ne.s32.totalorder %s267, %s269
    %p273 = scmp.eq.s32.totalorder %s19, 0
    %p274 = por %p272, %p273
    %p275 = scmp.ne.s32.totalorder %s267, %s269
    %p276 = scmp.eq.s32.totalorder %s24, 1
    %p277 = por %p275, %p276
    %p278 = scmp.ne.s32.totalorder %s269, %s270
    %p279 = scmp.eq.s32.totalorder %s24, 0
    %p280 = por %p278, %p279
    %p281 = scmp.ne.s32.totalorder %s269, %s270
    %p282 = scmp.eq.s32.totalorder %s25, 1
    %p283 = por %p281, %p282
    %p285 = scmp.ne.s32.totalorder %s270, %s284
    %p286 = scmp.eq.s32.totalorder %s25, 0
    %p287 = por %p285, %p286
    %s289 = sadd.s32 %s288, 1
    %p292 = scmp.eq.s32.totalorder %s19, 1
    %p293 = scmp.ne.s32.totalorder %s288, %s290
    %p294 = scmp.eq.s32.totalorder %s19, 0
    %p295 = por %p293, %p294
    %p296 = scmp.ne.s32.totalorder %s288, %s290
    %p297 = scmp.eq.s32.totalorder %s24, 1
    %p298 = por %p296, %p297
    %p299 = scmp.ne.s32.totalorder %s290, %s291
    %p300 = scmp.eq.s32.totalorder %s24, 0
    %p301 = por %p299, %p300
    %p302 = scmp.ne.s32.totalorder %s290, %s291
    %p303 = scmp.eq.s32.totalorder %s25, 1
    %p304 = por %p302, %p303
    %p306 = scmp.ne.s32.totalorder %s291, %s305
    %p307 = scmp.eq.s32.totalorder %s25, 0
    %p308 = por %p306, %p307
    %s310 = sadd.s32 %s309, 1
    %p313 = scmp.eq.s32.totalorder %s19, 1
    %p314 = scmp.ne.s32.totalorder %s309, %s311
    %p315 = scmp.eq.s32.totalorder %s19, 0
    %p316 = por %p314, %p315
    %p317 = scmp.ne.s32.totalorder %s309, %s311
    %p318 = scmp.eq.s32.totalorder %s24, 1
    %p319 = por %p317, %p318
    %p320 = scmp.ne.s32.totalorder %s311, %s312
    %p321 = scmp.eq.s32.totalorder %s24, 0
    %p322 = por %p320, %p321
    %p323 = scmp.ne.s32.totalorder %s311, %s312
    %p324 = scmp.eq.s32.totalorder %s25, 1
    %p325 = por %p323, %p324
    %p327 = scmp.ne.s32.totalorder %s312, %s326
    %p328 = scmp.eq.s32.totalorder %s25, 0
    %p329 = por %p327, %p328
    %s331 = sadd.s32 %s330, 1
    %p334 = scmp.eq.s32.totalorder %s19, 1
    %p335 = scmp.ne.s32.totalorder %s330, %s332
    %p336 = scmp.eq.s32.totalorder %s19, 0
    %p337 = por %p335, %p336
    %p338 = scmp.ne.s32.totalorder %s330, %s332
    %p339 = scmp.eq.s32.totalorder %s24, 1
    %p340 = por %p338, %p339
    %p341 = scmp.ne.s32.totalorder %s332, %s333
    %p342 = scmp.eq.s32.totalorder %s24, 0
    %p343 = por %p341, %p342
    %p344 = scmp.ne.s32.totalorder %s332, %s333
    %p345 = scmp.eq.s32.totalorder %s25, 1
    %p346 = por %p344, %p345
    %p348 = scmp.ne.s32.totalorder %s333, %s347
    %p349 = scmp.eq.s32.totalorder %s25, 0
    %p350 = por %p348, %p349
    %p351 = scmp.le.s32.totalorder 1, %s19
    %p352 = scmp.lt.s32.totalorder %s19, 3
    %p353 = pnand %p351, %p352
    %p354 = pneg %p353
    // Predicated region
    $region9: #{graph_gru_forward.1} parent=5 // pred_check
      _
    $region10: #{graph_gru_forward.1} parent=5 // pred_check_branch
      %356 = sbr.rel (%p353) target = $region12
    $region11: #{graph_gru_forward.1} parent=5 // pred_region
      %s357 = ssub.s32 %s19, 1
      // Predicated region
      $region13: #{graph_gru_forward.1} parent=11 // pred_check
        %p358 = pneg %p40
      $region14: #{graph_gru_forward.1} parent=11 // pred_check_branch
        %360 = sbr.rel (%p358) target = $region16
      $region15: #{graph_gru_forward.1} parent=11 // pred_region
        _
      $region16: #{graph_gru_forward.1} parent=11 // pred_fallthru
        _
      // Predicated region
      $region17: #{graph_gru_forward.1} parent=11 // pred_check
        %p361 = pneg %p61
      $region18: #{graph_gru_forward.1} parent=11 // pred_check_branch
        %363 = sbr.rel (%p361) target = $region20
      $region19: #{graph_gru_forward.1} parent=11 // pred_region
        _
      $region20: #{graph_gru_forward.1} parent=11 // pred_fallthru
        _
      // Predicated region
      $region21: #{graph_gru_forward.1} parent=11 // pred_check
        %p364 = pneg %p82
      $region22: #{graph_gru_forward.1} parent=11 // pred_check_branch
        %366 = sbr.rel (%p364) target = $region24
      $region23: #{graph_gru_forward.1} parent=11 // pred_region
        _
      $region24: #{graph_gru_forward.1} parent=11 // pred_fallthru
        _
      // Predicated region
      $region25: #{graph_gru_forward.1} parent=11 // pred_check
        %p367 = pneg %p259
      $region26: #{graph_gru_forward.1} parent=11 // pred_check_branch
        %369 = sbr.rel (%p367) target = $region28
      $region27: #{graph_gru_forward.1} parent=11 // pred_region
        _
      $region28: #{graph_gru_forward.1} parent=11 // pred_fallthru
        _
      // Predicated region
      $region29: #{graph_gru_forward.1} parent=11 // pred_check
        %p370 = pneg %p280
      $region30: #{graph_gru_forward.1} parent=11 // pred_check_branch
        %372 = sbr.rel (%p370) target = $region32
      $region31: #{graph_gru_forward.1} parent=11 // pred_region
        _
      $region32: #{graph_gru_forward.1} parent=11 // pred_fallthru
        _
      // Predicated region
      $region33: #{graph_gru_forward.1} parent=11 // pred_check
        %p373 = pneg %p301
      $region34: #{graph_gru_forward.1} parent=11 // pred_check_branch
        %375 = sbr.rel (%p373) target = $region36
      $region35: #{graph_gru_forward.1} parent=11 // pred_region
        _
      $region36: #{graph_gru_forward.1} parent=11 // pred_fallthru
        _
      // Predicated region
      $region37: #{graph_gru_forward.1} parent=11 // pred_check
        %p376 = pneg %p322
      $region38: #{graph_gru_forward.1} parent=11 // pred_check_branch
        %378 = sbr.rel (%p376) target = $region40
      $region39: #{graph_gru_forward.1} parent=11 // pred_region
        _
      $region40: #{graph_gru_forward.1} parent=11 // pred_fallthru
        _
    $region12: #{graph_gru_forward.1} parent=5 // pred_fallthru
      _
    %p379 = scmp.lt.s32.totalorder %s19, 2
    // Predicated region
    $region41: #{graph_gru_forward.1} parent=5 // pred_check
      %p380 = pneg %p379
    $region42: #{graph_gru_forward.1} parent=5 // pred_check_branch
      %382 = sbr.rel (%p380) target = $region44
    $region43: #{graph_gru_forward.1} parent=5 // pred_region
      // Predicated region
      $region45: #{graph_gru_forward.1} parent=43 // pred_check
        %p383 = pneg %p102
      $region46: #{graph_gru_forward.1} parent=43 // pred_check_branch
        %385 = sbr.rel (%p383) target = $region48
      $region47: #{graph_gru_forward.1} parent=43 // pred_region
        %p386 = scmp.lt.s32.totalorder %s19, 1
        %s387 = scalar_select %p386, %s19, 1
        %s388 = smul.addr %s387, 5
        %s389 = smul.addr %s388, 4
        %s390 = scalar_lea.vmem %s3, %s389
      $region48: #{graph_gru_forward.1} parent=43 // pred_fallthru
        _
      // Predicated region
      $region49: #{graph_gru_forward.1} parent=43 // pred_check
        %p391 = pneg %p128
      $region50: #{graph_gru_forward.1} parent=43 // pred_check_branch
        %393 = sbr.rel (%p391) target = $region52
      $region51: #{graph_gru_forward.1} parent=43 // pred_region
        %p394 = scmp.lt.s32.totalorder %s19, 1
        %s395 = scalar_select %p394, %s19, 1
        %s396 = scalar_lea.vmem %s4, %s395
      $region52: #{graph_gru_forward.1} parent=43 // pred_fallthru
        _
      // Predicated region
      $region53: #{graph_gru_forward.1} parent=43 // pred_check
        %p397 = pneg %p154
      $region54: #{graph_gru_forward.1} parent=43 // pred_check_branch
        %399 = sbr.rel (%p397) target = $region56
      $region55: #{graph_gru_forward.1} parent=43 // pred_region
        %p400 = scmp.lt.s32.totalorder %s19, 1
        %s401 = scalar_select %p400, %s19, 1
        %s402 = smul.addr %s401, 5
        %s403 = smul.addr %s402, 4
        %s404 = scalar_lea.vmem %s5, %s403
      $region56: #{graph_gru_forward.1} parent=43 // pred_fallthru
        _
      // Predicated region
      $region57: #{graph_gru_forward.1} parent=43 // pred_check
        %p405 = pneg %p180
      $region58: #{graph_gru_forward.1} parent=43 // pred_check_branch
        %407 = sbr.rel (%p405) target = $region60
      $region59: #{graph_gru_forward.1} parent=43 // pred_region
        %p408 = scmp.lt.s32.totalorder %s19, 1
        %s409 = scalar_select %p408, %s19, 1
        %s410 = scalar_lea.vmem %s6, %s409
      $region60: #{graph_gru_forward.1} parent=43 // pred_fallthru
        _
      // Predicated region
      $region61: #{graph_gru_forward.1} parent=43 // pred_check
        %p411 = pneg %p206
      $region62: #{graph_gru_forward.1} parent=43 // pred_check_branch
        %413 = sbr.rel (%p411) target = $region64
      $region63: #{graph_gru_forward.1} parent=43 // pred_region
        %p414 = scmp.lt.s32.totalorder %s19, 1
        %s415 = scalar_select %p414, %s19, 1
        %s416 = smul.addr %s415, 5
        %s417 = smul.addr %s416, 4
        %s418 = scalar_lea.vmem %s7, %s417
      $region64: #{graph_gru_forward.1} parent=43 // pred_fallthru
        _
      // Predicated region
      $region65: #{graph_gru_forward.1} parent=43 // pred_check
        %p419 = pneg %p232
      $region66: #{graph_gru_forward.1} parent=43 // pred_check_branch
        %421 = sbr.rel (%p419) target = $region68
      $region67: #{graph_gru_forward.1} parent=43 // pred_region
        %p422 = scmp.lt.s32.totalorder %s19, 1
        %s423 = scalar_select %p422, %s19, 1
        %s424 = scalar_lea.vmem %s8, %s423
      $region68: #{graph_gru_forward.1} parent=43 // pred_fallthru
        _
    $region44: #{graph_gru_forward.1} parent=5 // pred_fallthru
      _
    %p425 = scmp.le.s32.totalorder 1, %s19
    %p426 = scmp.lt.s32.totalorder %s19, 3
    %p427 = pnand %p425, %p426
    %p428 = pneg %p427
    // Predicated region
    $region69: #{graph_gru_forward.1} parent=5 // pred_check
      _
    $region70: #{graph_gru_forward.1} parent=5 // pred_check_branch
      %430 = sbr.rel (%p427) target = $region72
    $region71: #{graph_gru_forward.1} parent=5 // pred_region
      %s431 = ssub.s32 %s19, 1
      %p432 = pneg %p40
      %p433 = pneg %p37
      %p434 = pneg %p61
      %p435 = pneg %p58
      %p436 = pneg %p82
      %p437 = pneg %p79
      %p438 = scmp.lt.s32.totalorder %s24, 1
      %s439 = scalar_select %p438, %s24, 1
      %s440 = smul.addr %s439, 5
      %s441 = smul.addr %s440, 4
      %s442 = scalar_lea.vmem %s3, %s441
      %p443 = pneg %p108
      %p444 = pneg %p105
      %p445 = scmp.lt.s32.totalorder %s24, 1
      %s446 = scalar_select %p445, %s24, 1
      %s447 = scalar_lea.vmem %s4, %s446
      %p448 = pneg %p134
      %p449 = pneg %p131
      %p450 = scmp.lt.s32.totalorder %s24, 1
      %s451 = scalar_select %p450, %s24, 1
      %s452 = smul.addr %s451, 5
      %s453 = smul.addr %s452, 4
      %s454 = scalar_lea.vmem %s5, %s453
      %p455 = pneg %p160
      %p456 = pneg %p157
      %p457 = scmp.lt.s32.totalorder %s24, 1
      %s458 = scalar_select %p457, %s24, 1
      %s459 = scalar_lea.vmem %s6, %s458
      %p460 = pneg %p186
      %p461 = pneg %p183
      %p462 = scmp.lt.s32.totalorder %s24, 1
      %s463 = scalar_select %p462, %s24, 1
      %s464 = smul.addr %s463, 5
      %s465 = smul.addr %s464, 4
      %s466 = scalar_lea.vmem %s7, %s465
      %p467 = pneg %p212
      %p468 = pneg %p209
      %p469 = scmp.lt.s32.totalorder %s24, 1
      %s470 = scalar_select %p469, %s24, 1
      %s471 = scalar_lea.vmem %s8, %s470
      %p472 = pneg %p238
      %p473 = pneg %p235
      %p474 = pneg %p259
      %p475 = pneg %p256
      %p476 = pneg %p280
      %p477 = pneg %p277
      %p478 = pneg %p301
      %p479 = pneg %p298
      %p480 = pneg %p322
      %p481 = pneg %p319
      %p482 = pneg %p343
      %p483 = pneg %p340
      %p484 = scmp.lt.s32.totalorder %s24, 1
      %s485 = scalar_select %p484, %s24, 1
      %s486 = smul.addr %s485, 5
      %s487 = smul.addr %s486, 4
      %s488 = scalar_lea.vmem %s3, %s487
      %p489 = scmp.lt.s32.totalorder %s24, 1
      %s490 = scalar_select %p489, %s24, 1
      %s491 = scalar_lea.vmem %s4, %s490
      %p492 = scmp.lt.s32.totalorder %s24, 1
      %s493 = scalar_select %p492, %s24, 1
      %s494 = smul.addr %s493, 5
      %s495 = smul.addr %s494, 4
      %s496 = scalar_lea.vmem %s5, %s495
      %p497 = scmp.lt.s32.totalorder %s24, 1
      %s498 = scalar_select %p497, %s24, 1
      %s499 = scalar_lea.vmem %s6, %s498
      %p500 = scmp.lt.s32.totalorder %s24, 1
      %s501 = scalar_select %p500, %s24, 1
      %s502 = smul.addr %s501, 5
      %s503 = smul.addr %s502, 4
      %s504 = scalar_lea.vmem %s7, %s503
      %p505 = scmp.lt.s32.totalorder %s24, 1
      %s506 = scalar_select %p505, %s24, 1
      %s507 = scalar_lea.vmem %s8, %s506
      %v509 = vld [vmem:[%s1] sm:$0xff]
      %v510 = vld [vmem:[%s2] sm:$0xff]
      %v511 = vld [vmem:[%s488] sm:$0xf]
      %v512 = vld [vmem:[%s488 + $0x4] sm:$0xf]
      %v513 = vld [vmem:[%s488 + $0x8] sm:$0xf]
      %v514 = vld [vmem:[%s488 + $0xc] sm:$0xf]
      %v515 = vld [vmem:[%s488 + $0x10] sm:$0x3]
      %v516 = vld [vmem:[%s491] sm:$0x1]
      %v517 = vld [vmem:[%s496] sm:$0xf]
      %v518 = vld [vmem:[%s496 + $0x4] sm:$0xf]
      %v519 = vld [vmem:[%s496 + $0x8] sm:$0xf]
      %v520 = vld [vmem:[%s496 + $0xc] sm:$0xf]
      %v521 = vld [vmem:[%s496 + $0x10] sm:$0x3]
      %v522 = vld [vmem:[%s499] sm:$0x1]
      %v523 = vld [vmem:[%s504] sm:$0xf]
      %v524 = vld [vmem:[%s504 + $0x4] sm:$0xf]
      %v525 = vld [vmem:[%s504 + $0x8] sm:$0xf]
      %v526 = vld [vmem:[%s504 + $0xc] sm:$0xf]
      %v527 = vld [vmem:[%s504 + $0x10] sm:$0x3]
      %v528 = vld [vmem:[%s507] sm:$0x1]
      %p529 = scmp.eq.s32.totalorder %s24, 0
      %s530 = scalar_select %p529, 0, 3
      %s531 = smul.u32 %s530, 16
      %s532 = scalar_lea.vmem %s0, %s531
      %v533 = vld [vmem:[%s532] sm:$0xff]
      %v534 = vld [vmem:[%s532 + $0x8] sm:$0xff]
      %537 = vrot.lane.b32.xlu0 %v533, 32
      %v538 = vpop.permute.xlu0 %537
      %539 = vrot.lane.b32.xlu0 %v534, 32
      %v540 = vpop.permute.xlu0 %539
      %vm543 = vcmask 261120
      %v544 = vsel %vm543, 0.0, %v538
      %v545 = vsel %vm543, 0.0, %v540
      %v546 = vpack.c.bf16 %v545, %v544
      %v548 = vlaneseq
      %v549 = vshrl.u32 %v548, 7
      %v550 = vsub.s32 0, %v549
      %v551 = vrot.slane %v516, %v550
      %v558 = vunpack.c.l.b16 %v511
      %v559 = vunpack.c.l.b16 %v512
      %v560 = vunpack.c.l.b16 %v513
      %v561 = vunpack.c.l.b16 %v514
      %v562 = vunpack.c.l.b16 %v515
      %v563 = vpack.c.b16 %v559, %v558
      %v564 = vpack.c.b16 %v561, %v560
      %v565 = vpack.c.b16 %v562, %v562
      %vm568 = vcmask 293888
      %v570 = vsel %vm568, %v546, 0
      %vm572 = vcmask 1041408
      %v574 = vsel %vm572, %v565, 0
      %576 = vmatprep.subr.bf16.mxu0 0
      %577 = vmatpush1.bf16.msra.mxu0 %v563
      %578 = vmatprep.subr.bf16.mxu0 0
      %579 = vmatpush1.bf16.msra.mxu0 %v564
      %580 = vmatprep.subr.bf16.mxu0 0
      %581 = vmatpush1.bf16.msra.mxu0 %v574
      %582 = vmatprep.subr.bf16.mxu0 0
      %583 = vmatpush1.bf16.msra.mxu0 0
      %584 = vmatprep.subr.bf16.mxu0 0
      %585 = vmatpush1.bf16.msra.mxu0 0
      %586 = vmatprep.subr.bf16.mxu0 0
      %587 = vmatpush1.bf16.msra.mxu0 0
      %588 = vmatprep.subr.bf16.mxu0 0
      %589 = vmatpush1.bf16.msra.mxu0 0
      %590 = vmatprep.subr.bf16.mxu0 0
      %591 = vmatpush1.bf16.msra.mxu0 0
      %592 = vmatprep.subr.bf16.mxu0 0
      %593 = vmatpush1.bf16.msra.mxu0 0
      %594 = vmatprep.subr.bf16.mxu0 0
      %595 = vmatpush1.bf16.msra.mxu0 0
      %596 = vmatprep.subr.bf16.mxu0 0
      %597 = vmatpush1.bf16.msra.mxu0 0
      %598 = vmatprep.subr.bf16.mxu0 0
      %599 = vmatpush1.bf16.msra.mxu0 0
      %600 = vmatprep.subr.bf16.mxu0 0
      %601 = vmatpush1.bf16.msra.mxu0 0
      %602 = vmatprep.subr.bf16.mxu0 0
      %603 = vmatpush1.bf16.msra.mxu0 0
      %604 = vmatprep.subr.bf16.mxu0 0
      %605 = vmatpush1.bf16.msra.mxu0 0
      %606 = vmatprep.subr.bf16.mxu0 0
      %607 = vmatpush1.bf16.msra.mxu0 0
      %608 = vmatprep.mubr.bf16.mxu0 0
      %609 = vmatmul.mubr.bf16.gmra.mrb[0].mxu0 %v570
      %v610 = vpop.f32.mrb[0].mxu0
      %v611 = vadd.f32 %v551, %v610
      %v612 = vpop.f32.mrb[0].mxu0
      %v613 = vpop.f32.mrb[0].mxu0
      %v614 = vadd.f32 %v551, %v613
      %v615 = vpop.f32.mrb[0].mxu0
      %616 = vdwg.mxu0
      %v617 = vpack.c.bf16 %v611, %v611
      %v618 = vpack.c.bf16 %v614, %v614
      %620 = vrot.lane.b32.xlu0 %v617, 96
      %v621 = vpop.permute.xlu0 %620
      %v623 = vsel %vm543, %v617, 0
      %v626 = vsel %vm543, %v621, 0
      %628 = vmatprep.subr.bf16.mxu0 0
      %629 = vmatpush1.bf16.xpose.msra.mxu0 %v626
      %630 = vmatprep.subr.bf16.mxu0 0
      %631 = vmatpush1.bf16.xpose.msra.mxu0 0
      %632 = vmatprep.subr.bf16.mxu0 0
      %633 = vmatpush1.bf16.xpose.msra.mxu0 0
      %634 = vmatprep.subr.bf16.mxu0 0
      %635 = vmatpush1.bf16.xpose.msra.mxu0 0
      %636 = vmatprep.subr.bf16.mxu0 0
      %637 = vmatpush1.bf16.xpose.msra.mxu0 0
      %638 = vmatprep.subr.bf16.mxu0 0
      %639 = vmatpush1.bf16.xpose.msra.mxu0 0
      %640 = vmatprep.subr.bf16.mxu0 0
      %641 = vmatpush1.bf16.xpose.msra.mxu0 0
      %642 = vmatprep.subr.bf16.mxu0 0
      %643 = vmatpush1.bf16.xpose.msra.mxu0 0
      %644 = vmatprep.subr.bf16.mxu0 0
      %645 = vmatpush1.bf16.xpose.msra.mxu0 0
      %646 = vmatprep.subr.bf16.mxu0 0
      %647 = vmatpush1.bf16.xpose.msra.mxu0 0
      %648 = vmatprep.subr.bf16.mxu0 0
      %649 = vmatpush1.bf16.xpose.msra.mxu0 0
      %650 = vmatprep.subr.bf16.mxu0 0
      %651 = vmatpush1.bf16.xpose.msra.mxu0 0
      %652 = vmatprep.subr.bf16.mxu0 0
      %653 = vmatpush1.bf16.xpose.msra.mxu0 0
      %654 = vmatprep.subr.bf16.mxu0 0
      %655 = vmatpush1.bf16.xpose.msra.mxu0 0
      %656 = vmatprep.subr.bf16.mxu0 0
      %657 = vmatpush1.bf16.xpose.msra.mxu0 0
      %658 = vmatprep.subr.bf16.mxu0 0
      %659 = vmatpush1.bf16.xpose.msra.mxu0 0
      %660 = vmatprep.mubr.bf16.mxu0 0
      %661 = vmatmul.mubr.bf16.gmra.mrb[0].mxu0 %v623
      %v662 = vpop.f32.mrb[0].mxu0
      %v663 = vadd.f32 %v509, %v662
      %v664 = vpop.f32.mrb[0].mxu0
      %v665 = vpop.f32.mrb[0].mxu0
      %v666 = vpop.f32.mrb[0].mxu0
      %667 = vdwg.mxu0
      %669 = vrot.lane.b32.xlu0 %v618, 96
      %v670 = vpop.permute.xlu0 %669
      %v672 = vsel %vm543, %v618, 0
      %v675 = vsel %vm543, %v670, 0
      %677 = vmatprep.subr.bf16.mxu0 0
      %678 = vmatpush1.bf16.xpose.msra.mxu0 %v675
      %679 = vmatprep.subr.bf16.mxu0 0
      %680 = vmatpush1.bf16.xpose.msra.mxu0 0
      %681 = vmatprep.subr.bf16.mxu0 0
      %682 = vmatpush1.bf16.xpose.msra.mxu0 0
      %683 = vmatprep.subr.bf16.mxu0 0
      %684 = vmatpush1.bf16.xpose.msra.mxu0 0
      %685 = vmatprep.subr.bf16.mxu0 0
      %686 = vmatpush1.bf16.xpose.msra.mxu0 0
      %687 = vmatprep.subr.bf16.mxu0 0
      %688 = vmatpush1.bf16.xpose.msra.mxu0 0
      %689 = vmatprep.subr.bf16.mxu0 0
      %690 = vmatpush1.bf16.xpose.msra.mxu0 0
      %691 = vmatprep.subr.bf16.mxu0 0
      %692 = vmatpush1.bf16.xpose.msra.mxu0 0
      %693 = vmatprep.subr.bf16.mxu0 0
      %694 = vmatpush1.bf16.xpose.msra.mxu0 0
      %695 = vmatprep.subr.bf16.mxu0 0
      %696 = vmatpush1.bf16.xpose.msra.mxu0 0
      %697 = vmatprep.subr.bf16.mxu0 0
      %698 = vmatpush1.bf16.xpose.msra.mxu0 0
      %699 = vmatprep.subr.bf16.mxu0 0
      %700 = vmatpush1.bf16.xpose.msra.mxu0 0
      %701 = vmatprep.subr.bf16.mxu0 0
      %702 = vmatpush1.bf16.xpose.msra.mxu0 0
      %703 = vmatprep.subr.bf16.mxu0 0
      %704 = vmatpush1.bf16.xpose.msra.mxu0 0
      %705 = vmatprep.subr.bf16.mxu0 0
      %706 = vmatpush1.bf16.xpose.msra.mxu0 0
      %707 = vmatprep.subr.bf16.mxu0 0
      %708 = vmatpush1.bf16.xpose.msra.mxu0 0
      %709 = vmatprep.mubr.bf16.mxu0 0
      %710 = vmatmul.mubr.bf16.gmra.mrb[0].mxu0 %v672
      %v711 = vpop.f32.mrb[0].mxu0
      %v712 = vadd.f32 %v509, %v711
      %v713 = vpop.f32.mrb[0].mxu0
      %v714 = vpop.f32.mrb[0].mxu0
      %v715 = vpop.f32.mrb[0].mxu0
      %716 = vdwg.mxu0
      %vm717 = vcmask 64512
      %v718 = vsel %vm717, %v663, -inf
      %719 = vmax.xlane.f32.xlu0 %v718
      %v720 = vpop.xlane.xlu0 %719
      %v721 = vsel %vm717, %v712, -inf
      %722 = vmax.xlane.f32.xlu0 %v721
      %v723 = vpop.xlane.xlu0 %722
      %v724 = vsub.f32 %v663, %v720
      %v725 = vsub.f32 %v712, %v723
      %v726 = vmul.f32 %v724, 1.442695
      %v727 = vpow.pop %v726
      %v728 = vmul.f32 %v725, 1.442695
      %v729 = vpow.pop %v728
      %v730 = vsel %vm717, %v727, 0.0
      %731 = vadd.xlane.f32.xlu0 %v730
      %v732 = vpop.xlane.xlu0 %731
      %v733 = vsel %vm717, %v729, 0.0
      %734 = vadd.xlane.f32.xlu0 %v733
      %v735 = vpop.xlane.xlu0 %734
      %v736 = vrcp.pop %v732
      %v737 = vrcp.pop %v735
      %v738 = vmul.f32 %v727, %v736
      %v739 = vmul.f32 %v729, %v737
      %v740 = vpack.c.bf16 %v738, %v738
      %v741 = vpack.c.bf16 %v739, %v739
      %742 = vrot.lane.b32.xlu0 %v617, 64
      %v743 = vpop.permute.xlu0 %742
      %v745 = vsel %vm717, %v740, 0
      %vm747 = vcmask 1043456
      %v749 = vsel %vm747, %v743, 0
      %751 = vmatprep.subr.bf16.mxu0 0
      %752 = vmatpush1.bf16.msra.mxu0 %v749
      %753 = vmatprep.subr.bf16.mxu0 0
      %754 = vmatpush1.bf16.msra.mxu0 0
      %755 = vmatprep.subr.bf16.mxu0 0
      %756 = vmatpush1.bf16.msra.mxu0 0
      %757 = vmatprep.subr.bf16.mxu0 0
      %758 = vmatpush1.bf16.msra.mxu0 0
      %759 = vmatprep.subr.bf16.mxu0 0
      %760 = vmatpush1.bf16.msra.mxu0 0
      %761 = vmatprep.subr.bf16.mxu0 0
      %762 = vmatpush1.bf16.msra.mxu0 0
      %763 = vmatprep.subr.bf16.mxu0 0
      %764 = vmatpush1.bf16.msra.mxu0 0
      %765 = vmatprep.subr.bf16.mxu0 0
      %766 = vmatpush1.bf16.msra.mxu0 0
      %767 = vmatprep.subr.bf16.mxu0 0
      %768 = vmatpush1.bf16.msra.mxu0 0
      %769 = vmatprep.subr.bf16.mxu0 0
      %770 = vmatpush1.bf16.msra.mxu0 0
      %771 = vmatprep.subr.bf16.mxu0 0
      %772 = vmatpush1.bf16.msra.mxu0 0
      %773 = vmatprep.subr.bf16.mxu0 0
      %774 = vmatpush1.bf16.msra.mxu0 0
      %775 = vmatprep.subr.bf16.mxu0 0
      %776 = vmatpush1.bf16.msra.mxu0 0
      %777 = vmatprep.subr.bf16.mxu0 0
      %778 = vmatpush1.bf16.msra.mxu0 0
      %779 = vmatprep.subr.bf16.mxu0 0
      %780 = vmatpush1.bf16.msra.mxu0 0
      %781 = vmatprep.subr.bf16.mxu0 0
      %782 = vmatpush1.bf16.msra.mxu0 0
      %783 = vmatprep.mubr.bf16.mxu0 0
      %784 = vmatmul.mubr.bf16.gmra.mrb[0].mxu0 %v745
      %v785 = vpop.f32.mrb[0].mxu0
      %v786 = vadd.f32 0.0, %v785
      %v787 = vpop.f32.mrb[0].mxu0
      %v788 = vpop.f32.mrb[0].mxu0
      %v789 = vpop.f32.mrb[0].mxu0
      %790 = vdwg.mxu0
      %791 = vrot.lane.b32.xlu0 %v618, 64
      %v792 = vpop.permute.xlu0 %791
      %v794 = vsel %vm717, %v741, 0
      %v797 = vsel %vm747, %v792, 0
      %799 = vmatprep.subr.bf16.mxu0 0
      %800 = vmatpush1.bf16.msra.mxu0 %v797
      %801 = vmatprep.subr.bf16.mxu0 0
      %802 = vmatpush1.bf16.msra.mxu0 0
      %803 = vmatprep.subr.bf16.mxu0 0
      %804 = vmatpush1.bf16.msra.mxu0 0
      %805 = vmatprep.subr.bf16.mxu0 0
      %806 = vmatpush1.bf16.msra.mxu0 0
      %807 = vmatprep.subr.bf16.mxu0 0
      %808 = vmatpush1.bf16.msra.mxu0 0
      %809 = vmatprep.subr.bf16.mxu0 0
      %810 = vmatpush1.bf16.msra.mxu0 0
      %811 = vmatprep.subr.bf16.mxu0 0
      %812 = vmatpush1.bf16.msra.mxu0 0
      %813 = vmatprep.subr.bf16.mxu0 0
      %814 = vmatpush1.bf16.msra.mxu0 0
      %815 = vmatprep.subr.bf16.mxu0 0
      %816 = vmatpush1.bf16.msra.mxu0 0
      %817 = vmatprep.subr.bf16.mxu0 0
      %818 = vmatpush1.bf16.msra.mxu0 0
      %819 = vmatprep.subr.bf16.mxu0 0
      %820 = vmatpush1.bf16.msra.mxu0 0
      %821 = vmatprep.subr.bf16.mxu0 0
      %822 = vmatpush1.bf16.msra.mxu0 0
      %823 = vmatprep.subr.bf16.mxu0 0
      %824 = vmatpush1.bf16.msra.mxu0 0
      %825 = vmatprep.subr.bf16.mxu0 0
      %826 = vmatpush1.bf16.msra.mxu0 0
      %827 = vmatprep.subr.bf16.mxu0 0
      %828 = vmatpush1.bf16.msra.mxu0 0
      %829 = vmatprep.subr.bf16.mxu0 0
      %830 = vmatpush1.bf16.msra.mxu0 0
      %831 = vmatprep.mubr.bf16.mxu0 0
      %832 = vmatmul.mubr.bf16.gmra.mrb[0].mxu0 %v794
      %v833 = vpop.f32.mrb[0].mxu0
      %v834 = vadd.f32 0.0, %v833
      %v835 = vpop.f32.mrb[0].mxu0
      %v836 = vpop.f32.mrb[0].mxu0
      %v837 = vpop.f32.mrb[0].mxu0
      %838 = vdwg.mxu0
      %840 = vset.pattern.permute.xlu0 0
      %841 = vperm.xlu0 %840, %v510
      %v842 = vpop.permute.xlu0 %841
      %v844 = vmul.f32 %v786, %v842
      %v845 = vmul.f32 %v834, %v842
      %848 = vrot.lane.b32.xlu0 %v611, 32
      %v849 = vpop.permute.xlu0 %848
      %850 = vrot.lane.b32.xlu0 %v614, 32
      %v851 = vpop.permute.xlu0 %850
      %v854 = vadd.f32 %v844, %v849
      %v855 = vadd.f32 %v845, %v851
      %858 = vrot.lane.b32.xlu0 %v854, 4
      %v859 = vpop.permute.xlu0 %858
      %860 = vrot.lane.b32.xlu0 %v855, 4
      %v861 = vpop.permute.xlu0 %860
      %vm864 = vcmask 31744
      %v865 = vsel %vm864, %v533, %v859
      %v866 = vsel %vm864, %v534, %v861
      %v867 = vpack.c.bf16 %v866, %v865
      %v869 = vlaneseq
      %v870 = vshrl.u32 %v869, 7
      %v871 = vsub.s32 0, %v870
      %v872 = vrot.slane %v522, %v871
      %v879 = vunpack.c.l.b16 %v517
      %v880 = vunpack.c.l.b16 %v518
      %v881 = vunpack.c.l.b16 %v519
      %v882 = vunpack.c.l.b16 %v520
      %v883 = vunpack.c.l.b16 %v521
      %v884 = vpack.c.b16 %v880, %v879
      %v885 = vpack.c.b16 %v882, %v881
      %v886 = vpack.c.b16 %v883, %v883
      %v890 = vsel %vm568, %v867, 0
      %v893 = vsel %vm572, %v886, 0
      %895 = vmatprep.subr.bf16.mxu0 0
      %896 = vmatpush1.bf16.msra.mxu0 %v884
      %897 = vmatprep.subr.bf16.mxu0 0
      %898 = vmatpush1.bf16.msra.mxu0 %v885
      %899 = vmatprep.subr.bf16.mxu0 0
      %900 = vmatpush1.bf16.msra.mxu0 %v893
      %901 = vmatprep.subr.bf16.mxu0 0
      %902 = vmatpush1.bf16.msra.mxu0 0
      %903 = vmatprep.subr.bf16.mxu0 0
      %904 = vmatpush1.bf16.msra.mxu0 0
      %905 = vmatprep.subr.bf16.mxu0 0
      %906 = vmatpush1.bf16.msra.mxu0 0
      %907 = vmatprep.subr.bf16.mxu0 0
      %908 = vmatpush1.bf16.msra.mxu0 0
      %909 = vmatprep.subr.bf16.mxu0 0
      %910 = vmatpush1.bf16.msra.mxu0 0
      %911 = vmatprep.subr.bf16.mxu0 0
      %912 = vmatpush1.bf16.msra.mxu0 0
      %913 = vmatprep.subr.bf16.mxu0 0
      %914 = vmatpush1.bf16.msra.mxu0 0
      %915 = vmatprep.subr.bf16.mxu0 0
      %916 = vmatpush1.bf16.msra.mxu0 0
      %917 = vmatprep.subr.bf16.mxu0 0
      %918 = vmatpush1.bf16.msra.mxu0 0
      %919 = vmatprep.subr.bf16.mxu0 0
      %920 = vmatpush1.bf16.msra.mxu0 0
      %921 = vmatprep.subr.bf16.mxu0 0
      %922 = vmatpush1.bf16.msra.mxu0 0
      %923 = vmatprep.subr.bf16.mxu0 0
      %924 = vmatpush1.bf16.msra.mxu0 0
      %925 = vmatprep.subr.bf16.mxu0 0
      %926 = vmatpush1.bf16.msra.mxu0 0
      %927 = vmatprep.mubr.bf16.mxu0 0
      %928 = vmatmul.mubr.bf16.gmra.mrb[0].mxu0 %v890
      %v929 = vpop.f32.mrb[0].mxu0
      %v930 = vadd.f32 %v872, %v929
      %v931 = vpop.f32.mrb[0].mxu0
      %v932 = vpop.f32.mrb[0].mxu0
      %v933 = vadd.f32 %v872, %v932
      %v934 = vpop.f32.mrb[0].mxu0
      %935 = vdwg.mxu0
      %v936 = vxor.u32 %v930, 2147483648
      %v937 = vxor.u32 %v933, 2147483648
      %v938 = vmul.f32 %v936, 1.442695
      %v939 = vpow.pop %v938
      %v940 = vmul.f32 %v937, 1.442695
      %v941 = vpow.pop %v940
      %v942 = vadd.f32 %v939, 1.0
      %v943 = vadd.f32 %v941, 1.0
      %v944 = vrcp.pop %v942
      %v945 = vmul.f32 1.0, %v944
      %v946 = vrcp.pop %v943
      %v947 = vmul.f32 1.0, %v946
      %v948 = vmul.f32 %v945, %v854
      %v949 = vmul.f32 %v947, %v855
      %952 = vrot.lane.b32.xlu0 %v948, 4
      %v953 = vpop.permute.xlu0 %952
      %954 = vrot.lane.b32.xlu0 %v949, 4
      %v955 = vpop.permute.xlu0 %954
      %v958 = vsel %vm864, %v533, %v953
      %v959 = vsel %vm864, %v534, %v955
      %v960 = vpack.c.bf16 %v959, %v958
      %v962 = vlaneseq
      %v963 = vshrl.u32 %v962, 7
      %v964 = vsub.s32 0, %v963
      %v965 = vrot.slane %v528, %v964
      %v972 = vunpack.c.l.b16 %v523
      %v973 = vunpack.c.l.b16 %v524
      %v974 = vunpack.c.l.b16 %v525
      %v975 = vunpack.c.l.b16 %v526
      %v976 = vunpack.c.l.b16 %v527
      %v977 = vpack.c.b16 %v973, %v972
      %v978 = vpack.c.b16 %v975, %v974
      %v979 = vpack.c.b16 %v976, %v976
      %v983 = vsel %vm568, %v960, 0
      %v986 = vsel %vm572, %v979, 0
      %988 = vmatprep.subr.bf16.mxu0 0
      %989 = vmatpush1.bf16.msra.mxu0 %v977
      %990 = vmatprep.subr.bf16.mxu0 0
      %991 = vmatpush1.bf16.msra.mxu0 %v978
      %992 = vmatprep.subr.bf16.mxu0 0
      %993 = vmatpush1.bf16.msra.mxu0 %v986
      %994 = vmatprep.subr.bf16.mxu0 0
      %995 = vmatpush1.bf16.msra.mxu0 0
      %996 = vmatprep.subr.bf16.mxu0 0
      %997 = vmatpush1.bf16.msra.mxu0 0
      %998 = vmatprep.subr.bf16.mxu0 0
      %999 = vmatpush1.bf16.msra.mxu0 0
      %1000 = vmatprep.subr.bf16.mxu0 0
      %1001 = vmatpush1.bf16.msra.mxu0 0
      %1002 = vmatprep.subr.bf16.mxu0 0
      %1003 = vmatpush1.bf16.msra.mxu0 0
      %1004 = vmatprep.subr.bf16.mxu0 0
      %1005 = vmatpush1.bf16.msra.mxu0 0
      %1006 = vmatprep.subr.bf16.mxu0 0
      %1007 = vmatpush1.bf16.msra.mxu0 0
      %1008 = vmatprep.subr.bf16.mxu0 0
      %1009 = vmatpush1.bf16.msra.mxu0 0
      %1010 = vmatprep.subr.bf16.mxu0 0
      %1011 = vmatpush1.bf16.msra.mxu0 0
      %1012 = vmatprep.subr.bf16.mxu0 0
      %1013 = vmatpush1.bf16.msra.mxu0 0
      %1014 = vmatprep.subr.bf16.mxu0 0
      %1015 = vmatpush1.bf16.msra.mxu0 0
      %1016 = vmatprep.subr.bf16.mxu0 0
      %1017 = vmatpush1.bf16.msra.mxu0 0
      %1018 = vmatprep.subr.bf16.mxu0 0
      %1019 = vmatpush1.bf16.msra.mxu0 0
      %1020 = vmatprep.mubr.bf16.mxu0 0
      %1021 = vmatmul.mubr.bf16.gmra.mrb[0].mxu0 %v983
      %v1022 = vpop.f32.mrb[0].mxu0
      %v1023 = vadd.f32 %v965, %v1022
      %v1024 = vpop.f32.mrb[0].mxu0
      %v1025 = vpop.f32.mrb[0].mxu0
      %v1026 = vadd.f32 %v965, %v1025
      %v1027 = vpop.f32.mrb[0].mxu0
      %1028 = vdwg.mxu0
      %v1029 = vtanh.pop %v1023
      %v1030 = vtanh.pop %v1026
      %v1031 = vsub.f32 1.0, %v945
      %v1032 = vsub.f32 1.0, %v947
      %1033 = vrot.lane.b32.xlu0 %v854, 32
      %v1034 = vpop.permute.xlu0 %1033
      %1035 = vrot.lane.b32.xlu0 %v855, 32
      %v1036 = vpop.permute.xlu0 %1035
      %v1039 = vmul.f32 %v1031, %v1034
      %v1040 = vmul.f32 %v1032, %v1036
      %1043 = vrot.lane.b32.xlu0 %v1029, 32
      %v1044 = vpop.permute.xlu0 %1043
      %1045 = vrot.lane.b32.xlu0 %v1030, 32
      %v1046 = vpop.permute.xlu0 %1045
      %v1049 = vmul.f32 %v945, %v1044
      %v1050 = vmul.f32 %v947, %v1046
      %v1051 = vadd.f32 %v1039, %v1049
      %v1052 = vadd.f32 %v1040, %v1050
      %s1053 = scalar_select %p529, 1, 2
      %s1054 = smul.u32 %s1053, 16
      %s1055 = scalar_lea.vmem %s0, %s1054
      %v1056 = vld [vmem:[%s1055] sm:$0xff]
      %v1057 = vld [vmem:[%s1055 + $0x8] sm:$0xff]
      %1060 = vrot.lane.b32.xlu0 %v1051, 96
      %v1061 = vpop.permute.xlu0 %1060
      %1062 = vrot.lane.b32.xlu0 %v1052, 96
      %v1063 = vpop.permute.xlu0 %1062
      %1068 = vrot.lane.b32.xlu0 %v1056, 32
      %v1069 = vpop.permute.xlu0 %1068
      %1070 = vrot.lane.b32.xlu0 %v1057, 32
      %v1071 = vpop.permute.xlu0 %1070
      %v1074 = vsel %vm543, %v1061, %v1069
      %v1075 = vsel %vm543, %v1063, %v1071
      %v1076 = vpack.c.bf16 %v1075, %v1074
      %v1078 = vsel %vm568, %v1076, 0
      %1080 = vmatprep.subr.bf16.mxu0 0
      %1081 = vmatpush1.bf16.msra.mxu0 %v563
      %1082 = vmatprep.subr.bf16.mxu0 0
      %1083 = vmatpush1.bf16.msra.mxu0 %v564
      %1084 = vmatprep.subr.bf16.mxu0 0
      %1085 = vmatpush1.bf16.msra.mxu0 %v574
      %1086 = vmatprep.subr.bf16.mxu0 0
      %1087 = vmatpush1.bf16.msra.mxu0 0
      %1088 = vmatprep.subr.bf16.mxu0 0
      %1089 = vmatpush1.bf16.msra.mxu0 0
      %1090 = vmatprep.subr.bf16.mxu0 0
      %1091 = vmatpush1.bf16.msra.mxu0 0
      %1092 = vmatprep.subr.bf16.mxu0 0
      %1093 = vmatpush1.bf16.msra.mxu0 0
      %1094 = vmatprep.subr.bf16.mxu0 0
      %1095 = vmatpush1.bf16.msra.mxu0 0
      %1096 = vmatprep.subr.bf16.mxu0 0
      %1097 = vmatpush1.bf16.msra.mxu0 0
      %1098 = vmatprep.subr.bf16.mxu0 0
      %1099 = vmatpush1.bf16.msra.mxu0 0
      %1100 = vmatprep.subr.bf16.mxu0 0
      %1101 = vmatpush1.bf16.msra.mxu0 0
      %1102 = vmatprep.subr.bf16.mxu0 0
      %1103 = vmatpush1.bf16.msra.mxu0 0
      %1104 = vmatprep.subr.bf16.mxu0 0
      %1105 = vmatpush1.bf16.msra.mxu0 0
      %1106 = vmatprep.subr.bf16.mxu0 0
      %1107 = vmatpush1.bf16.msra.mxu0 0
      %1108 = vmatprep.subr.bf16.mxu0 0
      %1109 = vmatpush1.bf16.msra.mxu0 0
      %1110 = vmatprep.subr.bf16.mxu0 0
      %1111 = vmatpush1.bf16.msra.mxu0 0
      %1112 = vmatprep.mubr.bf16.mxu0 0
      %1113 = vmatmul.mubr.bf16.gmra.mrb[0].mxu0 %v1078
      %v1114 = vpop.f32.mrb[0].mxu0
      %v1115 = vadd.f32 %v551, %v1114
      %v1116 = vpop.f32.mrb[0].mxu0
      %v1117 = vpop.f32.mrb[0].mxu0
      %v1118 = vadd.f32 %v551, %v1117
      %v1119 = vpop.f32.mrb[0].mxu0
      %1120 = vdwg.mxu0
      %v1121 = vpack.c.bf16 %v1115, %v1115
      %v1122 = vpack.c.bf16 %v1118, %v1118
      %1124 = vrot.lane.b32.xlu0 %v1121, 96
      %v1125 = vpop.permute.xlu0 %1124
      %v1127 = vsel %vm543, %v1121, 0
      %v1130 = vsel %vm543, %v1125, 0
      %1132 = vmatprep.subr.bf16.mxu0 0
      %1133 = vmatpush1.bf16.xpose.msra.mxu0 %v1130
      %1134 = vmatprep.subr.bf16.mxu0 0
      %1135 = vmatpush1.bf16.xpose.msra.mxu0 0
      %1136 = vmatprep.subr.bf16.mxu0 0
      %1137 = vmatpush1.bf16.xpose.msra.mxu0 0
      %1138 = vmatprep.subr.bf16.mxu0 0
      %1139 = vmatpush1.bf16.xpose.msra.mxu0 0
      %1140 = vmatprep.subr.bf16.mxu0 0
      %1141 = vmatpush1.bf16.xpose.msra.mxu0 0
      %1142 = vmatprep.subr.bf16.mxu0 0
      %1143 = vmatpush1.bf16.xpose.msra.mxu0 0
      %1144 = vmatprep.subr.bf16.mxu0 0
      %1145 = vmatpush1.bf16.xpose.msra.mxu0 0
      %1146 = vmatprep.subr.bf16.mxu0 0
      %1147 = vmatpush1.bf16.xpose.msra.mxu0 0
      %1148 = vmatprep.subr.bf16.mxu0 0
      %1149 = vmatpush1.bf16.xpose.msra.mxu0 0
      %1150 = vmatprep.subr.bf16.mxu0 0
      %1151 = vmatpush1.bf16.xpose.msra.mxu0 0
      %1152 = vmatprep.subr.bf16.mxu0 0
      %1153 = vmatpush1.bf16.xpose.msra.mxu0 0
      %1154 = vmatprep.subr.bf16.mxu0 0
      %1155 = vmatpush1.bf16.xpose.msra.mxu0 0
      %1156 = vmatprep.subr.bf16.mxu0 0
      %1157 = vmatpush1.bf16.xpose.msra.mxu0 0
      %1158 = vmatprep.subr.bf16.mxu0 0
      %1159 = vmatpush1.bf16.xpose.msra.mxu0 0
      %1160 = vmatprep.subr.bf16.mxu0 0
      %1161 = vmatpush1.bf16.xpose.msra.mxu0 0
      %1162 = vmatprep.subr.bf16.mxu0 0
      %1163 = vmatpush1.bf16.xpose.msra.mxu0 0
      %1164 = vmatprep.mubr.bf16.mxu0 0
      %1165 = vmatmul.mubr.bf16.gmra.mrb[0].mxu0 %v1127
      %v1166 = vpop.f32.mrb[0].mxu0
      %v1167 = vadd.f32 %v509, %v1166
      %v1168 = vpop.f32.mrb[0].mxu0
      %v1169 = vpop.f32.mrb[0].mxu0
      %v1170 = vpop.f32.mrb[0].mxu0
      %1171 = vdwg.mxu0
      %1173 = vrot.lane.b32.xlu0 %v1122, 96
      %v1174 = vpop.permute.xlu0 %1173
      %v1176 = vsel %vm543, %v1122, 0
      %v1179 = vsel %vm543, %v1174, 0
      %1181 = vmatprep.subr.bf16.mxu0 0
      %1182 = vmatpush1.bf16.xpose.msra.mxu0 %v1179
      %1183 = vmatprep.subr.bf16.mxu0 0
      %1184 = vmatpush1.bf16.xpose.msra.mxu0 0
      %1185 = vmatprep.subr.bf16.mxu0 0
      %1186 = vmatpush1.bf16.xpose.msra.mxu0 0
      %1187 = vmatprep.subr.bf16.mxu0 0
      %1188 = vmatpush1.bf16.xpose.msra.mxu0 0
      %1189 = vmatprep.subr.bf16.mxu0 0
      %1190 = vmatpush1.bf16.xpose.msra.mxu0 0
      %1191 = vmatprep.subr.bf16.mxu0 0
      %1192 = vmatpush1.bf16.xpose.msra.mxu0 0
      %1193 = vmatprep.subr.bf16.mxu0 0
      %1194 = vmatpush1.bf16.xpose.msra.mxu0 0
      %1195 = vmatprep.subr.bf16.mxu0 0
      %1196 = vmatpush1.bf16.xpose.msra.mxu0 0
      %1197 = vmatprep.subr.bf16.mxu0 0
      %1198 = vmatpush1.bf16.xpose.msra.mxu0 0
      %1199 = vmatprep.subr.bf16.mxu0 0
      %1200 = vmatpush1.bf16.xpose.msra.mxu0 0
      %1201 = vmatprep.subr.bf16.mxu0 0
      %1202 = vmatpush1.bf16.xpose.msra.mxu0 0
      %1203 = vmatprep.subr.bf16.mxu0 0
      %1204 = vmatpush1.bf16.xpose.msra.mxu0 0
      %1205 = vmatprep.subr.bf16.mxu0 0
      %1206 = vmatpush1.bf16.xpose.msra.mxu0 0
      %1207 = vmatprep.subr.bf16.mxu0 0
      %1208 = vmatpush1.bf16.xpose.msra.mxu0 0
      %1209 = vmatprep.subr.bf16.mxu0 0
      %1210 = vmatpush1.bf16.xpose.msra.mxu0 0
      %1211 = vmatprep.subr.bf16.mxu0 0
      %1212 = vmatpush1.bf16.xpose.msra.mxu0 0
      %1213 = vmatprep.mubr.bf16.mxu0 0
      %1214 = vmatmul.mubr.bf16.gmra.mrb[0].mxu0 %v1176
      %v1215 = vpop.f32.mrb[0].mxu0
      %v1216 = vadd.f32 %v509, %v1215
      %v1217 = vpop.f32.mrb[0].mxu0
      %v1218 = vpop.f32.mrb[0].mxu0
      %v1219 = vpop.f32.mrb[0].mxu0
      %1220 = vdwg.mxu0
      %v1221 = vsel %vm717, %v1167, -inf
      %1222 = vmax.xlane.f32.xlu0 %v1221
      %v1223 = vpop.xlane.xlu0 %1222
      %v1224 = vsel %vm717, %v1216, -inf
      %1225 = vmax.xlane.f32.xlu0 %v1224
      %v1226 = vpop.xlane.xlu0 %1225
      %v1227 = vsub.f32 %v1167, %v1223
      %v1228 = vsub.f32 %v1216, %v1226
      %v1229 = vmul.f32 %v1227, 1.442695
      %v1230 = vpow.pop %v1229
      %v1231 = vmul.f32 %v1228, 1.442695
      %v1232 = vpow.pop %v1231
      %v1233 = vsel %vm717, %v1230, 0.0
      %1234 = vadd.xlane.f32.xlu0 %v1233
      %v1235 = vpop.xlane.xlu0 %1234
      %v1236 = vsel %vm717, %v1232, 0.0
      %1237 = vadd.xlane.f32.xlu0 %v1236
      %v1238 = vpop.xlane.xlu0 %1237
      %v1239 = vrcp.pop %v1235
      %v1240 = vrcp.pop %v1238
      %v1241 = vmul.f32 %v1230, %v1239
      %v1242 = vmul.f32 %v1232, %v1240
      %v1243 = vpack.c.bf16 %v1241, %v1241
      %v1244 = vpack.c.bf16 %v1242, %v1242
      %1245 = vrot.lane.b32.xlu0 %v1121, 64
      %v1246 = vpop.permute.xlu0 %1245
      %v1248 = vsel %vm717, %v1243, 0
      %v1251 = vsel %vm747, %v1246, 0
      %1253 = vmatprep.subr.bf16.mxu0 0
      %1254 = vmatpush1.bf16.msra.mxu0 %v1251
      %1255 = vmatprep.subr.bf16.mxu0 0
      %1256 = vmatpush1.bf16.msra.mxu0 0
      %1257 = vmatprep.subr.bf16.mxu0 0
      %1258 = vmatpush1.bf16.msra.mxu0 0
      %1259 = vmatprep.subr.bf16.mxu0 0
      %1260 = vmatpush1.bf16.msra.mxu0 0
      %1261 = vmatprep.subr.bf16.mxu0 0
      %1262 = vmatpush1.bf16.msra.mxu0 0
      %1263 = vmatprep.subr.bf16.mxu0 0
      %1264 = vmatpush1.bf16.msra.mxu0 0
      %1265 = vmatprep.subr.bf16.mxu0 0
      %1266 = vmatpush1.bf16.msra.mxu0 0
      %1267 = vmatprep.subr.bf16.mxu0 0
      %1268 = vmatpush1.bf16.msra.mxu0 0
      %1269 = vmatprep.subr.bf16.mxu0 0
      %1270 = vmatpush1.bf16.msra.mxu0 0
      %1271 = vmatprep.subr.bf16.mxu0 0
      %1272 = vmatpush1.bf16.msra.mxu0 0
      %1273 = vmatprep.subr.bf16.mxu0 0
      %1274 = vmatpush1.bf16.msra.mxu0 0
      %1275 = vmatprep.subr.bf16.mxu0 0
      %1276 = vmatpush1.bf16.msra.mxu0 0
      %1277 = vmatprep.subr.bf16.mxu0 0
      %1278 = vmatpush1.bf16.msra.mxu0 0
      %1279 = vmatprep.subr.bf16.mxu0 0
      %1280 = vmatpush1.bf16.msra.mxu0 0
      %1281 = vmatprep.subr.bf16.mxu0 0
      %1282 = vmatpush1.bf16.msra.mxu0 0
      %1283 = vmatprep.subr.bf16.mxu0 0
      %1284 = vmatpush1.bf16.msra.mxu0 0
      %1285 = vmatprep.mubr.bf16.mxu0 0
      %1286 = vmatmul.mubr.bf16.gmra.mrb[0].mxu0 %v1248
      %v1287 = vpop.f32.mrb[0].mxu0
      %v1288 = vadd.f32 0.0, %v1287
      %v1289 = vpop.f32.mrb[0].mxu0
      %v1290 = vpop.f32.mrb[0].mxu0
      %v1291 = vpop.f32.mrb[0].mxu0
      %1292 = vdwg.mxu0
      %1293 = vrot.lane.b32.xlu0 %v1122, 64
      %v1294 = vpop.permute.xlu0 %1293
      %v1296 = vsel %vm717, %v1244, 0
      %v1299 = vsel %vm747, %v1294, 0
      %1301 = vmatprep.subr.bf16.mxu0 0
      %1302 = vmatpush1.bf16.msra.mxu0 %v1299
      %1303 = vmatprep.subr.bf16.mxu0 0
      %1304 = vmatpush1.bf16.msra.mxu0 0
      %1305 = vmatprep.subr.bf16.mxu0 0
      %1306 = vmatpush1.bf16.msra.mxu0 0
      %1307 = vmatprep.subr.bf16.mxu0 0
      %1308 = vmatpush1.bf16.msra.mxu0 0
      %1309 = vmatprep.subr.bf16.mxu0 0
      %1310 = vmatpush1.bf16.msra.mxu0 0
      %1311 = vmatprep.subr.bf16.mxu0 0
      %1312 = vmatpush1.bf16.msra.mxu0 0
      %1313 = vmatprep.subr.bf16.mxu0 0
      %1314 = vmatpush1.bf16.msra.mxu0 0
      %1315 = vmatprep.subr.bf16.mxu0 0
      %1316 = vmatpush1.bf16.msra.mxu0 0
      %1317 = vmatprep.subr.bf16.mxu0 0
      %1318 = vmatpush1.bf16.msra.mxu0 0
      %1319 = vmatprep.subr.bf16.mxu0 0
      %1320 = vmatpush1.bf16.msra.mxu0 0
      %1321 = vmatprep.subr.bf16.mxu0 0
      %1322 = vmatpush1.bf16.msra.mxu0 0
      %1323 = vmatprep.subr.bf16.mxu0 0
      %1324 = vmatpush1.bf16.msra.mxu0 0
      %1325 = vmatprep.subr.bf16.mxu0 0
      %1326 = vmatpush1.bf16.msra.mxu0 0
      %1327 = vmatprep.subr.bf16.mxu0 0
      %1328 = vmatpush1.bf16.msra.mxu0 0
      %1329 = vmatprep.subr.bf16.mxu0 0
      %1330 = vmatpush1.bf16.msra.mxu0 0
      %1331 = vmatprep.subr.bf16.mxu0 0
      %1332 = vmatpush1.bf16.msra.mxu0 0
      %1333 = vmatprep.mubr.bf16.mxu0 0
      %1334 = vmatmul.mubr.bf16.gmra.mrb[0].mxu0 %v1296
      %v1335 = vpop.f32.mrb[0].mxu0
      %v1336 = vadd.f32 0.0, %v1335
      %v1337 = vpop.f32.mrb[0].mxu0
      %v1338 = vpop.f32.mrb[0].mxu0
      %v1339 = vpop.f32.mrb[0].mxu0
      %1340 = vdwg.mxu0
      %v1341 = vmul.f32 %v1288, %v842
      %v1342 = vmul.f32 %v1336, %v842
      %1345 = vrot.lane.b32.xlu0 %v1115, 32
      %v1346 = vpop.permute.xlu0 %1345
      %1347 = vrot.lane.b32.xlu0 %v1118, 32
      %v1348 = vpop.permute.xlu0 %1347
      %v1351 = vadd.f32 %v1341, %v1346
      %v1352 = vadd.f32 %v1342, %v1348
      %1355 = vrot.lane.b32.xlu0 %v1351, 4
      %v1356 = vpop.permute.xlu0 %1355
      %1357 = vrot.lane.b32.xlu0 %v1352, 4
      %v1358 = vpop.permute.xlu0 %1357
      %v1361 = vsel %vm864, %v1056, %v1356
      %v1362 = vsel %vm864, %v1057, %v1358
      %v1363 = vpack.c.bf16 %v1362, %v1361
      %v1365 = vsel %vm568, %v1363, 0
      %1367 = vmatprep.subr.bf16.mxu0 0
      %1368 = vmatpush1.bf16.msra.mxu0 %v884
      %1369 = vmatprep.subr.bf16.mxu0 0
      %1370 = vmatpush1.bf16.msra.mxu0 %v885
      %1371 = vmatprep.subr.bf16.mxu0 0
      %1372 = vmatpush1.bf16.msra.mxu0 %v893
      %1373 = vmatprep.subr.bf16.mxu0 0
      %1374 = vmatpush1.bf16.msra.mxu0 0
      %1375 = vmatprep.subr.bf16.mxu0 0
      %1376 = vmatpush1.bf16.msra.mxu0 0
      %1377 = vmatprep.subr.bf16.mxu0 0
      %1378 = vmatpush1.bf16.msra.mxu0 0
      %1379 = vmatprep.subr.bf16.mxu0 0
      %1380 = vmatpush1.bf16.msra.mxu0 0
      %1381 = vmatprep.subr.bf16.mxu0 0
      %1382 = vmatpush1.bf16.msra.mxu0 0
      %1383 = vmatprep.subr.bf16.mxu0 0
      %1384 = vmatpush1.bf16.msra.mxu0 0
      %1385 = vmatprep.subr.bf16.mxu0 0
      %1386 = vmatpush1.bf16.msra.mxu0 0
      %1387 = vmatprep.subr.bf16.mxu0 0
      %1388 = vmatpush1.bf16.msra.mxu0 0
      %1389 = vmatprep.subr.bf16.mxu0 0
      %1390 = vmatpush1.bf16.msra.mxu0 0
      %1391 = vmatprep.subr.bf16.mxu0 0
      %1392 = vmatpush1.bf16.msra.mxu0 0
      %1393 = vmatprep.subr.bf16.mxu0 0
      %1394 = vmatpush1.bf16.msra.mxu0 0
      %1395 = vmatprep.subr.bf16.mxu0 0
      %1396 = vmatpush1.bf16.msra.mxu0 0
      %1397 = vmatprep.subr.bf16.mxu0 0
      %1398 = vmatpush1.bf16.msra.mxu0 0
      %1399 = vmatprep.mubr.bf16.mxu0 0
      %1400 = vmatmul.mubr.bf16.gmra.mrb[0].mxu0 %v1365
      %v1401 = vpop.f32.mrb[0].mxu0
      %v1402 = vadd.f32 %v872, %v1401
      %v1403 = vpop.f32.mrb[0].mxu0
      %v1404 = vpop.f32.mrb[0].mxu0
      %v1405 = vadd.f32 %v872, %v1404
      %v1406 = vpop.f32.mrb[0].mxu0
      %1407 = vdwg.mxu0
      %v1408 = vxor.u32 %v1402, 2147483648
      %v1409 = vxor.u32 %v1405, 2147483648
      %v1410 = vmul.f32 %v1408, 1.442695
      %v1411 = vpow.pop %v1410
      %v1412 = vmul.f32 %v1409, 1.442695
      %v1413 = vpow.pop %v1412
      %v1414 = vadd.f32 %v1411, 1.0
      %v1415 = vadd.f32 %v1413, 1.0
      %v1416 = vrcp.pop %v1414
      %v1417 = vmul.f32 1.0, %v1416
      %v1418 = vrcp.pop %v1415
      %v1419 = vmul.f32 1.0, %v1418
      %v1420 = vmul.f32 %v1417, %v1351
      %v1421 = vmul.f32 %v1419, %v1352
      %1424 = vrot.lane.b32.xlu0 %v1420, 4
      %v1425 = vpop.permute.xlu0 %1424
      %1426 = vrot.lane.b32.xlu0 %v1421, 4
      %v1427 = vpop.permute.xlu0 %1426
      %v1430 = vsel %vm864, %v1056, %v1425
      %v1431 = vsel %vm864, %v1057, %v1427
      %v1432 = vpack.c.bf16 %v1431, %v1430
      %v1434 = vsel %vm568, %v1432, 0
      %1436 = vmatprep.subr.bf16.mxu0 0
      %1437 = vmatpush1.bf16.msra.mxu0 %v977
      %1438 = vmatprep.subr.bf16.mxu0 0
      %1439 = vmatpush1.bf16.msra.mxu0 %v978
      %1440 = vmatprep.subr.bf16.mxu0 0
      %1441 = vmatpush1.bf16.msra.mxu0 %v986
      %1442 = vmatprep.subr.bf16.mxu0 0
      %1443 = vmatpush1.bf16.msra.mxu0 0
      %1444 = vmatprep.subr.bf16.mxu0 0
      %1445 = vmatpush1.bf16.msra.mxu0 0
      %1446 = vmatprep.subr.bf16.mxu0 0
      %1447 = vmatpush1.bf16.msra.mxu0 0
      %1448 = vmatprep.subr.bf16.mxu0 0
      %1449 = vmatpush1.bf16.msra.mxu0 0
      %1450 = vmatprep.subr.bf16.mxu0 0
      %1451 = vmatpush1.bf16.msra.mxu0 0
      %1452 = vmatprep.subr.bf16.mxu0 0
      %1453 = vmatpush1.bf16.msra.mxu0 0
      %1454 = vmatprep.subr.bf16.mxu0 0
      %1455 = vmatpush1.bf16.msra.mxu0 0
      %1456 = vmatprep.subr.bf16.mxu0 0
      %1457 = vmatpush1.bf16.msra.mxu0 0
      %1458 = vmatprep.subr.bf16.mxu0 0
      %1459 = vmatpush1.bf16.msra.mxu0 0
      %1460 = vmatprep.subr.bf16.mxu0 0
      %1461 = vmatpush1.bf16.msra.mxu0 0
      %1462 = vmatprep.subr.bf16.mxu0 0
      %1463 = vmatpush1.bf16.msra.mxu0 0
      %1464 = vmatprep.subr.bf16.mxu0 0
      %1465 = vmatpush1.bf16.msra.mxu0 0
      %1466 = vmatprep.subr.bf16.mxu0 0
      %1467 = vmatpush1.bf16.msra.mxu0 0
      %1468 = vmatprep.mubr.bf16.mxu0 0
      %1469 = vmatmul.mubr.bf16.gmra.mrb[0].mxu0 %v1434
      %v1470 = vpop.f32.mrb[0].mxu0
      %v1471 = vadd.f32 %v965, %v1470
      %v1472 = vpop.f32.mrb[0].mxu0
      %v1473 = vpop.f32.mrb[0].mxu0
      %v1474 = vadd.f32 %v965, %v1473
      %v1475 = vpop.f32.mrb[0].mxu0
      %1476 = vdwg.mxu0
      %v1477 = vtanh.pop %v1471
      %v1478 = vtanh.pop %v1474
      %v1479 = vsub.f32 1.0, %v1417
      %v1480 = vsub.f32 1.0, %v1419
      %1481 = vrot.lane.b32.xlu0 %v1351, 32
      %v1482 = vpop.permute.xlu0 %1481
      %1483 = vrot.lane.b32.xlu0 %v1352, 32
      %v1484 = vpop.permute.xlu0 %1483
      %v1487 = vmul.f32 %v1479, %v1482
      %v1488 = vmul.f32 %v1480, %v1484
      %1491 = vrot.lane.b32.xlu0 %v1477, 32
      %v1492 = vpop.permute.xlu0 %1491
      %1493 = vrot.lane.b32.xlu0 %v1478, 32
      %v1494 = vpop.permute.xlu0 %1493
      %v1497 = vmul.f32 %v1417, %v1492
      %v1498 = vmul.f32 %v1419, %v1494
      %v1499 = vadd.f32 %v1487, %v1497
      %v1500 = vadd.f32 %v1488, %v1498
      %s1501 = scalar_select %p529, 2, 1
      %s1502 = smul.u32 %s1501, 16
      %s1503 = scalar_lea.vmem %s0, %s1502
      %v1504 = vld [vmem:[%s1503] sm:$0xff]
      %v1505 = vld [vmem:[%s1503 + $0x8] sm:$0xff]
      %1508 = vrot.lane.b32.xlu0 %v1499, 96
      %v1509 = vpop.permute.xlu0 %1508
      %1510 = vrot.lane.b32.xlu0 %v1500, 96
      %v1511 = vpop.permute.xlu0 %1510
      %1516 = vrot.lane.b32.xlu0 %v1504, 32
      %v1517 = vpop.permute.xlu0 %1516
      %1518 = vrot.lane.b32.xlu0 %v1505, 32
      %v1519 = vpop.permute.xlu0 %1518
      %v1522 = vsel %vm543, %v1509, %v1517
      %v1523 = vsel %vm543, %v1511, %v1519
      %v1524 = vpack.c.bf16 %v1523, %v1522
      %v1526 = vsel %vm568, %v1524, 0
      %1528 = vmatprep.subr.bf16.mxu0 0
      %1529 = vmatpush1.bf16.msra.mxu0 %v563
      %1530 = vmatprep.subr.bf16.mxu0 0
      %1531 = vmatpush1.bf16.msra.mxu0 %v564
      %1532 = vmatprep.subr.bf16.mxu0 0
      %1533 = vmatpush1.bf16.msra.mxu0 %v574
      %1534 = vmatprep.subr.bf16.mxu0 0
      %1535 = vmatpush1.bf16.msra.mxu0 0
      %1536 = vmatprep.subr.bf16.mxu0 0
      %1537 = vmatpush1.bf16.msra.mxu0 0
      %1538 = vmatprep.subr.bf16.mxu0 0
      %1539 = vmatpush1.bf16.msra.mxu0 0
      %1540 = vmatprep.subr.bf16.mxu0 0
      %1541 = vmatpush1.bf16.msra.mxu0 0
      %1542 = vmatprep.subr.bf16.mxu0 0
      %1543 = vmatpush1.bf16.msra.mxu0 0
      %1544 = vmatprep.subr.bf16.mxu0 0
      %1545 = vmatpush1.bf16.msra.mxu0 0
      %1546 = vmatprep.subr.bf16.mxu0 0
      %1547 = vmatpush1.bf16.msra.mxu0 0
      %1548 = vmatprep.subr.bf16.mxu0 0
      %1549 = vmatpush1.bf16.msra.mxu0 0
      %1550 = vmatprep.subr.bf16.mxu0 0
      %1551 = vmatpush1.bf16.msra.mxu0 0
      %1552 = vmatprep.subr.bf16.mxu0 0
      %1553 = vmatpush1.bf16.msra.mxu0 0
      %1554 = vmatprep.subr.bf16.mxu0 0
      %1555 = vmatpush1.bf16.msra.mxu0 0
      %1556 = vmatprep.subr.bf16.mxu0 0
      %1557 = vmatpush1.bf16.msra.mxu0 0
      %1558 = vmatprep.subr.bf16.mxu0 0
      %1559 = vmatpush1.bf16.msra.mxu0 0
      %1560 = vmatprep.mubr.bf16.mxu0 0
      %1561 = vmatmul.mubr.bf16.gmra.mrb[0].mxu0 %v1526
      %v1562 = vpop.f32.mrb[0].mxu0
      %v1563 = vadd.f32 %v551, %v1562
      %v1564 = vpop.f32.mrb[0].mxu0
      %v1565 = vpop.f32.mrb[0].mxu0
      %v1566 = vadd.f32 %v551, %v1565
      %v1567 = vpop.f32.mrb[0].mxu0
      %1568 = vdwg.mxu0
      %v1569 = vpack.c.bf16 %v1563, %v1563
      %v1570 = vpack.c.bf16 %v1566, %v1566
      %1572 = vrot.lane.b32.xlu0 %v1569, 96
      %v1573 = vpop.permute.xlu0 %1572
      %v1575 = vsel %vm543, %v1569, 0
      %v1578 = vsel %vm543, %v1573, 0
      %1580 = vmatprep.subr.bf16.mxu0 0
      %1581 = vmatpush1.bf16.xpose.msra.mxu0 %v1578
      %1582 = vmatprep.subr.bf16.mxu0 0
      %1583 = vmatpush1.bf16.xpose.msra.mxu0 0
      %1584 = vmatprep.subr.bf16.mxu0 0
      %1585 = vmatpush1.bf16.xpose.msra.mxu0 0
      %1586 = vmatprep.subr.bf16.mxu0 0
      %1587 = vmatpush1.bf16.xpose.msra.mxu0 0
      %1588 = vmatprep.subr.bf16.mxu0 0
      %1589 = vmatpush1.bf16.xpose.msra.mxu0 0
      %1590 = vmatprep.subr.bf16.mxu0 0
      %1591 = vmatpush1.bf16.xpose.msra.mxu0 0
      %1592 = vmatprep.subr.bf16.mxu0 0
      %1593 = vmatpush1.bf16.xpose.msra.mxu0 0
      %1594 = vmatprep.subr.bf16.mxu0 0
      %1595 = vmatpush1.bf16.xpose.msra.mxu0 0
      %1596 = vmatprep.subr.bf16.mxu0 0
      %1597 = vmatpush1.bf16.xpose.msra.mxu0 0
      %1598 = vmatprep.subr.bf16.mxu0 0
      %1599 = vmatpush1.bf16.xpose.msra.mxu0 0
      %1600 = vmatprep.subr.bf16.mxu0 0
      %1601 = vmatpush1.bf16.xpose.msra.mxu0 0
      %1602 = vmatprep.subr.bf16.mxu0 0
      %1603 = vmatpush1.bf16.xpose.msra.mxu0 0
      %1604 = vmatprep.subr.bf16.mxu0 0
      %1605 = vmatpush1.bf16.xpose.msra.mxu0 0
      %1606 = vmatprep.subr.bf16.mxu0 0
      %1607 = vmatpush1.bf16.xpose.msra.mxu0 0
      %1608 = vmatprep.subr.bf16.mxu0 0
      %1609 = vmatpush1.bf16.xpose.msra.mxu0 0
      %1610 = vmatprep.subr.bf16.mxu0 0
      %1611 = vmatpush1.bf16.xpose.msra.mxu0 0
      %1612 = vmatprep.mubr.bf16.mxu0 0
      %1613 = vmatmul.mubr.bf16.gmra.mrb[0].mxu0 %v1575
      %v1614 = vpop.f32.mrb[0].mxu0
      %v1615 = vadd.f32 %v509, %v1614
      %v1616 = vpop.f32.mrb[0].mxu0
      %v1617 = vpop.f32.mrb[0].mxu0
      %v1618 = vpop.f32.mrb[0].mxu0
      %1619 = vdwg.mxu0
      %1621 = vrot.lane.b32.xlu0 %v1570, 96
      %v1622 = vpop.permute.xlu0 %1621
      %v1624 = vsel %vm543, %v1570, 0
      %v1627 = vsel %vm543, %v1622, 0
      %1629 = vmatprep.subr.bf16.mxu0 0
      %1630 = vmatpush1.bf16.xpose.msra.mxu0 %v1627
      %1631 = vmatprep.subr.bf16.mxu0 0
      %1632 = vmatpush1.bf16.xpose.msra.mxu0 0
      %1633 = vmatprep.subr.bf16.mxu0 0
      %1634 = vmatpush1.bf16.xpose.msra.mxu0 0
      %1635 = vmatprep.subr.bf16.mxu0 0
      %1636 = vmatpush1.bf16.xpose.msra.mxu0 0
      %1637 = vmatprep.subr.bf16.mxu0 0
      %1638 = vmatpush1.bf16.xpose.msra.mxu0 0
      %1639 = vmatprep.subr.bf16.mxu0 0
      %1640 = vmatpush1.bf16.xpose.msra.mxu0 0
      %1641 = vmatprep.subr.bf16.mxu0 0
      %1642 = vmatpush1.bf16.xpose.msra.mxu0 0
      %1643 = vmatprep.subr.bf16.mxu0 0
      %1644 = vmatpush1.bf16.xpose.msra.mxu0 0
      %1645 = vmatprep.subr.bf16.mxu0 0
      %1646 = vmatpush1.bf16.xpose.msra.mxu0 0
      %1647 = vmatprep.subr.bf16.mxu0 0
      %1648 = vmatpush1.bf16.xpose.msra.mxu0 0
      %1649 = vmatprep.subr.bf16.mxu0 0
      %1650 = vmatpush1.bf16.xpose.msra.mxu0 0
      %1651 = vmatprep.subr.bf16.mxu0 0
      %1652 = vmatpush1.bf16.xpose.msra.mxu0 0
      %1653 = vmatprep.subr.bf16.mxu0 0
      %1654 = vmatpush1.bf16.xpose.msra.mxu0 0
      %1655 = vmatprep.subr.bf16.mxu0 0
      %1656 = vmatpush1.bf16.xpose.msra.mxu0 0
      %1657 = vmatprep.subr.bf16.mxu0 0
      %1658 = vmatpush1.bf16.xpose.msra.mxu0 0
      %1659 = vmatprep.subr.bf16.mxu0 0
      %1660 = vmatpush1.bf16.xpose.msra.mxu0 0
      %1661 = vmatprep.mubr.bf16.mxu0 0
      %1662 = vmatmul.mubr.bf16.gmra.mrb[0].mxu0 %v1624
      %v1663 = vpop.f32.mrb[0].mxu0
      %v1664 = vadd.f32 %v509, %v1663
      %v1665 = vpop.f32.mrb[0].mxu0
      %v1666 = vpop.f32.mrb[0].mxu0
      %v1667 = vpop.f32.mrb[0].mxu0
      %1668 = vdwg.mxu0
      %v1669 = vsel %vm717, %v1615, -inf
      %1670 = vmax.xlane.f32.xlu0 %v1669
      %v1671 = vpop.xlane.xlu0 %1670
      %v1672 = vsel %vm717, %v1664, -inf
      %1673 = vmax.xlane.f32.xlu0 %v1672
      %v1674 = vpop.xlane.xlu0 %1673
      %v1675 = vsub.f32 %v1615, %v1671
      %v1676 = vsub.f32 %v1664, %v1674
      %v1677 = vmul.f32 %v1675, 1.442695
      %v1678 = vpow.pop %v1677
      %v1679 = vmul.f32 %v1676, 1.442695
      %v1680 = vpow.pop %v1679
      %v1681 = vsel %vm717, %v1678, 0.0
      %1682 = vadd.xlane.f32.xlu0 %v1681
      %v1683 = vpop.xlane.xlu0 %1682
      %v1684 = vsel %vm717, %v1680, 0.0
      %1685 = vadd.xlane.f32.xlu0 %v1684
      %v1686 = vpop.xlane.xlu0 %1685
      %v1687 = vrcp.pop %v1683
      %v1688 = vrcp.pop %v1686
      %v1689 = vmul.f32 %v1678, %v1687
      %v1690 = vmul.f32 %v1680, %v1688
      %v1691 = vpack.c.bf16 %v1689, %v1689
      %v1692 = vpack.c.bf16 %v1690, %v1690
      %1693 = vrot.lane.b32.xlu0 %v1569, 64
      %v1694 = vpop.permute.xlu0 %1693
      %v1696 = vsel %vm717, %v1691, 0
      %v1699 = vsel %vm747, %v1694, 0
      %1701 = vmatprep.subr.bf16.mxu0 0
      %1702 = vmatpush1.bf16.msra.mxu0 %v1699
      %1703 = vmatprep.subr.bf16.mxu0 0
      %1704 = vmatpush1.bf16.msra.mxu0 0
      %1705 = vmatprep.subr.bf16.mxu0 0
      %1706 = vmatpush1.bf16.msra.mxu0 0
      %1707 = vmatprep.subr.bf16.mxu0 0
      %1708 = vmatpush1.bf16.msra.mxu0 0
      %1709 = vmatprep.subr.bf16.mxu0 0
      %1710 = vmatpush1.bf16.msra.mxu0 0
      %1711 = vmatprep.subr.bf16.mxu0 0
      %1712 = vmatpush1.bf16.msra.mxu0 0
      %1713 = vmatprep.subr.bf16.mxu0 0
      %1714 = vmatpush1.bf16.msra.mxu0 0
      %1715 = vmatprep.subr.bf16.mxu0 0
      %1716 = vmatpush1.bf16.msra.mxu0 0
      %1717 = vmatprep.subr.bf16.mxu0 0
      %1718 = vmatpush1.bf16.msra.mxu0 0
      %1719 = vmatprep.subr.bf16.mxu0 0
      %1720 = vmatpush1.bf16.msra.mxu0 0
      %1721 = vmatprep.subr.bf16.mxu0 0
      %1722 = vmatpush1.bf16.msra.mxu0 0
      %1723 = vmatprep.subr.bf16.mxu0 0
      %1724 = vmatpush1.bf16.msra.mxu0 0
      %1725 = vmatprep.subr.bf16.mxu0 0
      %1726 = vmatpush1.bf16.msra.mxu0 0
      %1727 = vmatprep.subr.bf16.mxu0 0
      %1728 = vmatpush1.bf16.msra.mxu0 0
      %1729 = vmatprep.subr.bf16.mxu0 0
      %1730 = vmatpush1.bf16.msra.mxu0 0
      %1731 = vmatprep.subr.bf16.mxu0 0
      %1732 = vmatpush1.bf16.msra.mxu0 0
      %1733 = vmatprep.mubr.bf16.mxu0 0
      %1734 = vmatmul.mubr.bf16.gmra.mrb[0].mxu0 %v1696
      %v1735 = vpop.f32.mrb[0].mxu0
      %v1736 = vadd.f32 0.0, %v1735
      %v1737 = vpop.f32.mrb[0].mxu0
      %v1738 = vpop.f32.mrb[0].mxu0
      %v1739 = vpop.f32.mrb[0].mxu0
      %1740 = vdwg.mxu0
      %1741 = vrot.lane.b32.xlu0 %v1570, 64
      %v1742 = vpop.permute.xlu0 %1741
      %v1744 = vsel %vm717, %v1692, 0
      %v1747 = vsel %vm747, %v1742, 0
      %1749 = vmatprep.subr.bf16.mxu0 0
      %1750 = vmatpush1.bf16.msra.mxu0 %v1747
      %1751 = vmatprep.subr.bf16.mxu0 0
      %1752 = vmatpush1.bf16.msra.mxu0 0
      %1753 = vmatprep.subr.bf16.mxu0 0
      %1754 = vmatpush1.bf16.msra.mxu0 0
      %1755 = vmatprep.subr.bf16.mxu0 0
      %1756 = vmatpush1.bf16.msra.mxu0 0
      %1757 = vmatprep.subr.bf16.mxu0 0
      %1758 = vmatpush1.bf16.msra.mxu0 0
      %1759 = vmatprep.subr.bf16.mxu0 0
      %1760 = vmatpush1.bf16.msra.mxu0 0
      %1761 = vmatprep.subr.bf16.mxu0 0
      %1762 = vmatpush1.bf16.msra.mxu0 0
      %1763 = vmatprep.subr.bf16.mxu0 0
      %1764 = vmatpush1.bf16.msra.mxu0 0
      %1765 = vmatprep.subr.bf16.mxu0 0
      %1766 = vmatpush1.bf16.msra.mxu0 0
      %1767 = vmatprep.subr.bf16.mxu0 0
      %1768 = vmatpush1.bf16.msra.mxu0 0
      %1769 = vmatprep.subr.bf16.mxu0 0
      %1770 = vmatpush1.bf16.msra.mxu0 0
      %1771 = vmatprep.subr.bf16.mxu0 0
      %1772 = vmatpush1.bf16.msra.mxu0 0
      %1773 = vmatprep.subr.bf16.mxu0 0
      %1774 = vmatpush1.bf16.msra.mxu0 0
      %1775 = vmatprep.subr.bf16.mxu0 0
      %1776 = vmatpush1.bf16.msra.mxu0 0
      %1777 = vmatprep.subr.bf16.mxu0 0
      %1778 = vmatpush1.bf16.msra.mxu0 0
      %1779 = vmatprep.subr.bf16.mxu0 0
      %1780 = vmatpush1.bf16.msra.mxu0 0
      %1781 = vmatprep.mubr.bf16.mxu0 0
      %1782 = vmatmul.mubr.bf16.gmra.mrb[0].mxu0 %v1744
      %v1783 = vpop.f32.mrb[0].mxu0
      %v1784 = vadd.f32 0.0, %v1783
      %v1785 = vpop.f32.mrb[0].mxu0
      %v1786 = vpop.f32.mrb[0].mxu0
      %v1787 = vpop.f32.mrb[0].mxu0
      %1788 = vdwg.mxu0
      %v1789 = vmul.f32 %v1736, %v842
      %v1790 = vmul.f32 %v1784, %v842
      %1793 = vrot.lane.b32.xlu0 %v1563, 32
      %v1794 = vpop.permute.xlu0 %1793
      %1795 = vrot.lane.b32.xlu0 %v1566, 32
      %v1796 = vpop.permute.xlu0 %1795
      %v1799 = vadd.f32 %v1789, %v1794
      %v1800 = vadd.f32 %v1790, %v1796
      %1803 = vrot.lane.b32.xlu0 %v1799, 4
      %v1804 = vpop.permute.xlu0 %1803
      %1805 = vrot.lane.b32.xlu0 %v1800, 4
      %v1806 = vpop.permute.xlu0 %1805
      %v1809 = vsel %vm864, %v1504, %v1804
      %v1810 = vsel %vm864, %v1505, %v1806
      %v1811 = vpack.c.bf16 %v1810, %v1809
      %v1813 = vsel %vm568, %v1811, 0
      %1815 = vmatprep.subr.bf16.mxu0 0
      %1816 = vmatpush1.bf16.msra.mxu0 %v884
      %1817 = vmatprep.subr.bf16.mxu0 0
      %1818 = vmatpush1.bf16.msra.mxu0 %v885
      %1819 = vmatprep.subr.bf16.mxu0 0
      %1820 = vmatpush1.bf16.msra.mxu0 %v893
      %1821 = vmatprep.subr.bf16.mxu0 0
      %1822 = vmatpush1.bf16.msra.mxu0 0
      %1823 = vmatprep.subr.bf16.mxu0 0
      %1824 = vmatpush1.bf16.msra.mxu0 0
      %1825 = vmatprep.subr.bf16.mxu0 0
      %1826 = vmatpush1.bf16.msra.mxu0 0
      %1827 = vmatprep.subr.bf16.mxu0 0
      %1828 = vmatpush1.bf16.msra.mxu0 0
      %1829 = vmatprep.subr.bf16.mxu0 0
      %1830 = vmatpush1.bf16.msra.mxu0 0
      %1831 = vmatprep.subr.bf16.mxu0 0
      %1832 = vmatpush1.bf16.msra.mxu0 0
      %1833 = vmatprep.subr.bf16.mxu0 0
      %1834 = vmatpush1.bf16.msra.mxu0 0
      %1835 = vmatprep.subr.bf16.mxu0 0
      %1836 = vmatpush1.bf16.msra.mxu0 0
      %1837 = vmatprep.subr.bf16.mxu0 0
      %1838 = vmatpush1.bf16.msra.mxu0 0
      %1839 = vmatprep.subr.bf16.mxu0 0
      %1840 = vmatpush1.bf16.msra.mxu0 0
      %1841 = vmatprep.subr.bf16.mxu0 0
      %1842 = vmatpush1.bf16.msra.mxu0 0
      %1843 = vmatprep.subr.bf16.mxu0 0
      %1844 = vmatpush1.bf16.msra.mxu0 0
      %1845 = vmatprep.subr.bf16.mxu0 0
      %1846 = vmatpush1.bf16.msra.mxu0 0
      %1847 = vmatprep.mubr.bf16.mxu0 0
      %1848 = vmatmul.mubr.bf16.gmra.mrb[0].mxu0 %v1813
      %v1849 = vpop.f32.mrb[0].mxu0
      %v1850 = vadd.f32 %v872, %v1849
      %v1851 = vpop.f32.mrb[0].mxu0
      %v1852 = vpop.f32.mrb[0].mxu0
      %v1853 = vadd.f32 %v872, %v1852
      %v1854 = vpop.f32.mrb[0].mxu0
      %1855 = vdwg.mxu0
      %v1856 = vxor.u32 %v1850, 2147483648
      %v1857 = vxor.u32 %v1853, 2147483648
      %v1858 = vmul.f32 %v1856, 1.442695
      %v1859 = vpow.pop %v1858
      %v1860 = vmul.f32 %v1857, 1.442695
      %v1861 = vpow.pop %v1860
      %v1862 = vadd.f32 %v1859, 1.0
      %v1863 = vadd.f32 %v1861, 1.0
      %v1864 = vrcp.pop %v1862
      %v1865 = vmul.f32 1.0, %v1864
      %v1866 = vrcp.pop %v1863
      %v1867 = vmul.f32 1.0, %v1866
      %v1868 = vmul.f32 %v1865, %v1799
      %v1869 = vmul.f32 %v1867, %v1800
      %1872 = vrot.lane.b32.xlu0 %v1868, 4
      %v1873 = vpop.permute.xlu0 %1872
      %1874 = vrot.lane.b32.xlu0 %v1869, 4
      %v1875 = vpop.permute.xlu0 %1874
      %v1878 = vsel %vm864, %v1504, %v1873
      %v1879 = vsel %vm864, %v1505, %v1875
      %v1880 = vpack.c.bf16 %v1879, %v1878
      %v1882 = vsel %vm568, %v1880, 0
      %1884 = vmatprep.subr.bf16.mxu0 0
      %1885 = vmatpush1.bf16.msra.mxu0 %v977
      %1886 = vmatprep.subr.bf16.mxu0 0
      %1887 = vmatpush1.bf16.msra.mxu0 %v978
      %1888 = vmatprep.subr.bf16.mxu0 0
      %1889 = vmatpush1.bf16.msra.mxu0 %v986
      %1890 = vmatprep.subr.bf16.mxu0 0
      %1891 = vmatpush1.bf16.msra.mxu0 0
      %1892 = vmatprep.subr.bf16.mxu0 0
      %1893 = vmatpush1.bf16.msra.mxu0 0
      %1894 = vmatprep.subr.bf16.mxu0 0
      %1895 = vmatpush1.bf16.msra.mxu0 0
      %1896 = vmatprep.subr.bf16.mxu0 0
      %1897 = vmatpush1.bf16.msra.mxu0 0
      %1898 = vmatprep.subr.bf16.mxu0 0
      %1899 = vmatpush1.bf16.msra.mxu0 0
      %1900 = vmatprep.subr.bf16.mxu0 0
      %1901 = vmatpush1.bf16.msra.mxu0 0
      %1902 = vmatprep.subr.bf16.mxu0 0
      %1903 = vmatpush1.bf16.msra.mxu0 0
      %1904 = vmatprep.subr.bf16.mxu0 0
      %1905 = vmatpush1.bf16.msra.mxu0 0
      %1906 = vmatprep.subr.bf16.mxu0 0
      %1907 = vmatpush1.bf16.msra.mxu0 0
      %1908 = vmatprep.subr.bf16.mxu0 0
      %1909 = vmatpush1.bf16.msra.mxu0 0
      %1910 = vmatprep.subr.bf16.mxu0 0
      %1911 = vmatpush1.bf16.msra.mxu0 0
      %1912 = vmatprep.subr.bf16.mxu0 0
      %1913 = vmatpush1.bf16.msra.mxu0 0
      %1914 = vmatprep.subr.bf16.mxu0 0
      %1915 = vmatpush1.bf16.msra.mxu0 0
      %1916 = vmatprep.mubr.bf16.mxu0 0
      %1917 = vmatmul.mubr.bf16.gmra.mrb[0].mxu0 %v1882
      %v1918 = vpop.f32.mrb[0].mxu0
      %v1919 = vadd.f32 %v965, %v1918
      %v1920 = vpop.f32.mrb[0].mxu0
      %v1921 = vpop.f32.mrb[0].mxu0
      %v1922 = vadd.f32 %v965, %v1921
      %v1923 = vpop.f32.mrb[0].mxu0
      %1924 = vdwg.mxu0
      %v1925 = vtanh.pop %v1919
      %v1926 = vtanh.pop %v1922
      %v1927 = vsub.f32 1.0, %v1865
      %v1928 = vsub.f32 1.0, %v1867
      %1929 = vrot.lane.b32.xlu0 %v1799, 32
      %v1930 = vpop.permute.xlu0 %1929
      %1931 = vrot.lane.b32.xlu0 %v1800, 32
      %v1932 = vpop.permute.xlu0 %1931
      %v1935 = vmul.f32 %v1927, %v1930
      %v1936 = vmul.f32 %v1928, %v1932
      %1939 = vrot.lane.b32.xlu0 %v1925, 32
      %v1940 = vpop.permute.xlu0 %1939
      %1941 = vrot.lane.b32.xlu0 %v1926, 32
      %v1942 = vpop.permute.xlu0 %1941
      %v1945 = vmul.f32 %v1865, %v1940
      %v1946 = vmul.f32 %v1867, %v1942
      %v1947 = vadd.f32 %v1935, %v1945
      %v1948 = vadd.f32 %v1936, %v1946
      %s1949 = scalar_select %p529, 3, 0
      %s1950 = smul.u32 %s1949, 16
      %s1951 = scalar_lea.vmem %s0, %s1950
      %v1952 = vld [vmem:[%s1951] sm:$0xff]
      %v1953 = vld [vmem:[%s1951 + $0x8] sm:$0xff]
      %1956 = vrot.lane.b32.xlu0 %v1947, 96
      %v1957 = vpop.permute.xlu0 %1956
      %1958 = vrot.lane.b32.xlu0 %v1948, 96
      %v1959 = vpop.permute.xlu0 %1958
      %1964 = vrot.lane.b32.xlu0 %v1952, 32
      %v1965 = vpop.permute.xlu0 %1964
      %1966 = vrot.lane.b32.xlu0 %v1953, 32
      %v1967 = vpop.permute.xlu0 %1966
      %v1970 = vsel %vm543, %v1957, %v1965
      %v1971 = vsel %vm543, %v1959, %v1967
      %v1972 = vpack.c.bf16 %v1971, %v1970
      %v1974 = vsel %vm568, %v1972, 0
      %1976 = vmatprep.subr.bf16.mxu0 0
      %1977 = vmatpush1.bf16.msra.mxu0 %v563
      %1978 = vmatprep.subr.bf16.mxu0 0
      %1979 = vmatpush1.bf16.msra.mxu0 %v564
      %1980 = vmatprep.subr.bf16.mxu0 0
      %1981 = vmatpush1.bf16.msra.mxu0 %v574
      %1982 = vmatprep.subr.bf16.mxu0 0
      %1983 = vmatpush1.bf16.msra.mxu0 0
      %1984 = vmatprep.subr.bf16.mxu0 0
      %1985 = vmatpush1.bf16.msra.mxu0 0
      %1986 = vmatprep.subr.bf16.mxu0 0
      %1987 = vmatpush1.bf16.msra.mxu0 0
      %1988 = vmatprep.subr.bf16.mxu0 0
      %1989 = vmatpush1.bf16.msra.mxu0 0
      %1990 = vmatprep.subr.bf16.mxu0 0
      %1991 = vmatpush1.bf16.msra.mxu0 0
      %1992 = vmatprep.subr.bf16.mxu0 0
      %1993 = vmatpush1.bf16.msra.mxu0 0
      %1994 = vmatprep.subr.bf16.mxu0 0
      %1995 = vmatpush1.bf16.msra.mxu0 0
      %1996 = vmatprep.subr.bf16.mxu0 0
      %1997 = vmatpush1.bf16.msra.mxu0 0
      %1998 = vmatprep.subr.bf16.mxu0 0
      %1999 = vmatpush1.bf16.msra.mxu0 0
      %2000 = vmatprep.subr.bf16.mxu0 0
      %2001 = vmatpush1.bf16.msra.mxu0 0
      %2002 = vmatprep.subr.bf16.mxu0 0
      %2003 = vmatpush1.bf16.msra.mxu0 0
      %2004 = vmatprep.subr.bf16.mxu0 0
      %2005 = vmatpush1.bf16.msra.mxu0 0
      %2006 = vmatprep.subr.bf16.mxu0 0
      %2007 = vmatpush1.bf16.msra.mxu0 0
      %2008 = vmatprep.mubr.bf16.mxu0 0
      %2009 = vmatmul.mubr.bf16.gmra.mrb[0].mxu0 %v1974
      %v2010 = vpop.f32.mrb[0].mxu0
      %v2011 = vadd.f32 %v551, %v2010
      %v2012 = vpop.f32.mrb[0].mxu0
      %v2013 = vpop.f32.mrb[0].mxu0
      %v2014 = vadd.f32 %v551, %v2013
      %v2015 = vpop.f32.mrb[0].mxu0
      %2016 = vdwg.mxu0
      %v2017 = vpack.c.bf16 %v2011, %v2011
      %v2018 = vpack.c.bf16 %v2014, %v2014
      %2020 = vrot.lane.b32.xlu0 %v2017, 96
      %v2021 = vpop.permute.xlu0 %2020
      %v2023 = vsel %vm543, %v2017, 0
      %v2026 = vsel %vm543, %v2021, 0
      %2028 = vmatprep.subr.bf16.mxu0 0
      %2029 = vmatpush1.bf16.xpose.msra.mxu0 %v2026
      %2030 = vmatprep.subr.bf16.mxu0 0
      %2031 = vmatpush1.bf16.xpose.msra.mxu0 0
      %2032 = vmatprep.subr.bf16.mxu0 0
      %2033 = vmatpush1.bf16.xpose.msra.mxu0 0
      %2034 = vmatprep.subr.bf16.mxu0 0
      %2035 = vmatpush1.bf16.xpose.msra.mxu0 0
      %2036 = vmatprep.subr.bf16.mxu0 0
      %2037 = vmatpush1.bf16.xpose.msra.mxu0 0
      %2038 = vmatprep.subr.bf16.mxu0 0
      %2039 = vmatpush1.bf16.xpose.msra.mxu0 0
      %2040 = vmatprep.subr.bf16.mxu0 0
      %2041 = vmatpush1.bf16.xpose.msra.mxu0 0
      %2042 = vmatprep.subr.bf16.mxu0 0
      %2043 = vmatpush1.bf16.xpose.msra.mxu0 0
      %2044 = vmatprep.subr.bf16.mxu0 0
      %2045 = vmatpush1.bf16.xpose.msra.mxu0 0
      %2046 = vmatprep.subr.bf16.mxu0 0
      %2047 = vmatpush1.bf16.xpose.msra.mxu0 0
      %2048 = vmatprep.subr.bf16.mxu0 0
      %2049 = vmatpush1.bf16.xpose.msra.mxu0 0
      %2050 = vmatprep.subr.bf16.mxu0 0
      %2051 = vmatpush1.bf16.xpose.msra.mxu0 0
      %2052 = vmatprep.subr.bf16.mxu0 0
      %2053 = vmatpush1.bf16.xpose.msra.mxu0 0
      %2054 = vmatprep.subr.bf16.mxu0 0
      %2055 = vmatpush1.bf16.xpose.msra.mxu0 0
      %2056 = vmatprep.subr.bf16.mxu0 0
      %2057 = vmatpush1.bf16.xpose.msra.mxu0 0
      %2058 = vmatprep.subr.bf16.mxu0 0
      %2059 = vmatpush1.bf16.xpose.msra.mxu0 0
      %2060 = vmatprep.mubr.bf16.mxu0 0
      %2061 = vmatmul.mubr.bf16.gmra.mrb[0].mxu0 %v2023
      %v2062 = vpop.f32.mrb[0].mxu0
      %v2063 = vadd.f32 %v509, %v2062
      %v2064 = vpop.f32.mrb[0].mxu0
      %v2065 = vpop.f32.mrb[0].mxu0
      %v2066 = vpop.f32.mrb[0].mxu0
      %2067 = vdwg.mxu0
      %2069 = vrot.lane.b32.xlu0 %v2018, 96
      %v2070 = vpop.permute.xlu0 %2069
      %v2072 = vsel %vm543, %v2018, 0
      %v2075 = vsel %vm543, %v2070, 0
      %2077 = vmatprep.subr.bf16.mxu0 0
      %2078 = vmatpush1.bf16.xpose.msra.mxu0 %v2075
      %2079 = vmatprep.subr.bf16.mxu0 0
      %2080 = vmatpush1.bf16.xpose.msra.mxu0 0
      %2081 = vmatprep.subr.bf16.mxu0 0
      %2082 = vmatpush1.bf16.xpose.msra.mxu0 0
      %2083 = vmatprep.subr.bf16.mxu0 0
      %2084 = vmatpush1.bf16.xpose.msra.mxu0 0
      %2085 = vmatprep.subr.bf16.mxu0 0
      %2086 = vmatpush1.bf16.xpose.msra.mxu0 0
      %2087 = vmatprep.subr.bf16.mxu0 0
      %2088 = vmatpush1.bf16.xpose.msra.mxu0 0
      %2089 = vmatprep.subr.bf16.mxu0 0
      %2090 = vmatpush1.bf16.xpose.msra.mxu0 0
      %2091 = vmatprep.subr.bf16.mxu0 0
      %2092 = vmatpush1.bf16.xpose.msra.mxu0 0
      %2093 = vmatprep.subr.bf16.mxu0 0
      %2094 = vmatpush1.bf16.xpose.msra.mxu0 0
      %2095 = vmatprep.subr.bf16.mxu0 0
      %2096 = vmatpush1.bf16.xpose.msra.mxu0 0
      %2097 = vmatprep.subr.bf16.mxu0 0
      %2098 = vmatpush1.bf16.xpose.msra.mxu0 0
      %2099 = vmatprep.subr.bf16.mxu0 0
      %2100 = vmatpush1.bf16.xpose.msra.mxu0 0
      %2101 = vmatprep.subr.bf16.mxu0 0
      %2102 = vmatpush1.bf16.xpose.msra.mxu0 0
      %2103 = vmatprep.subr.bf16.mxu0 0
      %2104 = vmatpush1.bf16.xpose.msra.mxu0 0
      %2105 = vmatprep.subr.bf16.mxu0 0
      %2106 = vmatpush1.bf16.xpose.msra.mxu0 0
      %2107 = vmatprep.subr.bf16.mxu0 0
      %2108 = vmatpush1.bf16.xpose.msra.mxu0 0
      %2109 = vmatprep.mubr.bf16.mxu0 0
      %2110 = vmatmul.mubr.bf16.gmra.mrb[0].mxu0 %v2072
      %v2111 = vpop.f32.mrb[0].mxu0
      %v2112 = vadd.f32 %v509, %v2111
      %v2113 = vpop.f32.mrb[0].mxu0
      %v2114 = vpop.f32.mrb[0].mxu0
      %v2115 = vpop.f32.mrb[0].mxu0
      %2116 = vdwg.mxu0
      %v2117 = vsel %vm717, %v2063, -inf
      %2118 = vmax.xlane.f32.xlu0 %v2117
      %v2119 = vpop.xlane.xlu0 %2118
      %v2120 = vsel %vm717, %v2112, -inf
      %2121 = vmax.xlane.f32.xlu0 %v2120
      %v2122 = vpop.xlane.xlu0 %2121
      %v2123 = vsub.f32 %v2063, %v2119
      %v2124 = vsub.f32 %v2112, %v2122
      %v2125 = vmul.f32 %v2123, 1.442695
      %v2126 = vpow.pop %v2125
      %v2127 = vmul.f32 %v2124, 1.442695
      %v2128 = vpow.pop %v2127
      %v2129 = vsel %vm717, %v2126, 0.0
      %2130 = vadd.xlane.f32.xlu0 %v2129
      %v2131 = vpop.xlane.xlu0 %2130
      %v2132 = vsel %vm717, %v2128, 0.0
      %2133 = vadd.xlane.f32.xlu0 %v2132
      %v2134 = vpop.xlane.xlu0 %2133
      %v2135 = vrcp.pop %v2131
      %v2136 = vrcp.pop %v2134
      %v2137 = vmul.f32 %v2126, %v2135
      %v2138 = vmul.f32 %v2128, %v2136
      %v2139 = vpack.c.bf16 %v2137, %v2137
      %v2140 = vpack.c.bf16 %v2138, %v2138
      %2141 = vrot.lane.b32.xlu0 %v2017, 64
      %v2142 = vpop.permute.xlu0 %2141
      %v2144 = vsel %vm717, %v2139, 0
      %v2147 = vsel %vm747, %v2142, 0
      %2149 = vmatprep.subr.bf16.mxu0 0
      %2150 = vmatpush1.bf16.msra.mxu0 %v2147
      %2151 = vmatprep.subr.bf16.mxu0 0
      %2152 = vmatpush1.bf16.msra.mxu0 0
      %2153 = vmatprep.subr.bf16.mxu0 0
      %2154 = vmatpush1.bf16.msra.mxu0 0
      %2155 = vmatprep.subr.bf16.mxu0 0
      %2156 = vmatpush1.bf16.msra.mxu0 0
      %2157 = vmatprep.subr.bf16.mxu0 0
      %2158 = vmatpush1.bf16.msra.mxu0 0
      %2159 = vmatprep.subr.bf16.mxu0 0
      %2160 = vmatpush1.bf16.msra.mxu0 0
      %2161 = vmatprep.subr.bf16.mxu0 0
      %2162 = vmatpush1.bf16.msra.mxu0 0
      %2163 = vmatprep.subr.bf16.mxu0 0
      %2164 = vmatpush1.bf16.msra.mxu0 0
      %2165 = vmatprep.subr.bf16.mxu0 0
      %2166 = vmatpush1.bf16.msra.mxu0 0
      %2167 = vmatprep.subr.bf16.mxu0 0
      %2168 = vmatpush1.bf16.msra.mxu0 0
      %2169 = vmatprep.subr.bf16.mxu0 0
      %2170 = vmatpush1.bf16.msra.mxu0 0
      %2171 = vmatprep.subr.bf16.mxu0 0
      %2172 = vmatpush1.bf16.msra.mxu0 0
      %2173 = vmatprep.subr.bf16.mxu0 0
      %2174 = vmatpush1.bf16.msra.mxu0 0
      %2175 = vmatprep.subr.bf16.mxu0 0
      %2176 = vmatpush1.bf16.msra.mxu0 0
      %2177 = vmatprep.subr.bf16.mxu0 0
      %2178 = vmatpush1.bf16.msra.mxu0 0
      %2179 = vmatprep.subr.bf16.mxu0 0
      %2180 = vmatpush1.bf16.msra.mxu0 0
      %2181 = vmatprep.mubr.bf16.mxu0 0
      %2182 = vmatmul.mubr.bf16.gmra.mrb[0].mxu0 %v2144
      %v2183 = vpop.f32.mrb[0].mxu0
      %v2184 = vadd.f32 0.0, %v2183
      %v2185 = vpop.f32.mrb[0].mxu0
      %v2186 = vpop.f32.mrb[0].mxu0
      %v2187 = vpop.f32.mrb[0].mxu0
      %2188 = vdwg.mxu0
      %2189 = vrot.lane.b32.xlu0 %v2018, 64
      %v2190 = vpop.permute.xlu0 %2189
      %v2192 = vsel %vm717, %v2140, 0
      %v2195 = vsel %vm747, %v2190, 0
      %2197 = vmatprep.subr.bf16.mxu0 0
      %2198 = vmatpush1.bf16.msra.mxu0 %v2195
      %2199 = vmatprep.subr.bf16.mxu0 0
      %2200 = vmatpush1.bf16.msra.mxu0 0
      %2201 = vmatprep.subr.bf16.mxu0 0
      %2202 = vmatpush1.bf16.msra.mxu0 0
      %2203 = vmatprep.subr.bf16.mxu0 0
      %2204 = vmatpush1.bf16.msra.mxu0 0
      %2205 = vmatprep.subr.bf16.mxu0 0
      %2206 = vmatpush1.bf16.msra.mxu0 0
      %2207 = vmatprep.subr.bf16.mxu0 0
      %2208 = vmatpush1.bf16.msra.mxu0 0
      %2209 = vmatprep.subr.bf16.mxu0 0
      %2210 = vmatpush1.bf16.msra.mxu0 0
      %2211 = vmatprep.subr.bf16.mxu0 0
      %2212 = vmatpush1.bf16.msra.mxu0 0
      %2213 = vmatprep.subr.bf16.mxu0 0
      %2214 = vmatpush1.bf16.msra.mxu0 0
      %2215 = vmatprep.subr.bf16.mxu0 0
      %2216 = vmatpush1.bf16.msra.mxu0 0
      %2217 = vmatprep.subr.bf16.mxu0 0
      %2218 = vmatpush1.bf16.msra.mxu0 0
      %2219 = vmatprep.subr.bf16.mxu0 0
      %2220 = vmatpush1.bf16.msra.mxu0 0
      %2221 = vmatprep.subr.bf16.mxu0 0
      %2222 = vmatpush1.bf16.msra.mxu0 0
      %2223 = vmatprep.subr.bf16.mxu0 0
      %2224 = vmatpush1.bf16.msra.mxu0 0
      %2225 = vmatprep.subr.bf16.mxu0 0
      %2226 = vmatpush1.bf16.msra.mxu0 0
      %2227 = vmatprep.subr.bf16.mxu0 0
      %2228 = vmatpush1.bf16.msra.mxu0 0
      %2229 = vmatprep.mubr.bf16.mxu0 0
      %2230 = vmatmul.mubr.bf16.gmra.mrb[0].mxu0 %v2192
      %v2231 = vpop.f32.mrb[0].mxu0
      %v2232 = vadd.f32 0.0, %v2231
      %v2233 = vpop.f32.mrb[0].mxu0
      %v2234 = vpop.f32.mrb[0].mxu0
      %v2235 = vpop.f32.mrb[0].mxu0
      %2236 = vdwg.mxu0
      %v2237 = vmul.f32 %v2184, %v842
      %v2238 = vmul.f32 %v2232, %v842
      %2241 = vrot.lane.b32.xlu0 %v2011, 32
      %v2242 = vpop.permute.xlu0 %2241
      %2243 = vrot.lane.b32.xlu0 %v2014, 32
      %v2244 = vpop.permute.xlu0 %2243
      %v2247 = vadd.f32 %v2237, %v2242
      %v2248 = vadd.f32 %v2238, %v2244
      %2251 = vrot.lane.b32.xlu0 %v2247, 4
      %v2252 = vpop.permute.xlu0 %2251
      %2253 = vrot.lane.b32.xlu0 %v2248, 4
      %v2254 = vpop.permute.xlu0 %2253
      %v2257 = vsel %vm864, %v1952, %v2252
      %v2258 = vsel %vm864, %v1953, %v2254
      %v2259 = vpack.c.bf16 %v2258, %v2257
      %v2261 = vsel %vm568, %v2259, 0
      %2263 = vmatprep.subr.bf16.mxu0 0
      %2264 = vmatpush1.bf16.msra.mxu0 %v884
      %2265 = vmatprep.subr.bf16.mxu0 0
      %2266 = vmatpush1.bf16.msra.mxu0 %v885
      %2267 = vmatprep.subr.bf16.mxu0 0
      %2268 = vmatpush1.bf16.msra.mxu0 %v893
      %2269 = vmatprep.subr.bf16.mxu0 0
      %2270 = vmatpush1.bf16.msra.mxu0 0
      %2271 = vmatprep.subr.bf16.mxu0 0
      %2272 = vmatpush1.bf16.msra.mxu0 0
      %2273 = vmatprep.subr.bf16.mxu0 0
      %2274 = vmatpush1.bf16.msra.mxu0 0
      %2275 = vmatprep.subr.bf16.mxu0 0
      %2276 = vmatpush1.bf16.msra.mxu0 0
      %2277 = vmatprep.subr.bf16.mxu0 0
      %2278 = vmatpush1.bf16.msra.mxu0 0
      %2279 = vmatprep.subr.bf16.mxu0 0
      %2280 = vmatpush1.bf16.msra.mxu0 0
      %2281 = vmatprep.subr.bf16.mxu0 0
      %2282 = vmatpush1.bf16.msra.mxu0 0
      %2283 = vmatprep.subr.bf16.mxu0 0
      %2284 = vmatpush1.bf16.msra.mxu0 0
      %2285 = vmatprep.subr.bf16.mxu0 0
      %2286 = vmatpush1.bf16.msra.mxu0 0
      %2287 = vmatprep.subr.bf16.mxu0 0
      %2288 = vmatpush1.bf16.msra.mxu0 0
      %2289 = vmatprep.subr.bf16.mxu0 0
      %2290 = vmatpush1.bf16.msra.mxu0 0
      %2291 = vmatprep.subr.bf16.mxu0 0
      %2292 = vmatpush1.bf16.msra.mxu0 0
      %2293 = vmatprep.subr.bf16.mxu0 0
      %2294 = vmatpush1.bf16.msra.mxu0 0
      %2295 = vmatprep.mubr.bf16.mxu0 0
      %2296 = vmatmul.mubr.bf16.gmra.mrb[0].mxu0 %v2261
      %v2297 = vpop.f32.mrb[0].mxu0
      %v2298 = vadd.f32 %v872, %v2297
      %v2299 = vpop.f32.mrb[0].mxu0
      %v2300 = vpop.f32.mrb[0].mxu0
      %v2301 = vadd.f32 %v872, %v2300
      %v2302 = vpop.f32.mrb[0].mxu0
      %2303 = vdwg.mxu0
      %v2304 = vxor.u32 %v2298, 2147483648
      %v2305 = vxor.u32 %v2301, 2147483648
      %v2306 = vmul.f32 %v2304, 1.442695
      %v2307 = vpow.pop %v2306
      %v2308 = vmul.f32 %v2305, 1.442695
      %v2309 = vpow.pop %v2308
      %v2310 = vadd.f32 %v2307, 1.0
      %v2311 = vadd.f32 %v2309, 1.0
      %v2312 = vrcp.pop %v2310
      %v2313 = vmul.f32 1.0, %v2312
      %v2314 = vrcp.pop %v2311
      %v2315 = vmul.f32 1.0, %v2314
      %v2316 = vmul.f32 %v2313, %v2247
      %v2317 = vmul.f32 %v2315, %v2248
      %2320 = vrot.lane.b32.xlu0 %v2316, 4
      %v2321 = vpop.permute.xlu0 %2320
      %2322 = vrot.lane.b32.xlu0 %v2317, 4
      %v2323 = vpop.permute.xlu0 %2322
      %v2326 = vsel %vm864, %v1952, %v2321
      %v2327 = vsel %vm864, %v1953, %v2323
      %v2328 = vpack.c.bf16 %v2327, %v2326
      %v2330 = vsel %vm568, %v2328, 0
      %2332 = vmatprep.subr.bf16.mxu0 0
      %2333 = vmatpush1.bf16.msra.mxu0 %v977
      %2334 = vmatprep.subr.bf16.mxu0 0
      %2335 = vmatpush1.bf16.msra.mxu0 %v978
      %2336 = vmatprep.subr.bf16.mxu0 0
      %2337 = vmatpush1.bf16.msra.mxu0 %v986
      %2338 = vmatprep.subr.bf16.mxu0 0
      %2339 = vmatpush1.bf16.msra.mxu0 0
      %2340 = vmatprep.subr.bf16.mxu0 0
      %2341 = vmatpush1.bf16.msra.mxu0 0
      %2342 = vmatprep.subr.bf16.mxu0 0
      %2343 = vmatpush1.bf16.msra.mxu0 0
      %2344 = vmatprep.subr.bf16.mxu0 0
      %2345 = vmatpush1.bf16.msra.mxu0 0
      %2346 = vmatprep.subr.bf16.mxu0 0
      %2347 = vmatpush1.bf16.msra.mxu0 0
      %2348 = vmatprep.subr.bf16.mxu0 0
      %2349 = vmatpush1.bf16.msra.mxu0 0
      %2350 = vmatprep.subr.bf16.mxu0 0
      %2351 = vmatpush1.bf16.msra.mxu0 0
      %2352 = vmatprep.subr.bf16.mxu0 0
      %2353 = vmatpush1.bf16.msra.mxu0 0
      %2354 = vmatprep.subr.bf16.mxu0 0
      %2355 = vmatpush1.bf16.msra.mxu0 0
      %2356 = vmatprep.subr.bf16.mxu0 0
      %2357 = vmatpush1.bf16.msra.mxu0 0
      %2358 = vmatprep.subr.bf16.mxu0 0
      %2359 = vmatpush1.bf16.msra.mxu0 0
      %2360 = vmatprep.subr.bf16.mxu0 0
      %2361 = vmatpush1.bf16.msra.mxu0 0
      %2362 = vmatprep.subr.bf16.mxu0 0
      %2363 = vmatpush1.bf16.msra.mxu0 0
      %2364 = vmatprep.mubr.bf16.mxu0 0
      %2365 = vmatmul.mubr.bf16.gmra.mrb[0].mxu0 %v2330
      %v2366 = vpop.f32.mrb[0].mxu0
      %v2367 = vadd.f32 %v965, %v2366
      %v2368 = vpop.f32.mrb[0].mxu0
      %v2369 = vpop.f32.mrb[0].mxu0
      %v2370 = vadd.f32 %v965, %v2369
      %v2371 = vpop.f32.mrb[0].mxu0
      %2372 = vdwg.mxu0
      %v2373 = vtanh.pop %v2367
      %v2374 = vtanh.pop %v2370
      %v2375 = vsub.f32 1.0, %v2313
      %v2376 = vsub.f32 1.0, %v2315
      %2377 = vrot.lane.b32.xlu0 %v2247, 32
      %v2378 = vpop.permute.xlu0 %2377
      %2379 = vrot.lane.b32.xlu0 %v2248, 32
      %v2380 = vpop.permute.xlu0 %2379
      %v2383 = vmul.f32 %v2375, %v2378
      %v2384 = vmul.f32 %v2376, %v2380
      %2387 = vrot.lane.b32.xlu0 %v2373, 32
      %v2388 = vpop.permute.xlu0 %2387
      %2389 = vrot.lane.b32.xlu0 %v2374, 32
      %v2390 = vpop.permute.xlu0 %2389
      %v2393 = vmul.f32 %v2313, %v2388
      %v2394 = vmul.f32 %v2315, %v2390
      %v2395 = vadd.f32 %v2383, %v2393
      %v2396 = vadd.f32 %v2384, %v2394
      // Predicated region
      $region73: #{graph_gru_forward.1} parent=71 // pred_check
        %p2397 = pneg %p529
      $region74: #{graph_gru_forward.1} parent=71 // pred_check_branch
        %2399 = sbr.rel (%p2397) target = $region76
      $region75: #{graph_gru_forward.1} parent=71 // pred_region
        %2402 = vrot.lane.b32.xlu0 %v2395, 96
        %v2403 = vpop.permute.xlu0 %2402
        %2404 = vrot.lane.b32.xlu0 %v2396, 96
        %v2405 = vpop.permute.xlu0 %2404
        %2408 = vst.msk [vmem:[#allocation2] sm:$0xff] %vm543, %v2403
        %2409 = vst.msk [vmem:[#allocation2 + $0x8] sm:$0xff] %vm543, %v2405
      $region76: #{graph_gru_forward.1} parent=71 // pred_fallthru
        _
      %p2410 = scmp.eq.s32.totalorder %s24, 1
      // Predicated region
      $region77: #{graph_gru_forward.1} parent=71 // pred_check
        %p2411 = pneg %p2410
      $region78: #{graph_gru_forward.1} parent=71 // pred_check_branch
        %2413 = sbr.rel (%p2411) target = $region80
      $region79: #{graph_gru_forward.1} parent=71 // pred_region
        %v2414 = vld [vmem:[#allocation2] sm:$0xff]
        %v2415 = vld [vmem:[#allocation2 + $0x8] sm:$0xff]
        %v2416 = vsel %vm543, %v2414, %v2395
        %v2417 = vsel %vm543, %v2415, %v2396
        %v2418 = vpack.c.bf16 %v2417, %v2416
        %v2419 = vld [vmem:[%s9] sm:$0xf]
        %v2420 = vld [vmem:[%s9 + $0x4] sm:$0xf]
        %v2421 = vld [vmem:[%s9 + $0x8] sm:$0xf]
        %v2422 = vld [vmem:[%s9 + $0xc] sm:$0xf]
        %v2423 = vld [vmem:[%s9 + $0x10] sm:$0xf]
        %v2424 = vld [vmem:[%s9 + $0x14] sm:$0xf]
        %v2425 = vld [vmem:[%s9 + $0x18] sm:$0xf]
        %v2426 = vld [vmem:[%s9 + $0x1c] sm:$0xf]
        %v2427 = vld [vmem:[%s10] sm:$0x1]
        %v2429 = vlaneseq
        %v2430 = vshrl.u32 %v2429, 7
        %v2431 = vsub.s32 0, %v2430
        %v2432 = vrot.slane %v2427, %v2431
        %v2442 = vunpack.c.l.b16 %v2419
        %v2443 = vunpack.c.l.b16 %v2420
        %v2444 = vunpack.c.l.b16 %v2421
        %v2445 = vunpack.c.l.b16 %v2422
        %v2446 = vunpack.c.l.b16 %v2423
        %v2447 = vunpack.c.l.b16 %v2424
        %v2448 = vunpack.c.l.b16 %v2425
        %v2449 = vunpack.c.l.b16 %v2426
        %v2450 = vpack.c.b16 %v2443, %v2442
        %v2451 = vpack.c.b16 %v2445, %v2444
        %v2452 = vpack.c.b16 %v2447, %v2446
        %v2453 = vpack.c.b16 %v2449, %v2448
        %vm2458 = vcmask 523264
        %v2460 = vsel %vm2458, %v2418, 0
        %2462 = vmatprep.subr.bf16.mxu0 0
        %2463 = vmatpush1.bf16.msra.mxu0 %v2450
        %2464 = vmatprep.subr.bf16.mxu0 0
        %2465 = vmatpush1.bf16.msra.mxu0 %v2451
        %2466 = vmatprep.subr.bf16.mxu0 0
        %2467 = vmatpush1.bf16.msra.mxu0 %v2452
        %2468 = vmatprep.subr.bf16.mxu0 0
        %2469 = vmatpush1.bf16.msra.mxu0 %v2453
        %2470 = vmatprep.subr.bf16.mxu0 0
        %2471 = vmatpush1.bf16.msra.mxu0 0
        %2472 = vmatprep.subr.bf16.mxu0 0
        %2473 = vmatpush1.bf16.msra.mxu0 0
        %2474 = vmatprep.subr.bf16.mxu0 0
        %2475 = vmatpush1.bf16.msra.mxu0 0
        %2476 = vmatprep.subr.bf16.mxu0 0
        %2477 = vmatpush1.bf16.msra.mxu0 0
        %2478 = vmatprep.subr.bf16.mxu0 0
        %2479 = vmatpush1.bf16.msra.mxu0 0
        %2480 = vmatprep.subr.bf16.mxu0 0
        %2481 = vmatpush1.bf16.msra.mxu0 0
        %2482 = vmatprep.subr.bf16.mxu0 0
        %2483 = vmatpush1.bf16.msra.mxu0 0
        %2484 = vmatprep.subr.bf16.mxu0 0
        %2485 = vmatpush1.bf16.msra.mxu0 0
        %2486 = vmatprep.subr.bf16.mxu0 0
        %2487 = vmatpush1.bf16.msra.mxu0 0
        %2488 = vmatprep.subr.bf16.mxu0 0
        %2489 = vmatpush1.bf16.msra.mxu0 0
        %2490 = vmatprep.subr.bf16.mxu0 0
        %2491 = vmatpush1.bf16.msra.mxu0 0
        %2492 = vmatprep.subr.bf16.mxu0 0
        %2493 = vmatpush1.bf16.msra.mxu0 0
        %2494 = vmatprep.mubr.bf16.mxu0 0
        %2495 = vmatmul.mubr.bf16.gmra.mrb[0].mxu0 %v2460
        %v2496 = vpop.f32.mrb[0].mxu0
        %v2497 = vadd.f32 %v2432, %v2496
        %v2498 = vpop.f32.mrb[0].mxu0
        %v2499 = vpop.f32.mrb[0].mxu0
        %v2500 = vadd.f32 %v2432, %v2499
        %v2501 = vpop.f32.mrb[0].mxu0
        %2502 = vdwg.mxu0
        %v2503 = vmax.f32 %v2497, 0.0
        %v2504 = vmax.f32 %v2500, 0.0
        %v2505 = vpack.c.bf16 %v2504, %v2503
        %v2506 = vld [vmem:[%s11] sm:$0xf]
        %v2507 = vld [vmem:[%s11 + $0x4] sm:$0xf]
        %v2508 = vld [vmem:[%s11 + $0x8] sm:$0xf]
        %v2509 = vld [vmem:[%s11 + $0xc] sm:$0xf]
        %v2510 = vld [vmem:[%s12] sm:$0x1]
        %v2512 = vlaneseq
        %v2513 = vshrl.u32 %v2512, 7
        %v2514 = vsub.s32 0, %v2513
        %v2515 = vrot.slane %v2510, %v2514
        %v2521 = vunpack.c.l.b16 %v2506
        %v2522 = vunpack.c.l.b16 %v2507
        %v2523 = vunpack.c.l.b16 %v2508
        %v2524 = vunpack.c.l.b16 %v2509
        %v2525 = vpack.c.b16 %v2522, %v2521
        %v2526 = vpack.c.b16 %v2524, %v2523
        %v2530 = vsel %vm543, %v2505, 0
        %2532 = vmatprep.subr.bf16.mxu0 0
        %2533 = vmatpush1.bf16.msra.mxu0 %v2525
        %2534 = vmatprep.subr.bf16.mxu0 0
        %2535 = vmatpush1.bf16.msra.mxu0 %v2526
        %2536 = vmatprep.subr.bf16.mxu0 0
        %2537 = vmatpush1.bf16.msra.mxu0 0
        %2538 = vmatprep.subr.bf16.mxu0 0
        %2539 = vmatpush1.bf16.msra.mxu0 0
        %2540 = vmatprep.subr.bf16.mxu0 0
        %2541 = vmatpush1.bf16.msra.mxu0 0
        %2542 = vmatprep.subr.bf16.mxu0 0
        %2543 = vmatpush1.bf16.msra.mxu0 0
        %2544 = vmatprep.subr.bf16.mxu0 0
        %2545 = vmatpush1.bf16.msra.mxu0 0
        %2546 = vmatprep.subr.bf16.mxu0 0
        %2547 = vmatpush1.bf16.msra.mxu0 0
        %2548 = vmatprep.subr.bf16.mxu0 0
        %2549 = vmatpush1.bf16.msra.mxu0 0
        %2550 = vmatprep.subr.bf16.mxu0 0
        %2551 = vmatpush1.bf16.msra.mxu0 0
        %2552 = vmatprep.subr.bf16.mxu0 0
        %2553 = vmatpush1.bf16.msra.mxu0 0
        %2554 = vmatprep.subr.bf16.mxu0 0
        %2555 = vmatpush1.bf16.msra.mxu0 0
        %2556 = vmatprep.subr.bf16.mxu0 0
        %2557 = vmatpush1.bf16.msra.mxu0 0
        %2558 = vmatprep.subr.bf16.mxu0 0
        %2559 = vmatpush1.bf16.msra.mxu0 0
        %2560 = vmatprep.subr.bf16.mxu0 0
        %2561 = vmatpush1.bf16.msra.mxu0 0
        %2562 = vmatprep.subr.bf16.mxu0 0
        %2563 = vmatpush1.bf16.msra.mxu0 0
        %2564 = vmatprep.mubr.bf16.mxu0 0
        %2565 = vmatmul.mubr.bf16.gmra.mrb[0].mxu0 %v2530
        %v2566 = vpop.f32.mrb[0].mxu0
        %v2567 = vadd.f32 %v2515, %v2566
        %v2568 = vpop.f32.mrb[0].mxu0
        %v2569 = vpop.f32.mrb[0].mxu0
        %v2570 = vadd.f32 %v2515, %v2569
        %v2571 = vpop.f32.mrb[0].mxu0
        %2572 = vdwg.mxu0
        %v2573 = vxor.u32 %v2567, 2147483648
        %v2574 = vxor.u32 %v2570, 2147483648
        %v2575 = vmul.f32 %v2573, 1.442695
        %v2576 = vpow.pop %v2575
        %v2577 = vmul.f32 %v2574, 1.442695
        %v2578 = vpow.pop %v2577
        %v2579 = vadd.f32 %v2576, 1.0
        %v2580 = vadd.f32 %v2578, 1.0
        %v2581 = vrcp.pop %v2579
        %v2582 = vmul.f32 1.0, %v2581
        %v2583 = vrcp.pop %v2580
        %v2584 = vmul.f32 1.0, %v2583
        %vm2585 = vcmask 15360
        %2586 = vst.msk [vmem:[%s13] sm:$0xff] %vm2585, %v2582
        %2587 = vst.msk [vmem:[%s13 + $0x8] sm:$0xff] %vm2585, %v2584
      $region80: #{graph_gru_forward.1} parent=71 // pred_fallthru
        _
      // Predicated region
      $region81: #{graph_gru_forward.1} parent=71 // pred_check
        %p2588 = pneg %p340
      $region82: #{graph_gru_forward.1} parent=71 // pred_check_branch
        %2590 = sbr.rel (%p2588) target = $region84
      $region83: #{graph_gru_forward.1} parent=71 // pred_region
        _
      $region84: #{graph_gru_forward.1} parent=71 // pred_fallthru
        _
      // Predicated region
      $region85: #{graph_gru_forward.1} parent=71 // pred_check
        %p2591 = pneg %p340
      $region86: #{graph_gru_forward.1} parent=71 // pred_check_branch
        %2593 = sbr.rel (%p2591) target = $region88
      $region87: #{graph_gru_forward.1} parent=71 // pred_region
        _
      $region88: #{graph_gru_forward.1} parent=71 // pred_fallthru
        _
    $region72: #{graph_gru_forward.1} parent=5 // pred_fallthru
      _
    %p2594 = scmp.le.s32.totalorder 2, %s19
    // Predicated region
    $region89: #{graph_gru_forward.1} parent=5 // pred_check
      %p2595 = pneg %p2594
    $region90: #{graph_gru_forward.1} parent=5 // pred_check_branch
      %2597 = sbr.rel (%p2595) target = $region92
    $region91: #{graph_gru_forward.1} parent=5 // pred_region
      %s2598 = ssub.s32 %s19, 2
    $region92: #{graph_gru_forward.1} parent=5 // pred_fallthru
      _
  $region6: #{graph_gru_forward.1} parent=0 // loop_footer
    %s23 = sadd.s32 1, %s19
  $region7: #{graph_gru_forward.1} parent=0 // loop_footer_branch
    %18 = sbr.rel target = $region3
  $region8: #{graph_gru_forward.1} parent=0 // loop_exit
    _

</llo_original>
